<compile_context>
chip_gen: v5e
topology: v5e:2x2
jax: 0.10.0
libtpu: 0.0.40
codegen_flags: <defaults>
</compile_context>

<pallas_src>
import math
import functools

import jax
import jax.numpy as jnp
from jax.experimental import pallas as pl
from jax.experimental.pallas import tpu as pltpu


# ----------------------------------------------------------------------------
# Hardware-aware tile tables / VMEM limit
# ----------------------------------------------------------------------------

@functools.lru_cache(maxsize=None)
def _hw():
    try:
        info = pltpu.get_tpu_info()
        vmem = int(info.vmem_capacity_bytes)
    except Exception:
        vmem = None
    if vmem is not None and vmem >= (100 << 20):        # v5e / v6e: 128 MiB VMEM
        return {
            "m": (512, 256, 128, 64, 32, 16, 8),
            "n": (1024, 768, 640, 512, 384, 256, 128),
            "k": (640, 512, 256, 128),
            "vmem_limit": min(96 << 20, (vmem * 3) // 4),
        }
    if vmem is not None:                                 # v7x: 64 MiB VMEM
        return {
            "m": (256, 128, 64, 32, 16, 8),
            "n": (640, 512, 384, 256, 128),
            "k": (640, 512, 256, 128),
            "vmem_limit": (vmem * 3) // 4,
        }
    return {                                             # unknown: conservative
        "m": (256, 128, 64, 32, 16, 8),
        "n": (512, 384, 256, 128),
        "k": (512, 256, 128),
        "vmem_limit": None,
    }


def _cparams(dim_sem):
    kw = dict(dimension_semantics=dim_sem)
    lim = _hw()["vmem_limit"]
    if lim is not None:
        kw["vmem_limit_bytes"] = lim
    return pltpu.CompilerParams(**kw)


def _pick_tile(dim, candidates):
    for c in candidates:
        if c <= dim and dim % c == 0:
            return c
    return dim                       # fall back to full extent (small/odd dims)


def _round_up(x, m):
    return ((x + m - 1) // m) * m


def _pad_rows(x, mp):
    m = x.shape[0]
    if m == mp:
        return x
    return jnp.pad(x, ((0, mp - m),) + ((0, 0),) * (x.ndim - 1))


# ----------------------------------------------------------------------------
# General tiled matmul (optional fused bias + residual epilogue).
# bf16 MXU operands (activation cast happens IN-KERNEL), f32 accumulation.
# ----------------------------------------------------------------------------

def _make_mm_kernel(nk, has_bias, has_res):
    def kernel(*refs):
        x_ref, w_ref = refs[0], refs[1]
        extra = refs[2:-2]
        o_ref, acc_ref = refs[-2], refs[-1]

        @pl.when(pl.program_id(2) == 0)
        def _():
            acc_ref[...] = jnp.zeros_like(acc_ref)

        acc_ref[...] += jnp.dot(x_ref[...].astype(jnp.bfloat16), w_ref[...],
                                preferred_element_type=jnp.float32)

        @pl.when(pl.program_id(2) == nk - 1)
        def _():
            val = acc_ref[...]
            idx = 0
            if has_bias:
                val = val + extra[idx][...]
                idx += 1
            if has_res:
                val = val + extra[idx][...]
            o_ref[...] = val.astype(o_ref.dtype)

    return kernel


def pallas_matmul(x, w, bias=None, residual=None, out_dtype=jnp.float32):
    """x[M,K] @ w[K,N] (+bias[N]) (+residual[M,N])."""
    M, K = x.shape
    K2, N = w.shape
    assert K == K2
    hw = _hw()
    tm = _pick_tile(M, hw["m"])
    tn = _pick_tile(N, hw["n"])
    tk = _pick_tile(K, hw["k"])
    nm, nn, nk = M // tm, N // tn, K // tk

    args = [x, w]                                   # no wrapper-side casts
    in_specs = [
        pl.BlockSpec((tm, tk), lambda i, j, k: (i, k)),
        pl.BlockSpec((tk, tn), lambda i, j, k: (k, j)),
    ]
    if bias is not None:
        args.append(bias.reshape(1, N).astype(jnp.float32))
        in_specs.append(pl.BlockSpec((1, tn), lambda i, j, k: (0, j)))
    if residual is not None:
        args.append(residual)
        in_specs.append(pl.BlockSpec((tm, tn), lambda i, j, k: (i, j)))

    kernel = _make_mm_kernel(nk, bias is not None, residual is not None)
    # TODO(synk): consider pipeline_mode=pl.Buffered(3) on the weight spec for
    # deep-K matmuls on v6e once DMA exposure is confirmed from a profile.
    return pl.pallas_call(
        kernel,
        out_shape=jax.ShapeDtypeStruct((M, N), out_dtype),
        grid=(nm, nn, nk),
        in_specs=in_specs,
        out_specs=pl.BlockSpec((tm, tn), lambda i, j, k: (i, j)),
        scratch_shapes=[pltpu.VMEM((tm, tn), jnp.float32)],
        compiler_params=_cparams(("parallel", "parallel", "arbitrary")),
    )(*args)


# ----------------------------------------------------------------------------
# RMSNorm fused into a matmul prologue.  The normalized activations are
# computed ONCE per M-tile (pl.when(j == 0)) into a VMEM scratch and reused
# for every N tile (the x block is resident across j).
# ----------------------------------------------------------------------------

def _norm_mm_kernel(x_ref, nw_ref, w_ref, b_ref, o_ref, xn_ref):
    @pl.when(pl.program_id(1) == 0)
    def _():
        x = x_ref[...]
        ms = jnp.mean(x * x, axis=-1, keepdims=True)
        xn_ref[...] = (x * jax.lax.rsqrt(ms + 1e-6) * nw_ref[...]
                       ).astype(jnp.bfloat16)

    acc = jnp.dot(xn_ref[...], w_ref[...], preferred_element_type=jnp.float32)
    o_ref[...] = (acc + b_ref[...]).astype(o_ref.dtype)


def pallas_norm_matmul(x, norm_w, w, bias, out_dtype=jnp.bfloat16):
    M, K = x.shape
    _, N = w.shape
    hw = _hw()
    tm = _pick_tile(M, hw["m"])
    tn = _pick_tile(N, hw["n"])
    return pl.pallas_call(
        _norm_mm_kernel,
        out_shape=jax.ShapeDtypeStruct((M, N), out_dtype),
        grid=(M // tm, N // tn),
        in_specs=[
            pl.BlockSpec((tm, K), lambda i, j: (i, 0)),
            pl.BlockSpec((1, K), lambda i, j: (0, 0)),
            pl.BlockSpec((K, tn), lambda i, j: (0, j)),
            pl.BlockSpec((1, tn), lambda i, j: (0, j)),
        ],
        out_specs=pl.BlockSpec((tm, tn), lambda i, j: (i, j)),
        scratch_shapes=[pltpu.VMEM((tm, K), jnp.bfloat16)],
        # j kept "arbitrary" so j==0 is guaranteed to run first on each core.
        compiler_params=_cparams(("parallel", "arbitrary")),
    )(x, norm_w.reshape(1, K).astype(jnp.float32),
      w, bias.reshape(1, N).astype(jnp.float32))


# ----------------------------------------------------------------------------
# Fused norm_3 + FiLM: single (D, 2D) gamma|beta weight, one dot, modulation.
# ----------------------------------------------------------------------------

def _film_kernel(x_ref, nw_ref, w_ref, b_ref, o_ref):
    x = x_ref[...]
    D = x.shape[-1]
    ms = jnp.mean(x * x, axis=-1, keepdims=True)
    xn = x * jax.lax.rsqrt(ms + 1e-6) * nw_ref[...]
    gb = jnp.dot(xn.astype(jnp.bfloat16), w_ref[...],
                 preferred_element_type=jnp.float32) + b_ref[...]
    gamma = gb[:, :D]
    beta = gb[:, D:]
    o_ref[...] = (gamma * xn + beta).astype(o_ref.dtype)


def pallas_film(x, norm_w, w, b, out_dtype=jnp.bfloat16):
    M, D = x.shape
    hw = _hw()
    tm = _pick_tile(M, hw["m"])
    return pl.pallas_call(
        _film_kernel,
        out_shape=jax.ShapeDtypeStruct((M, D), out_dtype),
        grid=(M // tm,),
        in_specs=[
            pl.BlockSpec((tm, D), lambda i: (i, 0)),
            pl.BlockSpec((1, D), lambda i: (0, 0)),
            pl.BlockSpec((D, 2 * D), lambda i: (0, 0)),
            pl.BlockSpec((1, 2 * D), lambda i: (0, 0)),
        ],
        out_specs=pl.BlockSpec((tm, D), lambda i: (i, 0)),
        compiler_params=_cparams(("parallel",)),
    )(x, norm_w.reshape(1, D).astype(jnp.float32),
      w, b.reshape(1, 2 * D).astype(jnp.float32))


# ----------------------------------------------------------------------------
# FFN w_1 with gated-GELU fused into the epilogue (the [M, 4D] intermediate is
# never materialized: w_1 is pre-split into the p1 / p2 column halves).
# ----------------------------------------------------------------------------

def _gated_mm_kernel(x_ref, wa_ref, wb_ref, o_ref):
    x = x_ref[...].astype(jnp.bfloat16)
    p1 = jnp.dot(x, wa_ref[...], preferred_element_type=jnp.float32)
    p2 = jnp.dot(x, wb_ref[...], preferred_element_type=jnp.float32)
    c = math.sqrt(2.0 / math.pi)
    gelu = 0.5 * p2 * (1.0 + jnp.tanh(c * (p2 + 0.044715 * p2 * p2 * p2)))
    o_ref[...] = (p1 * gelu).astype(o_ref.dtype)


def pallas_gated_ffn1(x, w1a, w1b, out_dtype=jnp.bfloat16):
    M, K = x.shape
    _, N = w1a.shape
    hw = _hw()
    tm = _pick_tile(M, hw["m"])
    tn = _pick_tile(N, hw["n"])
    return pl.pallas_call(
        _gated_mm_kernel,
        out_shape=jax.ShapeDtypeStruct((M, N), out_dtype),
        grid=(M // tm, N // tn),
        in_specs=[
            pl.BlockSpec((tm, K), lambda i, j: (i, 0)),
            pl.BlockSpec((K, tn), lambda i, j: (0, j)),
            pl.BlockSpec((K, tn), lambda i, j: (0, j)),
        ],
        out_specs=pl.BlockSpec((tm, tn), lambda i, j: (i, j)),
        compiler_params=_cparams(("parallel", "parallel")),
    )(x, w1a, w1b)


# ----------------------------------------------------------------------------
# Attention: grid = (B, H, KV-tiles), flash-style online softmax.
# q/k/v blocks are whole (S, Dh) / (tkv, Dh) per head (no lane slicing);
# per-head outputs are lane-dense [B, H, S, Dh] blocks.
# ----------------------------------------------------------------------------

def _make_attn_kernel(nkv, scale, has_bias):
    def kernel(*refs):
        if has_bias:
            q_ref, k_ref, v_ref, b_ref, o_ref, m_ref, l_ref, acc_ref = refs
        else:
            q_ref, k_ref, v_ref, o_ref, m_ref, l_ref, acc_ref = refs
            b_ref = None
        kv = pl.program_id(2)

        @pl.when(kv == 0)
        def _():
            m_ref[...] = jnp.full_like(m_ref, -jnp.inf)
            l_ref[...] = jnp.zeros_like(l_ref)
            acc_ref[...] = jnp.zeros_like(acc_ref)

        q = q_ref[0, 0]                       # [S, Dh]   bf16
        k = k_ref[0, 0]                       # [tkv, Dh] bf16
        v = v_ref[0, 0]                       # [tkv, Dh] bf16
        # contract on the last axis of both (no explicit k.T / XLU transpose)
        s = jax.lax.dot_general(q, k, (((1,), (1,)), ((), ())),
                                preferred_element_type=jnp.float32)
        if scale != 1.0:
            s = s * scale
        if has_bias:
            s = s + b_ref[0].astype(jnp.float32)

        m_prev = m_ref[...]
        m_new = jnp.maximum(m_prev, jnp.max(s, axis=-1, keepdims=True))
        alpha = jnp.exp(m_prev - m_new)
        p = jnp.exp(s - m_new)
        l_ref[...] = alpha * l_ref[...] + jnp.sum(p, axis=-1, keepdims=True)
        acc_ref[...] = alpha * acc_ref[...] + jnp.dot(
            p.astype(jnp.bfloat16), v, preferred_element_type=jnp.float32)
        m_ref[...] = m_new

        @pl.when(kv == nkv - 1)
        def _():
            o_ref[0, 0] = (acc_ref[...] *
                           pl.reciprocal(l_ref[...], approx=True)
                           ).astype(o_ref.dtype)

    return kernel


def pallas_attention(qkv_heads, pos_bias=None, *, n_heads, scale):
    """qkv_heads: [B, 3H, S, Dh] bf16 (q heads | k heads | v heads).
       pos_bias : [H, S, S] bf16 or None.  Returns [B, H, S, Dh] bf16."""
    B, threeH, S, Dh = qkv_heads.shape
    H = n_heads
    assert threeH == 3 * H

    if S >= 256 and S % 256 == 0:
        tkv = 256
    elif S >= 128 and S % 128 == 0:
        tkv = 128
    else:
        tkv = S
    nkv = S // tkv

    in_specs = [
        pl.BlockSpec((1, 1, S, Dh), lambda b, h, kv: (b, h, 0, 0)),
        pl.BlockSpec((1, 1, tkv, Dh), lambda b, h, kv: (b, H + h, kv, 0)),
        pl.BlockSpec((1, 1, tkv, Dh), lambda b, h, kv: (b, 2 * H + h, kv, 0)),
    ]
    args = [qkv_heads, qkv_heads, qkv_heads]
    if pos_bias is not None:
        in_specs.append(pl.BlockSpec((1, S, tkv), lambda b, h, kv: (h, 0, kv)))
        args.append(pos_bias)

    # TODO(synk): with Dh=64 the QK^T contraction fills only 64 of the 256-deep
    # MXU on v6e/v7x; batching 2-4 heads per dot would raise MXU utilization.
    kernel = _make_attn_kernel(nkv, scale, pos_bias is not None)
    return pl.pallas_call(
        kernel,
        out_shape=jax.ShapeDtypeStruct((B, H, S, Dh), jnp.bfloat16),
        grid=(B, H, nkv),
        in_specs=in_specs,
        out_specs=pl.BlockSpec((1, 1, S, Dh), lambda b, h, kv: (b, h, 0, 0)),
        scratch_shapes=[pltpu.VMEM((S, 1), jnp.float32),
                        pltpu.VMEM((S, 1), jnp.float32),
                        pltpu.VMEM((S, Dh), jnp.float32)],
        compiler_params=_cparams(("parallel", "parallel", "arbitrary")),
    )(*args)


# ----------------------------------------------------------------------------
# T5-style relative position bias (index math = glue, plain JAX)
# ----------------------------------------------------------------------------

def _relative_position_bucket(rel_pos, num_buckets=32, max_distance=128):
    nb = num_buckets // 2                      # bidirectional=True
    rel_buckets = (rel_pos > 0).astype(jnp.int32) * nb
    rel_pos = jnp.abs(rel_pos)
    max_exact = nb // 2
    is_small = rel_pos < max_exact
    rel_pos_f = jnp.maximum(rel_pos, 1).astype(jnp.float32)
    large = max_exact + (
        jnp.log(rel_pos_f / max_exact)
        / math.log(max_distance / max_exact)
        * (nb - max_exact)
    ).astype(jnp.int32)
    large = jnp.minimum(large, nb - 1)
    return rel_buckets + jnp.where(is_small, rel_pos, large)


def compute_position_bias(rel_emb, seq_len, num_buckets, max_distance):
    pos = jnp.arange(seq_len, dtype=jnp.int32)
    rel_pos = pos[None, :] - pos[:, None]
    buckets = _relative_position_bucket(rel_pos, num_buckets, max_distance)
    # Gather directly into [H, S, S] (no [S,S,H]->[H,S,S] transpose), bf16.
    return rel_emb.T[:, buckets].astype(jnp.bfloat16)


# ----------------------------------------------------------------------------
# Parameter init (deterministic, synthetic, pre-fused / pre-padded layouts)
# ----------------------------------------------------------------------------

def init_params(key, cfg):
    C = cfg["n_codebooks"] * cfg["latent_dim"]
    D = cfg["d_model"]
    H = cfg["n_heads"]
    V = cfg["vocab_size"] + 1
    Vp = _round_up(V, 128)
    ffn_dim = D * 2
    n_out = cfg["n_codebooks"] - cfg["n_conditioning_codebooks"]
    bf = jnp.bfloat16

    def nrm(k, shape, scale=0.02):
        return scale * jax.random.normal(k, shape, jnp.float32)

    keys = iter(jax.random.split(key, 3 + 14 * cfg["n_layers"] + 2 * n_out))

    params = {
        "emb_w": nrm(next(keys), (C, D)).astype(bf),
        "emb_b": nrm(next(keys), (D,)),
        "rel_emb": nrm(next(keys), (cfg["num_buckets"], H)),
        "final_norm_w": jnp.ones((D,), jnp.float32),
        "layers": [],
    }
    for i in range(cfg["n_layers"]):
        wq = nrm(next(keys), (D, D)); wk = nrm(next(keys), (D, D)); wv = nrm(next(keys), (D, D))
        bq = nrm(next(keys), (D,)); bk = nrm(next(keys), (D,)); bv = nrm(next(keys), (D,))
        wo = nrm(next(keys), (D, D)); bo = nrm(next(keys), (D,))
        w1 = nrm(next(keys), (D, ffn_dim * 2))
        film_gw = nrm(next(keys), (D, D)); film_gb = nrm(next(keys), (D,))
        film_bw = nrm(next(keys), (D, D)); film_bb = nrm(next(keys), (D,))
        ffn_w2 = nrm(next(keys), (ffn_dim, D))
        if i == 0:   # T5-style relative attention: bias-free q/k/v/out projections
            b_qkv = jnp.zeros((3 * D,), jnp.float32)
            b_o = None
        else:
            b_qkv = jnp.concatenate([bq, bk, bv])
            b_o = bo
        params["layers"].append({
            "norm1_w": jnp.ones((D,), jnp.float32),
            "norm3_w": jnp.ones((D,), jnp.float32),
            "w_qkv": jnp.concatenate([wq, wk, wv], axis=1).astype(bf),
            "b_qkv": b_qkv,
            "w_o": wo.astype(bf),
            "b_o": b_o,
            "film_w": jnp.concatenate([film_gw, film_bw], axis=1).astype(bf),
            "film_b": jnp.concatenate([film_gb, film_bb]),
            "ffn_w1a": w1[:, :ffn_dim].astype(bf),
            "ffn_w1b": w1[:, ffn_dim:].astype(bf),
            "ffn_w2": ffn_w2.astype(bf),
        })

    # Output heads: concatenated, each lane-padded to a multiple of 128.
    out_w = jnp.zeros((D, n_out * Vp), jnp.float32)
    out_b = jnp.zeros((n_out * Vp,), jnp.float32)
    for i in range(n_out):
        out_w = out_w.at[:, i * Vp:i * Vp + V].set(nrm(next(keys), (D, V)))
        out_b = out_b.at[i * Vp:i * Vp + V].set(nrm(next(keys), (V,)))
    params["out_w"] = out_w.astype(bf)
    params["out_b"] = out_b
    return params


# ----------------------------------------------------------------------------
# Forward pass
# ----------------------------------------------------------------------------

def forward(params, latents, cfg):
    B, C, S = latents.shape
    D = cfg["d_model"]
    H = cfg["n_heads"]
    Dh = D // H
    V = cfg["vocab_size"] + 1
    Vp = _round_up(V, 128)
    n_out = cfg["n_codebooks"] - cfg["n_conditioning_codebooks"]
    M = B * S
    Mp = _round_up(M, 128)        # keep M tiles >= 128 for all 2-D matmuls

    # Embedding: Conv1d(kernel_size=1) == per-timestep Linear over channels.
    x_in = _pad_rows(jnp.transpose(latents, (0, 2, 1)).reshape(M, C), Mp)
    x = pallas_matmul(x_in, params["emb_w"], bias=params["emb_b"],
                      out_dtype=jnp.float32)                               # [Mp, D]

    pos_bias = compute_position_bias(params["rel_emb"], S,
                                     cfg["num_buckets"], cfg["max_distance"])

    for i, lp in enumerate(params["layers"]):
        # norm_1 fused into the fused (q|k|v) projection matmul.
        qkv = pallas_norm_matmul(x, lp["norm1_w"], lp["w_qkv"], lp["b_qkv"],
                                 out_dtype=jnp.bfloat16)                   # [Mp, 3D]
        # Head-major layout so attention gets whole (S, Dh) per-head blocks.
        qkv_h = (qkv[:M].reshape(B, S, 3, H, Dh)
                 .transpose(0, 2, 3, 1, 4).reshape(B, 3 * H, S, Dh))
        if i == 0:
            attn = pallas_attention(qkv_h, pos_bias, n_heads=H, scale=1.0)
        else:
            attn = pallas_attention(qkv_h, None, n_heads=H,
                                    scale=1.0 / math.sqrt(Dh))
        attn2 = _pad_rows(attn.transpose(0, 2, 1, 3).reshape(M, D), Mp)
        # Output projection with the residual add fused into the epilogue.
        x = pallas_matmul(attn2, lp["w_o"], bias=lp["b_o"], residual=x,
                          out_dtype=jnp.float32)

        # norm_3 + FiLM (single fused gamma|beta matmul + modulation).
        xf = pallas_film(x, lp["norm3_w"], lp["film_w"], lp["film_b"],
                         out_dtype=jnp.bfloat16)
        # FFN: gated-GELU fused into w_1, residual fused into w_2.
        g = pallas_gated_ffn1(xf, lp["ffn_w1a"], lp["ffn_w1b"],
                              out_dtype=jnp.bfloat16)                      # [Mp, 2D]
        x = pallas_matmul(g, lp["ffn_w2"], residual=x, out_dtype=jnp.float32)

    # final_norm fused into the concatenated, lane-padded output-head matmul.
    logits_pad = pallas_norm_matmul(x, params["final_norm_w"], params["out_w"],
                                    params["out_b"], out_dtype=jnp.float32)
    logits = logits_pad[:M].reshape(B, S, n_out, Vp)[..., :V]
    logits = jnp.transpose(logits, (0, 2, 1, 3))                # [B, n_cb, S, V]
    if cfg["n_conditioning_codebooks"] > 0:
        pad = jnp.zeros((B, cfg["n_conditioning_codebooks"], S, V), logits.dtype)
        logits = jnp.concatenate([pad, logits], axis=1)
    return logits


# ----------------------------------------------------------------------------
# Main
# ----------------------------------------------------------------------------

if __name__ == "__main__":
    cfg = dict(
        n_codebooks=4,
        n_conditioning_codebooks=0,
        latent_dim=8,
        d_model=64,
        n_heads=4,
        n_layers=2,
        vocab_size=32,
        num_buckets=32,
        max_distance=128,
    )
    B, S = 2, 16
    C = cfg["n_codebooks"] * cfg["latent_dim"]

    key = jax.random.PRNGKey(0)
    k_param, k_input = jax.random.split(key)
    params = init_params(k_param, cfg)
    latents = jax.random.normal(k_input, (B, C, S), jnp.float32)

    fwd = jax.jit(functools.partial(forward, cfg=cfg))
    logits = fwd(params, latents)
    jax.block_until_ready(logits)

    expected = (B, cfg["n_codebooks"], S, cfg["vocab_size"] + 1)
    assert logits.shape == expected, (logits.shape, expected)
    assert bool(jnp.all(jnp.isfinite(logits)))
    print("KERNEL_OK")
</pallas_src>

<mosaic_0001>
module attributes {stable_mosaic.version = 11 : i64} {
  func.func @kernel(%arg0: i32, %arg1: i32, %arg2: i32, %arg3: memref<128x32xf32, #tpu.memory_space<vmem>>, %arg4: memref<32x64xbf16, #tpu.memory_space<vmem>>, %arg5: memref<1x64xf32, #tpu.memory_space<vmem>>, %arg6: memref<128x64xf32, #tpu.memory_space<vmem>>, %arg7: memref<128x64xf32, #tpu.memory_space<vmem>>) attributes {dimension_semantics = [#tpu.dimension_semantics<parallel>, #tpu.dimension_semantics<parallel>, #tpu.dimension_semantics<arbitrary>], iteration_bounds = array<i64: 1, 1, 1>, scalar_prefetch = 0 : i64, scratch_operands = 1 : i64, tpu.core_type = #tpu.core_type<tc>, window_params = [{transform_indices = @transform_0, window_bounds = array<i64: 128, 32>}, {transform_indices = @transform_1, window_bounds = array<i64: 32, 64>}, {transform_indices = @transform_2, window_bounds = array<i64: 1, 64>}, {transform_indices = @transform_3, window_bounds = array<i64: 128, 64>}]} {
    %c0_i32 = arith.constant 0 : i32
    %0 = arith.cmpi eq, %arg2, %c0_i32 : i32
    %1 = arith.extui %0 : i1 to i32
    %c0_i32_0 = arith.constant 0 : i32
    %2 = arith.cmpi ne, %1, %c0_i32_0 : i32
    scf.if %2 {
      %cst_10 = arith.constant 0.000000e+00 : f32
      %13 = vector.broadcast %cst_10 : f32 to vector<128x64xf32>
      %c0_11 = arith.constant 0 : index
      %c0_12 = arith.constant 0 : index
      %14 = vector.load %arg7[%c0_11, %c0_12] : memref<128x64xf32, #tpu.memory_space<vmem>>, vector<128x64xf32>
      tpu.vector_store %arg7[%c0_11, %c0_12], %13 {strides = array<i32>} : memref<128x64xf32, #tpu.memory_space<vmem>>, vector<128x64xf32>,
    } else {
    }
    %c0 = arith.constant 0 : index
    %c0_1 = arith.constant 0 : index
    %3 = vector.load %arg7[%c0, %c0_1] : memref<128x64xf32, #tpu.memory_space<vmem>>, vector<128x64xf32>
    %c0_2 = arith.constant 0 : index
    %c0_3 = arith.constant 0 : index
    %4 = vector.load %arg3[%c0_2, %c0_3] : memref<128x32xf32, #tpu.memory_space<vmem>>, vector<128x32xf32>
    %5 = arith.truncf %4 : vector<128x32xf32> to vector<128x32xbf16>
    %c0_4 = arith.constant 0 : index
    %c0_5 = arith.constant 0 : index
    %6 = vector.load %arg4[%c0_4, %c0_5] : memref<32x64xbf16, #tpu.memory_space<vmem>>, vector<32x64xbf16>
    %cst = arith.constant dense<0.000000e+00> : vector<128x64xf32>
    %7 = tpu.matmul %5, %6, %cst {dimension_numbers = #tpu.dot_dimension_numbers<[1], [0], [0], [1], [0, 0, 1, 1], [], []>} : vector<128x32xbf16>, vector<32x64xbf16>, vector<128x64xf32> -> vector<128x64xf32>
    %8 = arith.addf %3, %7 : vector<128x64xf32>
    %c0_6 = arith.constant 0 : index
    %c0_7 = arith.constant 0 : index
    %9 = vector.load %arg7[%c0_6, %c0_7] : memref<128x64xf32, #tpu.memory_space<vmem>>, vector<128x64xf32>
    tpu.vector_store %arg7[%c0_6, %c0_7], %8 {strides = array<i32>} : memref<128x64xf32, #tpu.memory_space<vmem>>, vector<128x64xf32>,
    %c0_i32_8 = arith.constant 0 : i32
    %10 = arith.cmpi eq, %arg2, %c0_i32_8 : i32
    %11 = arith.extui %10 : i1 to i32
    %c0_i32_9 = arith.constant 0 : i32
    %12 = arith.cmpi ne, %11, %c0_i32_9 : i32
    scf.if %12 {
      %c0_10 = arith.constant 0 : index
      %c0_11 = arith.constant 0 : index
      %13 = vector.load %arg7[%c0_10, %c0_11] : memref<128x64xf32, #tpu.memory_space<vmem>>, vector<128x64xf32>
      %c0_12 = arith.constant 0 : index
      %c0_13 = arith.constant 0 : index
      %14 = vector.load %arg5[%c0_12, %c0_13] : memref<1x64xf32, #tpu.memory_space<vmem>>, vector<1x64xf32>
      %15 = vector.broadcast %14 : vector<1x64xf32> to vector<128x64xf32>
      %16 = arith.addf %13, %15 : vector<128x64xf32>
      %c0_14 = arith.constant 0 : index
      %c0_15 = arith.constant 0 : index
      %17 = vector.load %arg6[%c0_14, %c0_15] : memref<128x64xf32, #tpu.memory_space<vmem>>, vector<128x64xf32>
      tpu.vector_store %arg6[%c0_14, %c0_15], %16 {strides = array<i32>} : memref<128x64xf32, #tpu.memory_space<vmem>>, vector<128x64xf32>,
    } else {
    }
    return
  }
  func.func @transform_0(%arg0: i32, %arg1: i32, %arg2: i32) -> (i32, i32) {
    %c0_i32 = arith.constant 0 : i32
    return %arg0, %arg2 : i32, i32
  }
  func.func @transform_1(%arg0: i32, %arg1: i32, %arg2: i32) -> (i32, i32) {
    %c0_i32 = arith.constant 0 : i32
    return %arg2, %arg1 : i32, i32
  }
  func.func @transform_2(%arg0: i32, %arg1: i32, %arg2: i32) -> (i32, i32) {
    %c0_i32 = arith.constant 0 : i32
    %c0_i32_0 = arith.constant 0 : i32
    return %c0_i32, %arg1 : i32, i32
  }
  func.func @transform_3(%arg0: i32, %arg1: i32, %arg2: i32) -> (i32, i32) {
    %c0_i32 = arith.constant 0 : i32
    return %arg0, %arg1 : i32, i32
  }
}

module attributes {stable_mosaic.version = 11 : i64} {
  func.func @_norm_mm_kernel(%arg0: i32, %arg1: i32, %arg2: memref<128x64xf32, #tpu.memory_space<vmem>>, %arg3: memref<1x64xf32, #tpu.memory_space<vmem>>, %arg4: memref<64x192xbf16, #tpu.memory_space<vmem>>, %arg5: memref<1x192xf32, #tpu.memory_space<vmem>>, %arg6: memref<128x192xbf16, #tpu.memory_space<vmem>>, %arg7: memref<128x64xbf16, #tpu.memory_space<vmem>>) attributes {dimension_semantics = [#tpu.dimension_semantics<parallel>, #tpu.dimension_semantics<arbitrary>], iteration_bounds = array<i64: 1, 1>, scalar_prefetch = 0 : i64, scratch_operands = 1 : i64, tpu.core_type = #tpu.core_type<tc>, window_params = [{transform_indices = @transform_0, window_bounds = array<i64: 128, 64>}, {pipeline_mode = #tpu.pipeline_mode<synchronous>, transform_indices = @transform_1, window_bounds = array<i64: 1, 64>}, {transform_indices = @transform_2, window_bounds = array<i64: 64, 192>}, {transform_indices = @transform_3, window_bounds = array<i64: 1, 192>}, {transform_indices = @transform_4, window_bounds = array<i64: 128, 192>}]} {
    %c0_i32 = arith.constant 0 : i32
    %0 = arith.cmpi eq, %arg1, %c0_i32 : i32
    %1 = arith.extui %0 : i1 to i32
    %c0_i32_0 = arith.constant 0 : i32
    %2 = arith.cmpi ne, %1, %c0_i32_0 : i32
    scf.if %2 {
      %c0_8 = arith.constant 0 : index
      %c0_9 = arith.constant 0 : index
      %11 = vector.load %arg2[%c0_8, %c0_9] : memref<128x64xf32, #tpu.memory_space<vmem>>, vector<128x64xf32>
      %12 = arith.mulf %11, %11 : vector<128x64xf32>
      %cst_10 = arith.constant dense<0.000000e+00> : vector<128xf32>
      %13 = vector.multi_reduction <add>, %12, %cst_10 [1] : vector<128x64xf32> to vector<128xf32>
      %14 = vector.shape_cast %13 : vector<128xf32> to vector<128x1xf32>
      %cst_11 = arith.constant 6.400000e+01 : f32
      %15 = vector.broadcast %cst_11 : f32 to vector<128x1xf32>
      %16 = arith.divf %14, %15 : vector<128x1xf32>
      %cst_12 = arith.constant 9.99999997E-7 : f32
      %17 = vector.broadcast %cst_12 : f32 to vector<128x1xf32>
      %18 = arith.addf %16, %17 : vector<128x1xf32>
      %19 = math.rsqrt %18 : vector<128x1xf32>
      %20 = vector.broadcast %19 : vector<128x1xf32> to vector<128x64xf32>
      %21 = arith.mulf %11, %20 : vector<128x64xf32>
      %c0_13 = arith.constant 0 : index
      %c0_14 = arith.constant 0 : index
      %22 = vector.load %arg3[%c0_13, %c0_14] : memref<1x64xf32, #tpu.memory_space<vmem>>, vector<1x64xf32>
      %23 = vector.broadcast %22 : vector<1x64xf32> to vector<128x64xf32>
      %24 = arith.mulf %21, %23 : vector<128x64xf32>
      %25 = arith.truncf %24 : vector<128x64xf32> to vector<128x64xbf16>
      %c0_15 = arith.constant 0 : index
      %c0_16 = arith.constant 0 : index
      %26 = vector.load %arg7[%c0_15, %c0_16] : memref<128x64xbf16, #tpu.memory_space<vmem>>, vector<128x64xbf16>
      tpu.vector_store %arg7[%c0_15, %c0_16], %25 {strides = array<i32>} : memref<128x64xbf16, #tpu.memory_space<vmem>>, vector<128x64xbf16>,
    } else {
    }
    %c0 = arith.constant 0 : index
    %c0_1 = arith.constant 0 : index
    %3 = vector.load %arg7[%c0, %c0_1] : memref<128x64xbf16, #tpu.memory_space<vmem>>, vector<128x64xbf16>
    %c0_2 = arith.constant 0 : index
    %c0_3 = arith.constant 0 : index
    %4 = vector.load %arg4[%c0_2, %c0_3] : memref<64x192xbf16, #tpu.memory_space<vmem>>, vector<64x192xbf16>
    %cst = arith.constant dense<0.000000e+00> : vector<128x192xf32>
    %5 = tpu.matmul %3, %4, %cst {dimension_numbers = #tpu.dot_dimension_numbers<[1], [0], [0], [1], [0, 0, 1, 1], [], []>} : vector<128x64xbf16>, vector<64x192xbf16>, vector<128x192xf32> -> vector<128x192xf32>
    %c0_4 = arith.constant 0 : index
    %c0_5 = arith.constant 0 : index
    %6 = vector.load %arg5[%c0_4, %c0_5] : memref<1x192xf32, #tpu.memory_space<vmem>>, vector<1x192xf32>
    %7 = vector.broadcast %6 : vector<1x192xf32> to vector<128x192xf32>
    %8 = arith.addf %5, %7 : vector<128x192xf32>
    %9 = arith.truncf %8 : vector<128x192xf32> to vector<128x192xbf16>
    %c0_6 = arith.constant 0 : index
    %c0_7 = arith.constant 0 : index
    %10 = vector.load %arg6[%c0_6, %c0_7] : memref<128x192xbf16, #tpu.memory_space<vmem>>, vector<128x192xbf16>
    tpu.vector_store %arg6[%c0_6, %c0_7], %9 {strides = array<i32>} : memref<128x192xbf16, #tpu.memory_space<vmem>>, vector<128x192xbf16>,
    return
  }
  func.func @transform_0(%arg0: i32, %arg1: i32) -> (i32, i32) {
    %c0_i32 = arith.constant 0 : i32
    %c0_i32_0 = arith.constant 0 : i32
    return %arg0, %c0_i32 : i32, i32
  }
  func.func @transform_1(%arg0: i32, %arg1: i32) -> (i32, i32) {
    %c0_i32 = arith.constant 0 : i32
    %c0_i32_0 = arith.constant 0 : i32
    %c0_i32_1 = arith.constant 0 : i32
    return %c0_i32, %c0_i32_0 : i32, i32
  }
  func.func @transform_2(%arg0: i32, %arg1: i32) -> (i32, i32) {
    %c0_i32 = arith.constant 0 : i32
    %c0_i32_0 = arith.constant 0 : i32
    return %c0_i32, %arg1 : i32, i32
  }
  func.func @transform_3(%arg0: i32, %arg1: i32) -> (i32, i32) {
    %c0_i32 = arith.constant 0 : i32
    %c0_i32_0 = arith.constant 0 : i32
    return %c0_i32, %arg1 : i32, i32
  }
  func.func @transform_4(%arg0: i32, %arg1: i32) -> (i32, i32) {
    %c0_i32 = arith.constant 0 : i32
    return %arg0, %arg1 : i32, i32
  }
}

module attributes {stable_mosaic.version = 11 : i64} {
  func.func @kernel(%arg0: i32, %arg1: i32, %arg2: i32, %arg3: memref<1x1x16x16xbf16, #tpu.memory_space<vmem>>, %arg4: memref<1x1x16x16xbf16, #tpu.memory_space<vmem>>, %arg5: memref<1x1x16x16xbf16, #tpu.memory_space<vmem>>, %arg6: memref<1x16x16xbf16, #tpu.memory_space<vmem>>, %arg7: memref<1x1x16x16xbf16, #tpu.memory_space<vmem>>, %arg8: memref<16x1xf32, #tpu.memory_space<vmem>>, %arg9: memref<16x1xf32, #tpu.memory_space<vmem>>, %arg10: memref<16x16xf32, #tpu.memory_space<vmem>>) attributes {dimension_semantics = [#tpu.dimension_semantics<parallel>, #tpu.dimension_semantics<parallel>, #tpu.dimension_semantics<arbitrary>], iteration_bounds = array<i64: 2, 4, 1>, scalar_prefetch = 0 : i64, scratch_operands = 3 : i64, tpu.core_type = #tpu.core_type<tc>, window_params = [{transform_indices = @transform_0, window_bounds = array<i64: 1, 1, 16, 16>}, {transform_indices = @transform_1, window_bounds = array<i64: 1, 1, 16, 16>}, {transform_indices = @transform_2, window_bounds = array<i64: 1, 1, 16, 16>}, {transform_indices = @transform_3, window_bounds = array<i64: 1, 16, 16>}, {transform_indices = @transform_4, window_bounds = array<i64: 1, 1, 16, 16>}]} {
    %c0_i32 = arith.constant 0 : i32
    %0 = arith.cmpi eq, %arg2, %c0_i32 : i32
    %1 = arith.extui %0 : i1 to i32
    %c0_i32_0 = arith.constant 0 : i32
    %2 = arith.cmpi ne, %1, %c0_i32_0 : i32
    scf.if %2 {
      %cst_32 = arith.constant 0xFF800000 : f32
      %40 = vector.broadcast %cst_32 : f32 to vector<16x1xf32>
      %c0_33 = arith.constant 0 : index
      %c0_34 = arith.constant 0 : index
      %41 = vector.load %arg8[%c0_33, %c0_34] : memref<16x1xf32, #tpu.memory_space<vmem>>, vector<16x1xf32>
      tpu.vector_store %arg8[%c0_33, %c0_34], %40 {strides = array<i32>} : memref<16x1xf32, #tpu.memory_space<vmem>>, vector<16x1xf32>,
      %cst_35 = arith.constant 0.000000e+00 : f32
      %42 = vector.broadcast %cst_35 : f32 to vector<16x1xf32>
      %c0_36 = arith.constant 0 : index
      %c0_37 = arith.constant 0 : index
      %43 = vector.load %arg9[%c0_36, %c0_37] : memref<16x1xf32, #tpu.memory_space<vmem>>, vector<16x1xf32>
      tpu.vector_store %arg9[%c0_36, %c0_37], %42 {strides = array<i32>} : memref<16x1xf32, #tpu.memory_space<vmem>>, vector<16x1xf32>,
      %cst_38 = arith.constant 0.000000e+00 : f32
      %44 = vector.broadcast %cst_38 : f32 to vector<16x16xf32>
      %c0_39 = arith.constant 0 : index
      %c0_40 = arith.constant 0 : index
      %45 = vector.load %arg10[%c0_39, %c0_40] : memref<16x16xf32, #tpu.memory_space<vmem>>, vector<16x16xf32>
      tpu.vector_store %arg10[%c0_39, %c0_40], %44 {strides = array<i32>} : memref<16x16xf32, #tpu.memory_space<vmem>>, vector<16x16xf32>,
    } else {
    }
    %c0 = arith.constant 0 : index
    %c0_1 = arith.constant 0 : index
    %c0_2 = arith.constant 0 : index
    %c0_3 = arith.constant 0 : index
    %3 = vector.load %arg3[%c0, %c0_1, %c0_2, %c0_3] : memref<1x1x16x16xbf16, #tpu.memory_space<vmem>>, vector<1x1x16x16xbf16>
    %4 = vector.shape_cast %3 : vector<1x1x16x16xbf16> to vector<16x16xbf16>
    %c0_4 = arith.constant 0 : index
    %c0_5 = arith.constant 0 : index
    %c0_6 = arith.constant 0 : index
    %c0_7 = arith.constant 0 : index
    %5 = vector.load %arg4[%c0_4, %c0_5, %c0_6, %c0_7] : memref<1x1x16x16xbf16, #tpu.memory_space<vmem>>, vector<1x1x16x16xbf16>
    %6 = vector.shape_cast %5 : vector<1x1x16x16xbf16> to vector<16x16xbf16>
    %c0_8 = arith.constant 0 : index
    %c0_9 = arith.constant 0 : index
    %c0_10 = arith.constant 0 : index
    %c0_11 = arith.constant 0 : index
    %7 = vector.load %arg5[%c0_8, %c0_9, %c0_10, %c0_11] : memref<1x1x16x16xbf16, #tpu.memory_space<vmem>>, vector<1x1x16x16xbf16>
    %8 = vector.shape_cast %7 : vector<1x1x16x16xbf16> to vector<16x16xbf16>
    %cst = arith.constant dense<0.000000e+00> : vector<16x16xf32>
    %9 = tpu.matmul %4, %6, %cst {dimension_numbers = #tpu.dot_dimension_numbers<[1], [1], [0], [0], [0, 0, 1, 0], [], []>} : vector<16x16xbf16>, vector<16x16xbf16>, vector<16x16xf32> -> vector<16x16xf32>
    %c0_12 = arith.constant 0 : index
    %c0_13 = arith.constant 0 : index
    %c0_14 = arith.constant 0 : index
    %10 = vector.load %arg6[%c0_12, %c0_13, %c0_14] : memref<1x16x16xbf16, #tpu.memory_space<vmem>>, vector<1x16x16xbf16>
    %11 = vector.shape_cast %10 : vector<1x16x16xbf16> to vector<16x16xbf16>
    %12 = arith.extf %11 : vector<16x16xbf16> to vector<16x16xf32>
    %13 = arith.addf %9, %12 : vector<16x16xf32>
    %c0_15 = arith.constant 0 : index
    %c0_16 = arith.constant 0 : index
    %14 = vector.load %arg8[%c0_15, %c0_16] : memref<16x1xf32, #tpu.memory_space<vmem>>, vector<16x1xf32>
    %cst_17 = arith.constant dense<0xFF800000> : vector<16xf32>
    %15 = vector.multi_reduction <maximumf>, %13, %cst_17 [1] : vector<16x16xf32> to vector<16xf32>
    %16 = vector.shape_cast %15 : vector<16xf32> to vector<16x1xf32>
    %17 = arith.maximumf %14, %16 : vector<16x1xf32>
    %18 = arith.subf %14, %17 : vector<16x1xf32>
    %19 = math.exp %18 : vector<16x1xf32>
    %20 = vector.broadcast %17 : vector<16x1xf32> to vector<16x16xf32>
    %21 = arith.subf %13, %20 : vector<16x16xf32>
    %22 = math.exp %21 : vector<16x16xf32>
    %c0_18 = arith.constant 0 : index
    %c0_19 = arith.constant 0 : index
    %23 = vector.load %arg9[%c0_18, %c0_19] : memref<16x1xf32, #tpu.memory_space<vmem>>, vector<16x1xf32>
    %24 = arith.mulf %19, %23 : vector<16x1xf32>
    %cst_20 = arith.constant dense<0.000000e+00> : vector<16xf32>
    %25 = vector.multi_reduction <add>, %22, %cst_20 [1] : vector<16x16xf32> to vector<16xf32>
    %26 = vector.shape_cast %25 : vector<16xf32> to vector<16x1xf32>
    %27 = arith.addf %24, %26 : vector<16x1xf32>
    %c0_21 = arith.constant 0 : index
    %c0_22 = arith.constant 0 : index
    %28 = vector.load %arg9[%c0_21, %c0_22] : memref<16x1xf32, #tpu.memory_space<vmem>>, vector<16x1xf32>
    tpu.vector_store %arg9[%c0_21, %c0_22], %27 {strides = array<i32>} : memref<16x1xf32, #tpu.memory_space<vmem>>, vector<16x1xf32>,
    %c0_23 = arith.constant 0 : index
    %c0_24 = arith.constant 0 : index
    %29 = vector.load %arg10[%c0_23, %c0_24] : memref<16x16xf32, #tpu.memory_space<vmem>>, vector<16x16xf32>
    %30 = vector.broadcast %19 : vector<16x1xf32> to vector<16x16xf32>
    %31 = arith.mulf %30, %29 : vector<16x16xf32>
    %32 = arith.truncf %22 : vector<16x16xf32> to vector<16x16xbf16>
    %cst_25 = arith.constant dense<0.000000e+00> : vector<16x16xf32>
    %33 = tpu.matmul %32, %8, %cst_25 {dimension_numbers = #tpu.dot_dimension_numbers<[1], [0], [0], [1], [0, 0, 1, 1], [], []>} : vector<16x16xbf16>, vector<16x16xbf16>, vector<16x16xf32> -> vector<16x16xf32>
    %34 = arith.addf %31, %33 : vector<16x16xf32>
    %c0_26 = arith.constant 0 : index
    %c0_27 = arith.constant 0 : index
    %35 = vector.load %arg10[%c0_26, %c0_27] : memref<16x16xf32, #tpu.memory_space<vmem>>, vector<16x16xf32>
    tpu.vector_store %arg10[%c0_26, %c0_27], %34 {strides = array<i32>} : memref<16x16xf32, #tpu.memory_space<vmem>>, vector<16x16xf32>,
    %c0_28 = arith.constant 0 : index
    %c0_29 = arith.constant 0 : index
    %36 = vector.load %arg8[%c0_28, %c0_29] : memref<16x1xf32, #tpu.memory_space<vmem>>, vector<16x1xf32>
    tpu.vector_store %arg8[%c0_28, %c0_29], %17 {strides = array<i32>} : memref<16x1xf32, #tpu.memory_space<vmem>>, vector<16x1xf32>,
    %c0_i32_30 = arith.constant 0 : i32
    %37 = arith.cmpi eq, %arg2, %c0_i32_30 : i32
    %38 = arith.extui %37 : i1 to i32
    %c0_i32_31 = arith.constant 0 : i32
    %39 = arith.cmpi ne, %38, %c0_i32_31 : i32
    scf.if %39 {
      %c0_32 = arith.constant 0 : index
      %c0_33 = arith.constant 0 : index
      %40 = vector.load %arg10[%c0_32, %c0_33] : memref<16x16xf32, #tpu.memory_space<vmem>>, vector<16x16xf32>
      %c0_34 = arith.constant 0 : index
      %c0_35 = arith.constant 0 : index
      %41 = vector.load %arg9[%c0_34, %c0_35] : memref<16x1xf32, #tpu.memory_space<vmem>>, vector<16x1xf32>
      %42 = tpu.reciprocal %41 {approx = true} : vector<16x1xf32> -> vector<16x1xf32>
      %43 = vector.broadcast %42 : vector<16x1xf32> to vector<16x16xf32>
      %44 = arith.mulf %40, %43 : vector<16x16xf32>
      %45 = arith.truncf %44 : vector<16x16xf32> to vector<16x16xbf16>
      %c0_36 = arith.constant 0 : index
      %c0_37 = arith.constant 0 : index
      %c0_38 = arith.constant 0 : index
      %c0_39 = arith.constant 0 : index
      %46 = vector.load %arg7[%c0_36, %c0_37, %c0_38, %c0_39] : memref<1x1x16x16xbf16, #tpu.memory_space<vmem>>, vector<1x1x16x16xbf16>
      %47 = vector.shape_cast %46 : vector<1x1x16x16xbf16> to vector<16x16xbf16>
      %48 = vector.shape_cast %45 : vector<16x16xbf16> to vector<1x1x16x16xbf16>
      tpu.vector_store %arg7[%c0_36, %c0_37, %c0_38, %c0_39], %48 {strides = array<i32>} : memref<1x1x16x16xbf16, #tpu.memory_space<vmem>>, vector<1x1x16x16xbf16>,
    } else {
    }
    return
  }
  func.func @transform_0(%arg0: i32, %arg1: i32, %arg2: i32) -> (i32, i32, i32, i32) {
    %c0_i32 = arith.constant 0 : i32
    %c0_i32_0 = arith.constant 0 : i32
    %c0_i32_1 = arith.constant 0 : i32
    return %arg0, %arg1, %c0_i32, %c0_i32_0 : i32, i32, i32, i32
  }
  func.func @transform_1(%arg0: i32, %arg1: i32, %arg2: i32) -> (i32, i32, i32, i32) {
    %c4_i32 = arith.constant 4 : i32
    %0 = arith.addi %c4_i32, %arg1 : i32
    %c0_i32 = arith.constant 0 : i32
    %c0_i32_0 = arith.constant 0 : i32
    return %arg0, %0, %arg2, %c0_i32 : i32, i32, i32, i32
  }
  func.func @transform_2(%arg0: i32, %arg1: i32, %arg2: i32) -> (i32, i32, i32, i32) {
    %c8_i32 = arith.constant 8 : i32
    %0 = arith.addi %c8_i32, %arg1 : i32
    %c0_i32 = arith.constant 0 : i32
    %c0_i32_0 = arith.constant 0 : i32
    return %arg0, %0, %arg2, %c0_i32 : i32, i32, i32, i32
  }
  func.func @transform_3(%arg0: i32, %arg1: i32, %arg2: i32) -> (i32, i32, i32) {
    %c0_i32 = arith.constant 0 : i32
    %c0_i32_0 = arith.constant 0 : i32
    return %arg1, %c0_i32, %arg2 : i32, i32, i32
  }
  func.func @transform_4(%arg0: i32, %arg1: i32, %arg2: i32) -> (i32, i32, i32, i32) {
    %c0_i32 = arith.constant 0 : i32
    %c0_i32_0 = arith.constant 0 : i32
    %c0_i32_1 = arith.constant 0 : i32
    return %arg0, %arg1, %c0_i32, %c0_i32_0 : i32, i32, i32, i32
  }
}

module attributes {stable_mosaic.version = 11 : i64} {
  func.func @_film_kernel(%arg0: i32, %arg1: memref<128x64xf32, #tpu.memory_space<vmem>>, %arg2: memref<1x64xf32, #tpu.memory_space<vmem>>, %arg3: memref<64x128xbf16, #tpu.memory_space<vmem>>, %arg4: memref<1x128xf32, #tpu.memory_space<vmem>>, %arg5: memref<128x64xbf16, #tpu.memory_space<vmem>>) attributes {dimension_semantics = [#tpu.dimension_semantics<parallel>], iteration_bounds = array<i64: 1>, scalar_prefetch = 0 : i64, scratch_operands = 0 : i64, tpu.core_type = #tpu.core_type<tc>, window_params = [{transform_indices = @transform_0, window_bounds = array<i64: 128, 64>}, {pipeline_mode = #tpu.pipeline_mode<synchronous>, transform_indices = @transform_1, window_bounds = array<i64: 1, 64>}, {pipeline_mode = #tpu.pipeline_mode<synchronous>, transform_indices = @transform_2, window_bounds = array<i64: 64, 128>}, {pipeline_mode = #tpu.pipeline_mode<synchronous>, transform_indices = @transform_3, window_bounds = array<i64: 1, 128>}, {transform_indices = @transform_4, window_bounds = array<i64: 128, 64>}]} {
    %c0 = arith.constant 0 : index
    %c0_0 = arith.constant 0 : index
    %0 = vector.load %arg1[%c0, %c0_0] : memref<128x64xf32, #tpu.memory_space<vmem>>, vector<128x64xf32>
    %1 = arith.mulf %0, %0 : vector<128x64xf32>
    %cst = arith.constant dense<0.000000e+00> : vector<128xf32>
    %2 = vector.multi_reduction <add>, %1, %cst [1] : vector<128x64xf32> to vector<128xf32>
    %3 = vector.shape_cast %2 : vector<128xf32> to vector<128x1xf32>
    %cst_1 = arith.constant 6.400000e+01 : f32
    %4 = vector.broadcast %cst_1 : f32 to vector<128x1xf32>
    %5 = arith.divf %3, %4 : vector<128x1xf32>
    %cst_2 = arith.constant 9.99999997E-7 : f32
    %6 = vector.broadcast %cst_2 : f32 to vector<128x1xf32>
    %7 = arith.addf %5, %6 : vector<128x1xf32>
    %8 = math.rsqrt %7 : vector<128x1xf32>
    %9 = vector.broadcast %8 : vector<128x1xf32> to vector<128x64xf32>
    %10 = arith.mulf %0, %9 : vector<128x64xf32>
    %c0_3 = arith.constant 0 : index
    %c0_4 = arith.constant 0 : index
    %11 = vector.load %arg2[%c0_3, %c0_4] : memref<1x64xf32, #tpu.memory_space<vmem>>, vector<1x64xf32>
    %12 = vector.broadcast %11 : vector<1x64xf32> to vector<128x64xf32>
    %13 = arith.mulf %10, %12 : vector<128x64xf32>
    %14 = arith.truncf %13 : vector<128x64xf32> to vector<128x64xbf16>
    %c0_5 = arith.constant 0 : index
    %c0_6 = arith.constant 0 : index
    %15 = vector.load %arg3[%c0_5, %c0_6] : memref<64x128xbf16, #tpu.memory_space<vmem>>, vector<64x128xbf16>
    %cst_7 = arith.constant dense<0.000000e+00> : vector<128x128xf32>
    %16 = tpu.matmul %14, %15, %cst_7 {dimension_numbers = #tpu.dot_dimension_numbers<[1], [0], [0], [1], [0, 0, 1, 1], [], []>} : vector<128x64xbf16>, vector<64x128xbf16>, vector<128x128xf32> -> vector<128x128xf32>
    %c0_8 = arith.constant 0 : index
    %c0_9 = arith.constant 0 : index
    %17 = vector.load %arg4[%c0_8, %c0_9] : memref<1x128xf32, #tpu.memory_space<vmem>>, vector<1x128xf32>
    %18 = vector.broadcast %17 : vector<1x128xf32> to vector<128x128xf32>
    %19 = arith.addf %16, %18 : vector<128x128xf32>
    %20 = vector.extract_strided_slice %19 {offsets = [0, 0], sizes = [128, 64], strides = [1, 1]} : vector<128x128xf32> to vector<128x64xf32>
    %21 = vector.extract_strided_slice %19 {offsets = [0, 64], sizes = [128, 64], strides = [1, 1]} : vector<128x128xf32> to vector<128x64xf32>
    %22 = arith.mulf %20, %13 : vector<128x64xf32>
    %23 = arith.addf %22, %21 : vector<128x64xf32>
    %24 = arith.truncf %23 : vector<128x64xf32> to vector<128x64xbf16>
    %c0_10 = arith.constant 0 : index
    %c0_11 = arith.constant 0 : index
    %25 = vector.load %arg5[%c0_10, %c0_11] : memref<128x64xbf16, #tpu.memory_space<vmem>>, vector<128x64xbf16>
    tpu.vector_store %arg5[%c0_10, %c0_11], %24 {strides = array<i32>} : memref<128x64xbf16, #tpu.memory_space<vmem>>, vector<128x64xbf16>,
    return
  }
  func.func @transform_0(%arg0: i32) -> (i32, i32) {
    %c0_i32 = arith.constant 0 : i32
    %c0_i32_0 = arith.constant 0 : i32
    return %arg0, %c0_i32 : i32, i32
  }
  func.func @transform_1(%arg0: i32) -> (i32, i32) {
    %c0_i32 = arith.constant 0 : i32
    %c0_i32_0 = arith.constant 0 : i32
    %c0_i32_1 = arith.constant 0 : i32
    return %c0_i32, %c0_i32_0 : i32, i32
  }
  func.func @transform_2(%arg0: i32) -> (i32, i32) {
    %c0_i32 = arith.constant 0 : i32
    %c0_i32_0 = arith.constant 0 : i32
    %c0_i32_1 = arith.constant 0 : i32
    return %c0_i32, %c0_i32_0 : i32, i32
  }
  func.func @transform_3(%arg0: i32) -> (i32, i32) {
    %c0_i32 = arith.constant 0 : i32
    %c0_i32_0 = arith.constant 0 : i32
    %c0_i32_1 = arith.constant 0 : i32
    return %c0_i32, %c0_i32_0 : i32, i32
  }
  func.func @transform_4(%arg0: i32) -> (i32, i32) {
    %c0_i32 = arith.constant 0 : i32
    %c0_i32_0 = arith.constant 0 : i32
    return %arg0, %c0_i32 : i32, i32
  }
}

module attributes {stable_mosaic.version = 11 : i64} {
  func.func @_gated_mm_kernel(%arg0: i32, %arg1: i32, %arg2: memref<128x64xbf16, #tpu.memory_space<vmem>>, %arg3: memref<64x128xbf16, #tpu.memory_space<vmem>>, %arg4: memref<64x128xbf16, #tpu.memory_space<vmem>>, %arg5: memref<128x128xbf16, #tpu.memory_space<vmem>>) attributes {dimension_semantics = [#tpu.dimension_semantics<parallel>, #tpu.dimension_semantics<parallel>], iteration_bounds = array<i64: 1, 1>, scalar_prefetch = 0 : i64, scratch_operands = 0 : i64, tpu.core_type = #tpu.core_type<tc>, window_params = [{transform_indices = @transform_0, window_bounds = array<i64: 128, 64>}, {transform_indices = @transform_1, window_bounds = array<i64: 64, 128>}, {transform_indices = @transform_2, window_bounds = array<i64: 64, 128>}, {transform_indices = @transform_3, window_bounds = array<i64: 128, 128>}]} {
    %c0 = arith.constant 0 : index
    %c0_0 = arith.constant 0 : index
    %0 = vector.load %arg2[%c0, %c0_0] : memref<128x64xbf16, #tpu.memory_space<vmem>>, vector<128x64xbf16>
    %c0_1 = arith.constant 0 : index
    %c0_2 = arith.constant 0 : index
    %1 = vector.load %arg3[%c0_1, %c0_2] : memref<64x128xbf16, #tpu.memory_space<vmem>>, vector<64x128xbf16>
    %cst = arith.constant dense<0.000000e+00> : vector<128x128xf32>
    %2 = tpu.matmul %0, %1, %cst {dimension_numbers = #tpu.dot_dimension_numbers<[1], [0], [0], [1], [0, 0, 1, 1], [], []>} : vector<128x64xbf16>, vector<64x128xbf16>, vector<128x128xf32> -> vector<128x128xf32>
    %c0_3 = arith.constant 0 : index
    %c0_4 = arith.constant 0 : index
    %3 = vector.load %arg4[%c0_3, %c0_4] : memref<64x128xbf16, #tpu.memory_space<vmem>>, vector<64x128xbf16>
    %cst_5 = arith.constant dense<0.000000e+00> : vector<128x128xf32>
    %4 = tpu.matmul %0, %3, %cst_5 {dimension_numbers = #tpu.dot_dimension_numbers<[1], [0], [0], [1], [0, 0, 1, 1], [], []>} : vector<128x64xbf16>, vector<64x128xbf16>, vector<128x128xf32> -> vector<128x128xf32>
    %cst_6 = arith.constant 5.000000e-01 : f32
    %5 = vector.broadcast %cst_6 : f32 to vector<128x128xf32>
    %6 = arith.mulf %5, %4 : vector<128x128xf32>
    %cst_7 = arith.constant 4.471500e-02 : f32
    %7 = vector.broadcast %cst_7 : f32 to vector<128x128xf32>
    %8 = arith.mulf %7, %4 : vector<128x128xf32>
    %9 = arith.mulf %8, %4 : vector<128x128xf32>
    %10 = arith.mulf %9, %4 : vector<128x128xf32>
    %11 = arith.addf %4, %10 : vector<128x128xf32>
    %cst_8 = arith.constant 0.797884583 : f32
    %12 = vector.broadcast %cst_8 : f32 to vector<128x128xf32>
    %13 = arith.mulf %12, %11 : vector<128x128xf32>
    %14 = math.tanh %13 : vector<128x128xf32>
    %cst_9 = arith.constant 1.000000e+00 : f32
    %15 = vector.broadcast %cst_9 : f32 to vector<128x128xf32>
    %16 = arith.addf %15, %14 : vector<128x128xf32>
    %17 = arith.mulf %6, %16 : vector<128x128xf32>
    %18 = arith.mulf %2, %17 : vector<128x128xf32>
    %19 = arith.truncf %18 : vector<128x128xf32> to vector<128x128xbf16>
    %c0_10 = arith.constant 0 : index
    %c0_11 = arith.constant 0 : index
    %20 = vector.load %arg5[%c0_10, %c0_11] : memref<128x128xbf16, #tpu.memory_space<vmem>>, vector<128x128xbf16>
    tpu.vector_store %arg5[%c0_10, %c0_11], %19 {strides = array<i32>} : memref<128x128xbf16, #tpu.memory_space<vmem>>, vector<128x128xbf16>,
    return
  }
  func.func @transform_0(%arg0: i32, %arg1: i32) -> (i32, i32) {
    %c0_i32 = arith.constant 0 : i32
    %c0_i32_0 = arith.constant 0 : i32
    return %arg0, %c0_i32 : i32, i32
  }
  func.func @transform_1(%arg0: i32, %arg1: i32) -> (i32, i32) {
    %c0_i32 = arith.constant 0 : i32
    %c0_i32_0 = arith.constant 0 : i32
    return %c0_i32, %arg1 : i32, i32
  }
  func.func @transform_2(%arg0: i32, %arg1: i32) -> (i32, i32) {
    %c0_i32 = arith.constant 0 : i32
    %c0_i32_0 = arith.constant 0 : i32
    return %c0_i32, %arg1 : i32, i32
  }
  func.func @transform_3(%arg0: i32, %arg1: i32) -> (i32, i32) {
    %c0_i32 = arith.constant 0 : i32
    return %arg0, %arg1 : i32, i32
  }
}

module attributes {stable_mosaic.version = 11 : i64} {
  func.func @kernel(%arg0: i32, %arg1: i32, %arg2: i32, %arg3: memref<128x64xbf16, #tpu.memory_space<vmem>>, %arg4: memref<64x64xbf16, #tpu.memory_space<vmem>>, %arg5: memref<128x64xf32, #tpu.memory_space<vmem>>, %arg6: memref<128x64xf32, #tpu.memory_space<vmem>>, %arg7: memref<128x64xf32, #tpu.memory_space<vmem>>) attributes {dimension_semantics = [#tpu.dimension_semantics<parallel>, #tpu.dimension_semantics<parallel>, #tpu.dimension_semantics<arbitrary>], iteration_bounds = array<i64: 1, 1, 1>, scalar_prefetch = 0 : i64, scratch_operands = 1 : i64, tpu.core_type = #tpu.core_type<tc>, window_params = [{transform_indices = @transform_0, window_bounds = array<i64: 128, 64>}, {transform_indices = @transform_1, window_bounds = array<i64: 64, 64>}, {transform_indices = @transform_2, window_bounds = array<i64: 128, 64>}, {transform_indices = @transform_3, window_bounds = array<i64: 128, 64>}]} {
    %c0_i32 = arith.constant 0 : i32
    %0 = arith.cmpi eq, %arg2, %c0_i32 : i32
    %1 = arith.extui %0 : i1 to i32
    %c0_i32_0 = arith.constant 0 : i32
    %2 = arith.cmpi ne, %1, %c0_i32_0 : i32
    scf.if %2 {
      %cst_10 = arith.constant 0.000000e+00 : f32
      %12 = vector.broadcast %cst_10 : f32 to vector<128x64xf32>
      %c0_11 = arith.constant 0 : index
      %c0_12 = arith.constant 0 : index
      %13 = vector.load %arg7[%c0_11, %c0_12] : memref<128x64xf32, #tpu.memory_space<vmem>>, vector<128x64xf32>
      tpu.vector_store %arg7[%c0_11, %c0_12], %12 {strides = array<i32>} : memref<128x64xf32, #tpu.memory_space<vmem>>, vector<128x64xf32>,
    } else {
    }
    %c0 = arith.constant 0 : index
    %c0_1 = arith.constant 0 : index
    %3 = vector.load %arg7[%c0, %c0_1] : memref<128x64xf32, #tpu.memory_space<vmem>>, vector<128x64xf32>
    %c0_2 = arith.constant 0 : index
    %c0_3 = arith.constant 0 : index
    %4 = vector.load %arg3[%c0_2, %c0_3] : memref<128x64xbf16, #tpu.memory_space<vmem>>, vector<128x64xbf16>
    %c0_4 = arith.constant 0 : index
    %c0_5 = arith.constant 0 : index
    %5 = vector.load %arg4[%c0_4, %c0_5] : memref<64x64xbf16, #tpu.memory_space<vmem>>, vector<64x64xbf16>
    %cst = arith.constant dense<0.000000e+00> : vector<128x64xf32>
    %6 = tpu.matmul %4, %5, %cst {dimension_numbers = #tpu.dot_dimension_numbers<[1], [0], [0], [1], [0, 0, 1, 1], [], []>} : vector<128x64xbf16>, vector<64x64xbf16>, vector<128x64xf32> -> vector<128x64xf32>
    %7 = arith.addf %3, %6 : vector<128x64xf32>
    %c0_6 = arith.constant 0 : index
    %c0_7 = arith.constant 0 : index
    %8 = vector.load %arg7[%c0_6, %c0_7] : memref<128x64xf32, #tpu.memory_space<vmem>>, vector<128x64xf32>
    tpu.vector_store %arg7[%c0_6, %c0_7], %7 {strides = array<i32>} : memref<128x64xf32, #tpu.memory_space<vmem>>, vector<128x64xf32>,
    %c0_i32_8 = arith.constant 0 : i32
    %9 = arith.cmpi eq, %arg2, %c0_i32_8 : i32
    %10 = arith.extui %9 : i1 to i32
    %c0_i32_9 = arith.constant 0 : i32
    %11 = arith.cmpi ne, %10, %c0_i32_9 : i32
    scf.if %11 {
      %c0_10 = arith.constant 0 : index
      %c0_11 = arith.constant 0 : index
      %12 = vector.load %arg7[%c0_10, %c0_11] : memref<128x64xf32, #tpu.memory_space<vmem>>, vector<128x64xf32>
      %c0_12 = arith.constant 0 : index
      %c0_13 = arith.constant 0 : index
      %13 = vector.load %arg5[%c0_12, %c0_13] : memref<128x64xf32, #tpu.memory_space<vmem>>, vector<128x64xf32>
      %14 = arith.addf %12, %13 : vector<128x64xf32>
      %c0_14 = arith.constant 0 : index
      %c0_15 = arith.constant 0 : index
      %15 = vector.load %arg6[%c0_14, %c0_15] : memref<128x64xf32, #tpu.memory_space<vmem>>, vector<128x64xf32>
      tpu.vector_store %arg6[%c0_14, %c0_15], %14 {strides = array<i32>} : memref<128x64xf32, #tpu.memory_space<vmem>>, vector<128x64xf32>,
    } else {
    }
    return
  }
  func.func @transform_0(%arg0: i32, %arg1: i32, %arg2: i32) -> (i32, i32) {
    %c0_i32 = arith.constant 0 : i32
    return %arg0, %arg2 : i32, i32
  }
  func.func @transform_1(%arg0: i32, %arg1: i32, %arg2: i32) -> (i32, i32) {
    %c0_i32 = arith.constant 0 : i32
    return %arg2, %arg1 : i32, i32
  }
  func.func @transform_2(%arg0: i32, %arg1: i32, %arg2: i32) -> (i32, i32) {
    %c0_i32 = arith.constant 0 : i32
    return %arg0, %arg1 : i32, i32
  }
  func.func @transform_3(%arg0: i32, %arg1: i32, %arg2: i32) -> (i32, i32) {
    %c0_i32 = arith.constant 0 : i32
    return %arg0, %arg1 : i32, i32
  }
}

module attributes {stable_mosaic.version = 11 : i64} {
  func.func @kernel(%arg0: i32, %arg1: i32, %arg2: i32, %arg3: memref<1x1x16x16xbf16, #tpu.memory_space<vmem>>, %arg4: memref<1x1x16x16xbf16, #tpu.memory_space<vmem>>, %arg5: memref<1x1x16x16xbf16, #tpu.memory_space<vmem>>, %arg6: memref<1x1x16x16xbf16, #tpu.memory_space<vmem>>, %arg7: memref<16x1xf32, #tpu.memory_space<vmem>>, %arg8: memref<16x1xf32, #tpu.memory_space<vmem>>, %arg9: memref<16x16xf32, #tpu.memory_space<vmem>>) attributes {dimension_semantics = [#tpu.dimension_semantics<parallel>, #tpu.dimension_semantics<parallel>, #tpu.dimension_semantics<arbitrary>], iteration_bounds = array<i64: 2, 4, 1>, scalar_prefetch = 0 : i64, scratch_operands = 3 : i64, tpu.core_type = #tpu.core_type<tc>, window_params = [{transform_indices = @transform_0, window_bounds = array<i64: 1, 1, 16, 16>}, {transform_indices = @transform_1, window_bounds = array<i64: 1, 1, 16, 16>}, {transform_indices = @transform_2, window_bounds = array<i64: 1, 1, 16, 16>}, {transform_indices = @transform_3, window_bounds = array<i64: 1, 1, 16, 16>}]} {
    %c0_i32 = arith.constant 0 : i32
    %0 = arith.cmpi eq, %arg2, %c0_i32 : i32
    %1 = arith.extui %0 : i1 to i32
    %c0_i32_0 = arith.constant 0 : i32
    %2 = arith.cmpi ne, %1, %c0_i32_0 : i32
    scf.if %2 {
      %cst_30 = arith.constant 0xFF800000 : f32
      %38 = vector.broadcast %cst_30 : f32 to vector<16x1xf32>
      %c0_31 = arith.constant 0 : index
      %c0_32 = arith.constant 0 : index
      %39 = vector.load %arg7[%c0_31, %c0_32] : memref<16x1xf32, #tpu.memory_space<vmem>>, vector<16x1xf32>
      tpu.vector_store %arg7[%c0_31, %c0_32], %38 {strides = array<i32>} : memref<16x1xf32, #tpu.memory_space<vmem>>, vector<16x1xf32>,
      %cst_33 = arith.constant 0.000000e+00 : f32
      %40 = vector.broadcast %cst_33 : f32 to vector<16x1xf32>
      %c0_34 = arith.constant 0 : index
      %c0_35 = arith.constant 0 : index
      %41 = vector.load %arg8[%c0_34, %c0_35] : memref<16x1xf32, #tpu.memory_space<vmem>>, vector<16x1xf32>
      tpu.vector_store %arg8[%c0_34, %c0_35], %40 {strides = array<i32>} : memref<16x1xf32, #tpu.memory_space<vmem>>, vector<16x1xf32>,
      %cst_36 = arith.constant 0.000000e+00 : f32
      %42 = vector.broadcast %cst_36 : f32 to vector<16x16xf32>
      %c0_37 = arith.constant 0 : index
      %c0_38 = arith.constant 0 : index
      %43 = vector.load %arg9[%c0_37, %c0_38] : memref<16x16xf32, #tpu.memory_space<vmem>>, vector<16x16xf32>
      tpu.vector_store %arg9[%c0_37, %c0_38], %42 {strides = array<i32>} : memref<16x16xf32, #tpu.memory_space<vmem>>, vector<16x16xf32>,
    } else {
    }
    %c0 = arith.constant 0 : index
    %c0_1 = arith.constant 0 : index
    %c0_2 = arith.constant 0 : index
    %c0_3 = arith.constant 0 : index
    %3 = vector.load %arg3[%c0, %c0_1, %c0_2, %c0_3] : memref<1x1x16x16xbf16, #tpu.memory_space<vmem>>, vector<1x1x16x16xbf16>
    %4 = vector.shape_cast %3 : vector<1x1x16x16xbf16> to vector<16x16xbf16>
    %c0_4 = arith.constant 0 : index
    %c0_5 = arith.constant 0 : index
    %c0_6 = arith.constant 0 : index
    %c0_7 = arith.constant 0 : index
    %5 = vector.load %arg4[%c0_4, %c0_5, %c0_6, %c0_7] : memref<1x1x16x16xbf16, #tpu.memory_space<vmem>>, vector<1x1x16x16xbf16>
    %6 = vector.shape_cast %5 : vector<1x1x16x16xbf16> to vector<16x16xbf16>
    %c0_8 = arith.constant 0 : index
    %c0_9 = arith.constant 0 : index
    %c0_10 = arith.constant 0 : index
    %c0_11 = arith.constant 0 : index
    %7 = vector.load %arg5[%c0_8, %c0_9, %c0_10, %c0_11] : memref<1x1x16x16xbf16, #tpu.memory_space<vmem>>, vector<1x1x16x16xbf16>
    %8 = vector.shape_cast %7 : vector<1x1x16x16xbf16> to vector<16x16xbf16>
    %cst = arith.constant dense<0.000000e+00> : vector<16x16xf32>
    %9 = tpu.matmul %4, %6, %cst {dimension_numbers = #tpu.dot_dimension_numbers<[1], [1], [0], [0], [0, 0, 1, 0], [], []>} : vector<16x16xbf16>, vector<16x16xbf16>, vector<16x16xf32> -> vector<16x16xf32>
    %cst_12 = arith.constant 2.500000e-01 : f32
    %10 = vector.broadcast %cst_12 : f32 to vector<16x16xf32>
    %11 = arith.mulf %9, %10 : vector<16x16xf32>
    %c0_13 = arith.constant 0 : index
    %c0_14 = arith.constant 0 : index
    %12 = vector.load %arg7[%c0_13, %c0_14] : memref<16x1xf32, #tpu.memory_space<vmem>>, vector<16x1xf32>
    %cst_15 = arith.constant dense<0xFF800000> : vector<16xf32>
    %13 = vector.multi_reduction <maximumf>, %11, %cst_15 [1] : vector<16x16xf32> to vector<16xf32>
    %14 = vector.shape_cast %13 : vector<16xf32> to vector<16x1xf32>
    %15 = arith.maximumf %12, %14 : vector<16x1xf32>
    %16 = arith.subf %12, %15 : vector<16x1xf32>
    %17 = math.exp %16 : vector<16x1xf32>
    %18 = vector.broadcast %15 : vector<16x1xf32> to vector<16x16xf32>
    %19 = arith.subf %11, %18 : vector<16x16xf32>
    %20 = math.exp %19 : vector<16x16xf32>
    %c0_16 = arith.constant 0 : index
    %c0_17 = arith.constant 0 : index
    %21 = vector.load %arg8[%c0_16, %c0_17] : memref<16x1xf32, #tpu.memory_space<vmem>>, vector<16x1xf32>
    %22 = arith.mulf %17, %21 : vector<16x1xf32>
    %cst_18 = arith.constant dense<0.000000e+00> : vector<16xf32>
    %23 = vector.multi_reduction <add>, %20, %cst_18 [1] : vector<16x16xf32> to vector<16xf32>
    %24 = vector.shape_cast %23 : vector<16xf32> to vector<16x1xf32>
    %25 = arith.addf %22, %24 : vector<16x1xf32>
    %c0_19 = arith.constant 0 : index
    %c0_20 = arith.constant 0 : index
    %26 = vector.load %arg8[%c0_19, %c0_20] : memref<16x1xf32, #tpu.memory_space<vmem>>, vector<16x1xf32>
    tpu.vector_store %arg8[%c0_19, %c0_20], %25 {strides = array<i32>} : memref<16x1xf32, #tpu.memory_space<vmem>>, vector<16x1xf32>,
    %c0_21 = arith.constant 0 : index
    %c0_22 = arith.constant 0 : index
    %27 = vector.load %arg9[%c0_21, %c0_22] : memref<16x16xf32, #tpu.memory_space<vmem>>, vector<16x16xf32>
    %28 = vector.broadcast %17 : vector<16x1xf32> to vector<16x16xf32>
    %29 = arith.mulf %28, %27 : vector<16x16xf32>
    %30 = arith.truncf %20 : vector<16x16xf32> to vector<16x16xbf16>
    %cst_23 = arith.constant dense<0.000000e+00> : vector<16x16xf32>
    %31 = tpu.matmul %30, %8, %cst_23 {dimension_numbers = #tpu.dot_dimension_numbers<[1], [0], [0], [1], [0, 0, 1, 1], [], []>} : vector<16x16xbf16>, vector<16x16xbf16>, vector<16x16xf32> -> vector<16x16xf32>
    %32 = arith.addf %29, %31 : vector<16x16xf32>
    %c0_24 = arith.constant 0 : index
    %c0_25 = arith.constant 0 : index
    %33 = vector.load %arg9[%c0_24, %c0_25] : memref<16x16xf32, #tpu.memory_space<vmem>>, vector<16x16xf32>
    tpu.vector_store %arg9[%c0_24, %c0_25], %32 {strides = array<i32>} : memref<16x16xf32, #tpu.memory_space<vmem>>, vector<16x16xf32>,
    %c0_26 = arith.constant 0 : index
    %c0_27 = arith.constant 0 : index
    %34 = vector.load %arg7[%c0_26, %c0_27] : memref<16x1xf32, #tpu.memory_space<vmem>>, vector<16x1xf32>
    tpu.vector_store %arg7[%c0_26, %c0_27], %15 {strides = array<i32>} : memref<16x1xf32, #tpu.memory_space<vmem>>, vector<16x1xf32>,
    %c0_i32_28 = arith.constant 0 : i32
    %35 = arith.cmpi eq, %arg2, %c0_i32_28 : i32
    %36 = arith.extui %35 : i1 to i32
    %c0_i32_29 = arith.constant 0 : i32
    %37 = arith.cmpi ne, %36, %c0_i32_29 : i32
    scf.if %37 {
      %c0_30 = arith.constant 0 : index
      %c0_31 = arith.constant 0 : index
      %38 = vector.load %arg9[%c0_30, %c0_31] : memref<16x16xf32, #tpu.memory_space<vmem>>, vector<16x16xf32>
      %c0_32 = arith.constant 0 : index
      %c0_33 = arith.constant 0 : index
      %39 = vector.load %arg8[%c0_32, %c0_33] : memref<16x1xf32, #tpu.memory_space<vmem>>, vector<16x1xf32>
      %40 = tpu.reciprocal %39 {approx = true} : vector<16x1xf32> -> vector<16x1xf32>
      %41 = vector.broadcast %40 : vector<16x1xf32> to vector<16x16xf32>
      %42 = arith.mulf %38, %41 : vector<16x16xf32>
      %43 = arith.truncf %42 : vector<16x16xf32> to vector<16x16xbf16>
      %c0_34 = arith.constant 0 : index
      %c0_35 = arith.constant 0 : index
      %c0_36 = arith.constant 0 : index
      %c0_37 = arith.constant 0 : index
      %44 = vector.load %arg6[%c0_34, %c0_35, %c0_36, %c0_37] : memref<1x1x16x16xbf16, #tpu.memory_space<vmem>>, vector<1x1x16x16xbf16>
      %45 = vector.shape_cast %44 : vector<1x1x16x16xbf16> to vector<16x16xbf16>
      %46 = vector.shape_cast %43 : vector<16x16xbf16> to vector<1x1x16x16xbf16>
      tpu.vector_store %arg6[%c0_34, %c0_35, %c0_36, %c0_37], %46 {strides = array<i32>} : memref<1x1x16x16xbf16, #tpu.memory_space<vmem>>, vector<1x1x16x16xbf16>,
    } else {
    }
    return
  }
  func.func @transform_0(%arg0: i32, %arg1: i32, %arg2: i32) -> (i32, i32, i32, i32) {
    %c0_i32 = arith.constant 0 : i32
    %c0_i32_0 = arith.constant 0 : i32
    %c0_i32_1 = arith.constant 0 : i32
    return %arg0, %arg1, %c0_i32, %c0_i32_0 : i32, i32, i32, i32
  }
  func.func @transform_1(%arg0: i32, %arg1: i32, %arg2: i32) -> (i32, i32, i32, i32) {
    %c4_i32 = arith.constant 4 : i32
    %0 = arith.addi %c4_i32, %arg1 : i32
    %c0_i32 = arith.constant 0 : i32
    %c0_i32_0 = arith.constant 0 : i32
    return %arg0, %0, %arg2, %c0_i32 : i32, i32, i32, i32
  }
  func.func @transform_2(%arg0: i32, %arg1: i32, %arg2: i32) -> (i32, i32, i32, i32) {
    %c8_i32 = arith.constant 8 : i32
    %0 = arith.addi %c8_i32, %arg1 : i32
    %c0_i32 = arith.constant 0 : i32
    %c0_i32_0 = arith.constant 0 : i32
    return %arg0, %0, %arg2, %c0_i32 : i32, i32, i32, i32
  }
  func.func @transform_3(%arg0: i32, %arg1: i32, %arg2: i32) -> (i32, i32, i32, i32) {
    %c0_i32 = arith.constant 0 : i32
    %c0_i32_0 = arith.constant 0 : i32
    %c0_i32_1 = arith.constant 0 : i32
    return %arg0, %arg1, %c0_i32, %c0_i32_0 : i32, i32, i32, i32
  }
}

module attributes {stable_mosaic.version = 11 : i64} {
  func.func @kernel(%arg0: i32, %arg1: i32, %arg2: i32, %arg3: memref<128x128xbf16, #tpu.memory_space<vmem>>, %arg4: memref<128x64xbf16, #tpu.memory_space<vmem>>, %arg5: memref<128x64xf32, #tpu.memory_space<vmem>>, %arg6: memref<128x64xf32, #tpu.memory_space<vmem>>, %arg7: memref<128x64xf32, #tpu.memory_space<vmem>>) attributes {dimension_semantics = [#tpu.dimension_semantics<parallel>, #tpu.dimension_semantics<parallel>, #tpu.dimension_semantics<arbitrary>], iteration_bounds = array<i64: 1, 1, 1>, scalar_prefetch = 0 : i64, scratch_operands = 1 : i64, tpu.core_type = #tpu.core_type<tc>, window_params = [{transform_indices = @transform_0, window_bounds = array<i64: 128, 128>}, {transform_indices = @transform_1, window_bounds = array<i64: 128, 64>}, {transform_indices = @transform_2, window_bounds = array<i64: 128, 64>}, {transform_indices = @transform_3, window_bounds = array<i64: 128, 64>}]} {
    %c0_i32 = arith.constant 0 : i32
    %0 = arith.cmpi eq, %arg2, %c0_i32 : i32
    %1 = arith.extui %0 : i1 to i32
    %c0_i32_0 = arith.constant 0 : i32
    %2 = arith.cmpi ne, %1, %c0_i32_0 : i32
    scf.if %2 {
      %cst_10 = arith.constant 0.000000e+00 : f32
      %12 = vector.broadcast %cst_10 : f32 to vector<128x64xf32>
      %c0_11 = arith.constant 0 : index
      %c0_12 = arith.constant 0 : index
      %13 = vector.load %arg7[%c0_11, %c0_12] : memref<128x64xf32, #tpu.memory_space<vmem>>, vector<128x64xf32>
      tpu.vector_store %arg7[%c0_11, %c0_12], %12 {strides = array<i32>} : memref<128x64xf32, #tpu.memory_space<vmem>>, vector<128x64xf32>,
    } else {
    }
    %c0 = arith.constant 0 : index
    %c0_1 = arith.constant 0 : index
    %3 = vector.load %arg7[%c0, %c0_1] : memref<128x64xf32, #tpu.memory_space<vmem>>, vector<128x64xf32>
    %c0_2 = arith.constant 0 : index
    %c0_3 = arith.constant 0 : index
    %4 = vector.load %arg3[%c0_2, %c0_3] : memref<128x128xbf16, #tpu.memory_space<vmem>>, vector<128x128xbf16>
    %c0_4 = arith.constant 0 : index
    %c0_5 = arith.constant 0 : index
    %5 = vector.load %arg4[%c0_4, %c0_5] : memref<128x64xbf16, #tpu.memory_space<vmem>>, vector<128x64xbf16>
    %cst = arith.constant dense<0.000000e+00> : vector<128x64xf32>
    %6 = tpu.matmul %4, %5, %cst {dimension_numbers = #tpu.dot_dimension_numbers<[1], [0], [0], [1], [0, 0, 1, 1], [], []>} : vector<128x128xbf16>, vector<128x64xbf16>, vector<128x64xf32> -> vector<128x64xf32>
    %7 = arith.addf %3, %6 : vector<128x64xf32>
    %c0_6 = arith.constant 0 : index
    %c0_7 = arith.constant 0 : index
    %8 = vector.load %arg7[%c0_6, %c0_7] : memref<128x64xf32, #tpu.memory_space<vmem>>, vector<128x64xf32>
    tpu.vector_store %arg7[%c0_6, %c0_7], %7 {strides = array<i32>} : memref<128x64xf32, #tpu.memory_space<vmem>>, vector<128x64xf32>,
    %c0_i32_8 = arith.constant 0 : i32
    %9 = arith.cmpi eq, %arg2, %c0_i32_8 : i32
    %10 = arith.extui %9 : i1 to i32
    %c0_i32_9 = arith.constant 0 : i32
    %11 = arith.cmpi ne, %10, %c0_i32_9 : i32
    scf.if %11 {
      %c0_10 = arith.constant 0 : index
      %c0_11 = arith.constant 0 : index
      %12 = vector.load %arg7[%c0_10, %c0_11] : memref<128x64xf32, #tpu.memory_space<vmem>>, vector<128x64xf32>
      %c0_12 = arith.constant 0 : index
      %c0_13 = arith.constant 0 : index
      %13 = vector.load %arg5[%c0_12, %c0_13] : memref<128x64xf32, #tpu.memory_space<vmem>>, vector<128x64xf32>
      %14 = arith.addf %12, %13 : vector<128x64xf32>
      %c0_14 = arith.constant 0 : index
      %c0_15 = arith.constant 0 : index
      %15 = vector.load %arg6[%c0_14, %c0_15] : memref<128x64xf32, #tpu.memory_space<vmem>>, vector<128x64xf32>
      tpu.vector_store %arg6[%c0_14, %c0_15], %14 {strides = array<i32>} : memref<128x64xf32, #tpu.memory_space<vmem>>, vector<128x64xf32>,
    } else {
    }
    return
  }
  func.func @transform_0(%arg0: i32, %arg1: i32, %arg2: i32) -> (i32, i32) {
    %c0_i32 = arith.constant 0 : i32
    return %arg0, %arg2 : i32, i32
  }
  func.func @transform_1(%arg0: i32, %arg1: i32, %arg2: i32) -> (i32, i32) {
    %c0_i32 = arith.constant 0 : i32
    return %arg2, %arg1 : i32, i32
  }
  func.func @transform_2(%arg0: i32, %arg1: i32, %arg2: i32) -> (i32, i32) {
    %c0_i32 = arith.constant 0 : i32
    return %arg0, %arg1 : i32, i32
  }
  func.func @transform_3(%arg0: i32, %arg1: i32, %arg2: i32) -> (i32, i32) {
    %c0_i32 = arith.constant 0 : i32
    return %arg0, %arg1 : i32, i32
  }
}

module attributes {stable_mosaic.version = 11 : i64} {
  func.func @kernel(%arg0: i32, %arg1: i32, %arg2: i32, %arg3: memref<128x64xbf16, #tpu.memory_space<vmem>>, %arg4: memref<64x64xbf16, #tpu.memory_space<vmem>>, %arg5: memref<1x64xf32, #tpu.memory_space<vmem>>, %arg6: memref<128x64xf32, #tpu.memory_space<vmem>>, %arg7: memref<128x64xf32, #tpu.memory_space<vmem>>, %arg8: memref<128x64xf32, #tpu.memory_space<vmem>>) attributes {dimension_semantics = [#tpu.dimension_semantics<parallel>, #tpu.dimension_semantics<parallel>, #tpu.dimension_semantics<arbitrary>], iteration_bounds = array<i64: 1, 1, 1>, scalar_prefetch = 0 : i64, scratch_operands = 1 : i64, tpu.core_type = #tpu.core_type<tc>, window_params = [{transform_indices = @transform_0, window_bounds = array<i64: 128, 64>}, {transform_indices = @transform_1, window_bounds = array<i64: 64, 64>}, {transform_indices = @transform_2, window_bounds = array<i64: 1, 64>}, {transform_indices = @transform_3, window_bounds = array<i64: 128, 64>}, {transform_indices = @transform_4, window_bounds = array<i64: 128, 64>}]} {
    %c0_i32 = arith.constant 0 : i32
    %0 = arith.cmpi eq, %arg2, %c0_i32 : i32
    %1 = arith.extui %0 : i1 to i32
    %c0_i32_0 = arith.constant 0 : i32
    %2 = arith.cmpi ne, %1, %c0_i32_0 : i32
    scf.if %2 {
      %cst_10 = arith.constant 0.000000e+00 : f32
      %12 = vector.broadcast %cst_10 : f32 to vector<128x64xf32>
      %c0_11 = arith.constant 0 : index
      %c0_12 = arith.constant 0 : index
      %13 = vector.load %arg8[%c0_11, %c0_12] : memref<128x64xf32, #tpu.memory_space<vmem>>, vector<128x64xf32>
      tpu.vector_store %arg8[%c0_11, %c0_12], %12 {strides = array<i32>} : memref<128x64xf32, #tpu.memory_space<vmem>>, vector<128x64xf32>,
    } else {
    }
    %c0 = arith.constant 0 : index
    %c0_1 = arith.constant 0 : index
    %3 = vector.load %arg8[%c0, %c0_1] : memref<128x64xf32, #tpu.memory_space<vmem>>, vector<128x64xf32>
    %c0_2 = arith.constant 0 : index
    %c0_3 = arith.constant 0 : index
    %4 = vector.load %arg3[%c0_2, %c0_3] : memref<128x64xbf16, #tpu.memory_space<vmem>>, vector<128x64xbf16>
    %c0_4 = arith.constant 0 : index
    %c0_5 = arith.constant 0 : index
    %5 = vector.load %arg4[%c0_4, %c0_5] : memref<64x64xbf16, #tpu.memory_space<vmem>>, vector<64x64xbf16>
    %cst = arith.constant dense<0.000000e+00> : vector<128x64xf32>
    %6 = tpu.matmul %4, %5, %cst {dimension_numbers = #tpu.dot_dimension_numbers<[1], [0], [0], [1], [0, 0, 1, 1], [], []>} : vector<128x64xbf16>, vector<64x64xbf16>, vector<128x64xf32> -> vector<128x64xf32>
    %7 = arith.addf %3, %6 : vector<128x64xf32>
    %c0_6 = arith.constant 0 : index
    %c0_7 = arith.constant 0 : index
    %8 = vector.load %arg8[%c0_6, %c0_7] : memref<128x64xf32, #tpu.memory_space<vmem>>, vector<128x64xf32>
    tpu.vector_store %arg8[%c0_6, %c0_7], %7 {strides = array<i32>} : memref<128x64xf32, #tpu.memory_space<vmem>>, vector<128x64xf32>,
    %c0_i32_8 = arith.constant 0 : i32
    %9 = arith.cmpi eq, %arg2, %c0_i32_8 : i32
    %10 = arith.extui %9 : i1 to i32
    %c0_i32_9 = arith.constant 0 : i32
    %11 = arith.cmpi ne, %10, %c0_i32_9 : i32
    scf.if %11 {
      %c0_10 = arith.constant 0 : index
      %c0_11 = arith.constant 0 : index
      %12 = vector.load %arg8[%c0_10, %c0_11] : memref<128x64xf32, #tpu.memory_space<vmem>>, vector<128x64xf32>
      %c0_12 = arith.constant 0 : index
      %c0_13 = arith.constant 0 : index
      %13 = vector.load %arg5[%c0_12, %c0_13] : memref<1x64xf32, #tpu.memory_space<vmem>>, vector<1x64xf32>
      %14 = vector.broadcast %13 : vector<1x64xf32> to vector<128x64xf32>
      %15 = arith.addf %12, %14 : vector<128x64xf32>
      %c0_14 = arith.constant 0 : index
      %c0_15 = arith.constant 0 : index
      %16 = vector.load %arg6[%c0_14, %c0_15] : memref<128x64xf32, #tpu.memory_space<vmem>>, vector<128x64xf32>
      %17 = arith.addf %15, %16 : vector<128x64xf32>
      %c0_16 = arith.constant 0 : index
      %c0_17 = arith.constant 0 : index
      %18 = vector.load %arg7[%c0_16, %c0_17] : memref<128x64xf32, #tpu.memory_space<vmem>>, vector<128x64xf32>
      tpu.vector_store %arg7[%c0_16, %c0_17], %17 {strides = array<i32>} : memref<128x64xf32, #tpu.memory_space<vmem>>, vector<128x64xf32>,
    } else {
    }
    return
  }
  func.func @transform_0(%arg0: i32, %arg1: i32, %arg2: i32) -> (i32, i32) {
    %c0_i32 = arith.constant 0 : i32
    return %arg0, %arg2 : i32, i32
  }
  func.func @transform_1(%arg0: i32, %arg1: i32, %arg2: i32) -> (i32, i32) {
    %c0_i32 = arith.constant 0 : i32
    return %arg2, %arg1 : i32, i32
  }
  func.func @transform_2(%arg0: i32, %arg1: i32, %arg2: i32) -> (i32, i32) {
    %c0_i32 = arith.constant 0 : i32
    %c0_i32_0 = arith.constant 0 : i32
    return %c0_i32, %arg1 : i32, i32
  }
  func.func @transform_3(%arg0: i32, %arg1: i32, %arg2: i32) -> (i32, i32) {
    %c0_i32 = arith.constant 0 : i32
    return %arg0, %arg1 : i32, i32
  }
  func.func @transform_4(%arg0: i32, %arg1: i32, %arg2: i32) -> (i32, i32) {
    %c0_i32 = arith.constant 0 : i32
    return %arg0, %arg1 : i32, i32
  }
}

module attributes {stable_mosaic.version = 11 : i64} {
  func.func @_norm_mm_kernel(%arg0: i32, %arg1: i32, %arg2: memref<128x64xf32, #tpu.memory_space<vmem>>, %arg3: memref<1x64xf32, #tpu.memory_space<vmem>>, %arg4: memref<64x512xbf16, #tpu.memory_space<vmem>>, %arg5: memref<1x512xf32, #tpu.memory_space<vmem>>, %arg6: memref<128x512xf32, #tpu.memory_space<vmem>>, %arg7: memref<128x64xbf16, #tpu.memory_space<vmem>>) attributes {dimension_semantics = [#tpu.dimension_semantics<parallel>, #tpu.dimension_semantics<arbitrary>], iteration_bounds = array<i64: 1, 1>, scalar_prefetch = 0 : i64, scratch_operands = 1 : i64, tpu.core_type = #tpu.core_type<tc>, window_params = [{transform_indices = @transform_0, window_bounds = array<i64: 128, 64>}, {pipeline_mode = #tpu.pipeline_mode<synchronous>, transform_indices = @transform_1, window_bounds = array<i64: 1, 64>}, {transform_indices = @transform_2, window_bounds = array<i64: 64, 512>}, {transform_indices = @transform_3, window_bounds = array<i64: 1, 512>}, {transform_indices = @transform_4, window_bounds = array<i64: 128, 512>}]} {
    %c0_i32 = arith.constant 0 : i32
    %0 = arith.cmpi eq, %arg1, %c0_i32 : i32
    %1 = arith.extui %0 : i1 to i32
    %c0_i32_0 = arith.constant 0 : i32
    %2 = arith.cmpi ne, %1, %c0_i32_0 : i32
    scf.if %2 {
      %c0_8 = arith.constant 0 : index
      %c0_9 = arith.constant 0 : index
      %10 = vector.load %arg2[%c0_8, %c0_9] : memref<128x64xf32, #tpu.memory_space<vmem>>, vector<128x64xf32>
      %11 = arith.mulf %10, %10 : vector<128x64xf32>
      %cst_10 = arith.constant dense<0.000000e+00> : vector<128xf32>
      %12 = vector.multi_reduction <add>, %11, %cst_10 [1] : vector<128x64xf32> to vector<128xf32>
      %13 = vector.shape_cast %12 : vector<128xf32> to vector<128x1xf32>
      %cst_11 = arith.constant 6.400000e+01 : f32
      %14 = vector.broadcast %cst_11 : f32 to vector<128x1xf32>
      %15 = arith.divf %13, %14 : vector<128x1xf32>
      %cst_12 = arith.constant 9.99999997E-7 : f32
      %16 = vector.broadcast %cst_12 : f32 to vector<128x1xf32>
      %17 = arith.addf %15, %16 : vector<128x1xf32>
      %18 = math.rsqrt %17 : vector<128x1xf32>
      %19 = vector.broadcast %18 : vector<128x1xf32> to vector<128x64xf32>
      %20 = arith.mulf %10, %19 : vector<128x64xf32>
      %c0_13 = arith.constant 0 : index
      %c0_14 = arith.constant 0 : index
      %21 = vector.load %arg3[%c0_13, %c0_14] : memref<1x64xf32, #tpu.memory_space<vmem>>, vector<1x64xf32>
      %22 = vector.broadcast %21 : vector<1x64xf32> to vector<128x64xf32>
      %23 = arith.mulf %20, %22 : vector<128x64xf32>
      %24 = arith.truncf %23 : vector<128x64xf32> to vector<128x64xbf16>
      %c0_15 = arith.constant 0 : index
      %c0_16 = arith.constant 0 : index
      %25 = vector.load %arg7[%c0_15, %c0_16] : memref<128x64xbf16, #tpu.memory_space<vmem>>, vector<128x64xbf16>
      tpu.vector_store %arg7[%c0_15, %c0_16], %24 {strides = array<i32>} : memref<128x64xbf16, #tpu.memory_space<vmem>>, vector<128x64xbf16>,
    } else {
    }
    %c0 = arith.constant 0 : index
    %c0_1 = arith.constant 0 : index
    %3 = vector.load %arg7[%c0, %c0_1] : memref<128x64xbf16, #tpu.memory_space<vmem>>, vector<128x64xbf16>
    %c0_2 = arith.constant 0 : index
    %c0_3 = arith.constant 0 : index
    %4 = vector.load %arg4[%c0_2, %c0_3] : memref<64x512xbf16, #tpu.memory_space<vmem>>, vector<64x512xbf16>
    %cst = arith.constant dense<0.000000e+00> : vector<128x512xf32>
    %5 = tpu.matmul %3, %4, %cst {dimension_numbers = #tpu.dot_dimension_numbers<[1], [0], [0], [1], [0, 0, 1, 1], [], []>} : vector<128x64xbf16>, vector<64x512xbf16>, vector<128x512xf32> -> vector<128x512xf32>
    %c0_4 = arith.constant 0 : index
    %c0_5 = arith.constant 0 : index
    %6 = vector.load %arg5[%c0_4, %c0_5] : memref<1x512xf32, #tpu.memory_space<vmem>>, vector<1x512xf32>
    %7 = vector.broadcast %6 : vector<1x512xf32> to vector<128x512xf32>
    %8 = arith.addf %5, %7 : vector<128x512xf32>
    %c0_6 = arith.constant 0 : index
    %c0_7 = arith.constant 0 : index
    %9 = vector.load %arg6[%c0_6, %c0_7] : memref<128x512xf32, #tpu.memory_space<vmem>>, vector<128x512xf32>
    tpu.vector_store %arg6[%c0_6, %c0_7], %8 {strides = array<i32>} : memref<128x512xf32, #tpu.memory_space<vmem>>, vector<128x512xf32>,
    return
  }
  func.func @transform_0(%arg0: i32, %arg1: i32) -> (i32, i32) {
    %c0_i32 = arith.constant 0 : i32
    %c0_i32_0 = arith.constant 0 : i32
    return %arg0, %c0_i32 : i32, i32
  }
  func.func @transform_1(%arg0: i32, %arg1: i32) -> (i32, i32) {
    %c0_i32 = arith.constant 0 : i32
    %c0_i32_0 = arith.constant 0 : i32
    %c0_i32_1 = arith.constant 0 : i32
    return %c0_i32, %c0_i32_0 : i32, i32
  }
  func.func @transform_2(%arg0: i32, %arg1: i32) -> (i32, i32) {
    %c0_i32 = arith.constant 0 : i32
    %c0_i32_0 = arith.constant 0 : i32
    return %c0_i32, %arg1 : i32, i32
  }
  func.func @transform_3(%arg0: i32, %arg1: i32) -> (i32, i32) {
    %c0_i32 = arith.constant 0 : i32
    %c0_i32_0 = arith.constant 0 : i32
    return %c0_i32, %arg1 : i32, i32
  }
  func.func @transform_4(%arg0: i32, %arg1: i32) -> (i32, i32) {
    %c0_i32 = arith.constant 0 : i32
    return %arg0, %arg1 : i32, i32
  }
}

</mosaic_0001>

<llo_original>
// kernel: forward.14
$region0: #{forward.14}
  #allocation0 [shape = 'u32[]', space=smem, size = 0x4, offset = 0x4, fixed_abs, tag = 'smem constant byte address 0x4 - core index']
  #allocation1 [shape = 'u32[72,128]{1,0:T(1,128)}', space=vmem, size = 0x9000, scoped, tag = 'internal scratch']
  #allocation2 [shape = 'f32[128,64]{1,0:T(8,128)}', space=vmem, size = 0x10000, scoped, tag = 'scratch operand']
  %s0 = inlined_call_operand.vmem [shape: f32[128,32], index: 0, kind: input, shape index: {}]
  %s1 = inlined_call_operand.vmem [shape: bf16[32,64], index: 1, kind: input, shape index: {}]
  %s2 = inlined_call_operand.vmem [shape: f32[1,64], index: 2, kind: input, shape index: {}]
  %s3 = inlined_call_operand.vmem [shape: f32[128,64], index: 3, kind: output, shape index: {}]
  %s4 = sld [smem:[#allocation0]]
  $region30: #{forward.14} parent=0
    _
  %s6 = ssub.s32 1, %s4
  %s7 = scalar_select 0, %s6, %s4
  // Predicated region
  $region2: #{forward.14} parent=0 // pred_check
    _
  $region3: #{forward.14} parent=0 // pred_check_branch
    %9 = sbr.rel (0) target = $region5
  $region4: #{forward.14} parent=0 // pred_region
    _
  $region5: #{forward.14} parent=0 // pred_fallthru
    _
  // Predicated region
  $region6: #{forward.14} parent=0 // pred_check
    _
  $region7: #{forward.14} parent=0 // pred_check_branch
    %11 = sbr.rel (0) target = $region9
  $region8: #{forward.14} parent=0 // pred_region
    _
  $region9: #{forward.14} parent=0 // pred_fallthru
    _
  // Predicated region
  $region10: #{forward.14} parent=0 // pred_check
    _
  $region11: #{forward.14} parent=0 // pred_check_branch
    %13 = sbr.rel (0) target = $region13
  $region12: #{forward.14} parent=0 // pred_region
    _
  $region13: #{forward.14} parent=0 // pred_fallthru
    _
  %p15 = scmp.eq.s32.totalorder 0, 0
  // Predicated region
  $region14: #{forward.14} parent=0 // pred_check
    %p16 = pneg %p15
  $region15: #{forward.14} parent=0 // pred_check_branch
    %18 = sbr.rel (%p16) target = $region17
  $region16: #{forward.14} parent=0 // pred_region
    %vm19 = vcmask 523264
    %20 = vst.msk [vmem:[#allocation2] sm:$0xff] %vm19, 0.0
    %21 = vst.msk [vmem:[#allocation2 + $0x8] sm:$0xff] %vm19, 0.0
    %22 = vst.msk [vmem:[#allocation2 + $0x10] sm:$0xff] %vm19, 0.0
    %23 = vst.msk [vmem:[#allocation2 + $0x18] sm:$0xff] %vm19, 0.0
    %24 = vst.msk [vmem:[#allocation2 + $0x20] sm:$0xff] %vm19, 0.0
    %25 = vst.msk [vmem:[#allocation2 + $0x28] sm:$0xff] %vm19, 0.0
    %26 = vst.msk [vmem:[#allocation2 + $0x30] sm:$0xff] %vm19, 0.0
    %27 = vst.msk [vmem:[#allocation2 + $0x38] sm:$0xff] %vm19, 0.0
    %28 = vst.msk [vmem:[#allocation2 + $0x40] sm:$0xff] %vm19, 0.0
    %29 = vst.msk [vmem:[#allocation2 + $0x48] sm:$0xff] %vm19, 0.0
    %30 = vst.msk [vmem:[#allocation2 + $0x50] sm:$0xff] %vm19, 0.0
    %31 = vst.msk [vmem:[#allocation2 + $0x58] sm:$0xff] %vm19, 0.0
    %32 = vst.msk [vmem:[#allocation2 + $0x60] sm:$0xff] %vm19, 0.0
    %33 = vst.msk [vmem:[#allocation2 + $0x68] sm:$0xff] %vm19, 0.0
    %34 = vst.msk [vmem:[#allocation2 + $0x70] sm:$0xff] %vm19, 0.0
    %35 = vst.msk [vmem:[#allocation2 + $0x78] sm:$0xff] %vm19, 0.0
  $region17: #{forward.14} parent=0 // pred_fallthru
    _
  %v36 = vld [vmem:[#allocation2] sm:$0xff]
  %v37 = vld [vmem:[#allocation2 + $0x8] sm:$0xff]
  %v38 = vld [vmem:[#allocation2 + $0x10] sm:$0xff]
  %v39 = vld [vmem:[#allocation2 + $0x18] sm:$0xff]
  %v40 = vld [vmem:[#allocation2 + $0x20] sm:$0xff]
  %v41 = vld [vmem:[#allocation2 + $0x28] sm:$0xff]
  %v42 = vld [vmem:[#allocation2 + $0x30] sm:$0xff]
  %v43 = vld [vmem:[#allocation2 + $0x38] sm:$0xff]
  %v44 = vld [vmem:[#allocation2 + $0x40] sm:$0xff]
  %v45 = vld [vmem:[#allocation2 + $0x48] sm:$0xff]
  %v46 = vld [vmem:[#allocation2 + $0x50] sm:$0xff]
  %v47 = vld [vmem:[#allocation2 + $0x58] sm:$0xff]
  %v48 = vld [vmem:[#allocation2 + $0x60] sm:$0xff]
  %v49 = vld [vmem:[#allocation2 + $0x68] sm:$0xff]
  %v50 = vld [vmem:[#allocation2 + $0x70] sm:$0xff]
  %v51 = vld [vmem:[#allocation2 + $0x78] sm:$0xff]
  %v52 = vld [vmem:[%s0] sm:$0xff]
  %v53 = vld [vmem:[%s0 + $0x8] sm:$0xff]
  %v54 = vld [vmem:[%s0 + $0x10] sm:$0xff]
  %v55 = vld [vmem:[%s0 + $0x18] sm:$0xff]
  %v56 = vld [vmem:[%s0 + $0x20] sm:$0xff]
  %v57 = vld [vmem:[%s0 + $0x28] sm:$0xff]
  %v58 = vld [vmem:[%s0 + $0x30] sm:$0xff]
  %v59 = vld [vmem:[%s0 + $0x38] sm:$0xff]
  %v60 = vld [vmem:[%s0 + $0x40] sm:$0xff]
  %v61 = vld [vmem:[%s0 + $0x48] sm:$0xff]
  %v62 = vld [vmem:[%s0 + $0x50] sm:$0xff]
  %v63 = vld [vmem:[%s0 + $0x58] sm:$0xff]
  %v64 = vld [vmem:[%s0 + $0x60] sm:$0xff]
  %v65 = vld [vmem:[%s0 + $0x68] sm:$0xff]
  %v66 = vld [vmem:[%s0 + $0x70] sm:$0xff]
  %v67 = vld [vmem:[%s0 + $0x78] sm:$0xff]
  %v68 = vpack.c.bf16 %v53, %v52
  %v69 = vpack.c.bf16 %v55, %v54
  %v70 = vpack.c.bf16 %v57, %v56
  %v71 = vpack.c.bf16 %v59, %v58
  %v72 = vpack.c.bf16 %v61, %v60
  %v73 = vpack.c.bf16 %v63, %v62
  %v74 = vpack.c.bf16 %v65, %v64
  %v75 = vpack.c.bf16 %v67, %v66
  %v76 = vld [vmem:[%s1] sm:$0xf]
  %v77 = vld [vmem:[%s1 + $0x4] sm:$0xf]
  %v78 = vld [vmem:[%s1 + $0x8] sm:$0xf]
  %v79 = vld [vmem:[%s1 + $0xc] sm:$0xf]
  %v84 = vunpack.c.l.b16 %v76
  %v85 = vunpack.c.l.b16 %v77
  %v86 = vunpack.c.l.b16 %v78
  %v87 = vunpack.c.l.b16 %v79
  %v88 = vpack.c.b16 %v85, %v84
  %v89 = vpack.c.b16 %v87, %v86
  %vm92 = vcmask 261120
  %v94 = vsel %vm92, %v68, 0
  %v97 = vsel %vm92, %v69, 0
  %v100 = vsel %vm92, %v70, 0
  %v103 = vsel %vm92, %v71, 0
  %v106 = vsel %vm92, %v72, 0
  %v109 = vsel %vm92, %v73, 0
  %v112 = vsel %vm92, %v74, 0
  %v115 = vsel %vm92, %v75, 0
  %117 = vmatpush.bf16.msra.mxu0 0
  %118 = vmatpush.bf16.msra.mxu0 0
  %119 = vmatpush.bf16.msra.mxu0 0
  %120 = vmatpush.bf16.msra.mxu0 0
  %121 = vmatpush.bf16.msra.mxu0 0
  %122 = vmatpush.bf16.msra.mxu0 0
  %123 = vmatpush.bf16.msra.mxu0 %v89
  %124 = vmatpush.bf16.msra.mxu0 %v88
  %125 = vmatmul.bf16.gmra.mxu0 %v94
  %v126 = vpop.f32.mrf.mxu0
  %v127 = vadd.f32 0.0, %v126
  %v128 = vpop.f32.mrf.mxu0
  %v129 = vadd.f32 0.0, %v128
  %130 = vmatmul.bf16.gmra.mxu0 %v97
  %v131 = vpop.f32.mrf.mxu0
  %v132 = vadd.f32 0.0, %v131
  %v133 = vpop.f32.mrf.mxu0
  %v134 = vadd.f32 0.0, %v133
  %135 = vmatmul.bf16.gmra.mxu0 %v100
  %v136 = vpop.f32.mrf.mxu0
  %v137 = vadd.f32 0.0, %v136
  %v138 = vpop.f32.mrf.mxu0
  %v139 = vadd.f32 0.0, %v138
  %140 = vmatmul.bf16.gmra.mxu0 %v103
  %v141 = vpop.f32.mrf.mxu0
  %v142 = vadd.f32 0.0, %v141
  %v143 = vpop.f32.mrf.mxu0
  %v144 = vadd.f32 0.0, %v143
  %145 = vmatmul.bf16.gmra.mxu0 %v106
  %v146 = vpop.f32.mrf.mxu0
  %v147 = vadd.f32 0.0, %v146
  %v148 = vpop.f32.mrf.mxu0
  %v149 = vadd.f32 0.0, %v148
  %150 = vmatmul.bf16.gmra.mxu0 %v109
  %v151 = vpop.f32.mrf.mxu0
  %v152 = vadd.f32 0.0, %v151
  %v153 = vpop.f32.mrf.mxu0
  %v154 = vadd.f32 0.0, %v153
  %155 = vmatmul.bf16.gmra.mxu0 %v112
  %v156 = vpop.f32.mrf.mxu0
  %v157 = vadd.f32 0.0, %v156
  %v158 = vpop.f32.mrf.mxu0
  %v159 = vadd.f32 0.0, %v158
  %160 = vmatmul.bf16.gmra.mxu0 %v115
  %v161 = vpop.f32.mrf.mxu0
  %v162 = vadd.f32 0.0, %v161
  %v163 = vpop.f32.mrf.mxu0
  %v164 = vadd.f32 0.0, %v163
  %165 = vdwg.mxu0
  %v166 = vadd.f32 %v36, %v127
  %v167 = vadd.f32 %v37, %v129
  %v168 = vadd.f32 %v38, %v132
  %v169 = vadd.f32 %v39, %v134
  %v170 = vadd.f32 %v40, %v137
  %v171 = vadd.f32 %v41, %v139
  %v172 = vadd.f32 %v42, %v142
  %v173 = vadd.f32 %v43, %v144
  %v174 = vadd.f32 %v44, %v147
  %v175 = vadd.f32 %v45, %v149
  %v176 = vadd.f32 %v46, %v152
  %v177 = vadd.f32 %v47, %v154
  %v178 = vadd.f32 %v48, %v157
  %v179 = vadd.f32 %v49, %v159
  %v180 = vadd.f32 %v50, %v162
  %v181 = vadd.f32 %v51, %v164
  %vm182 = vcmask 523264
  %183 = vst.msk [vmem:[#allocation2] sm:$0xff] %vm182, %v166
  %184 = vst.msk [vmem:[#allocation2 + $0x8] sm:$0xff] %vm182, %v167
  %185 = vst.msk [vmem:[#allocation2 + $0x10] sm:$0xff] %vm182, %v168
  %186 = vst.msk [vmem:[#allocation2 + $0x18] sm:$0xff] %vm182, %v169
  %187 = vst.msk [vmem:[#allocation2 + $0x20] sm:$0xff] %vm182, %v170
  %188 = vst.msk [vmem:[#allocation2 + $0x28] sm:$0xff] %vm182, %v171
  %189 = vst.msk [vmem:[#allocation2 + $0x30] sm:$0xff] %vm182, %v172
  %190 = vst.msk [vmem:[#allocation2 + $0x38] sm:$0xff] %vm182, %v173
  %191 = vst.msk [vmem:[#allocation2 + $0x40] sm:$0xff] %vm182, %v174
  %192 = vst.msk [vmem:[#allocation2 + $0x48] sm:$0xff] %vm182, %v175
  %193 = vst.msk [vmem:[#allocation2 + $0x50] sm:$0xff] %vm182, %v176
  %194 = vst.msk [vmem:[#allocation2 + $0x58] sm:$0xff] %vm182, %v177
  %195 = vst.msk [vmem:[#allocation2 + $0x60] sm:$0xff] %vm182, %v178
  %196 = vst.msk [vmem:[#allocation2 + $0x68] sm:$0xff] %vm182, %v179
  %197 = vst.msk [vmem:[#allocation2 + $0x70] sm:$0xff] %vm182, %v180
  %198 = vst.msk [vmem:[#allocation2 + $0x78] sm:$0xff] %vm182, %v181
  // Predicated region
  $region18: #{forward.14} parent=0 // pred_check
    %p199 = pneg %p15
  $region19: #{forward.14} parent=0 // pred_check_branch
    %201 = sbr.rel (%p199) target = $region21
  $region20: #{forward.14} parent=0 // pred_region
    %v202 = vld [vmem:[#allocation2] sm:$0xff]
    %v203 = vld [vmem:[#allocation2 + $0x8] sm:$0xff]
    %v204 = vld [vmem:[#allocation2 + $0x10] sm:$0xff]
    %v205 = vld [vmem:[#allocation2 + $0x18] sm:$0xff]
    %v206 = vld [vmem:[#allocation2 + $0x20] sm:$0xff]
    %v207 = vld [vmem:[#allocation2 + $0x28] sm:$0xff]
    %v208 = vld [vmem:[#allocation2 + $0x30] sm:$0xff]
    %v209 = vld [vmem:[#allocation2 + $0x38] sm:$0xff]
    %v210 = vld [vmem:[#allocation2 + $0x40] sm:$0xff]
    %v211 = vld [vmem:[#allocation2 + $0x48] sm:$0xff]
    %v212 = vld [vmem:[#allocation2 + $0x50] sm:$0xff]
    %v213 = vld [vmem:[#allocation2 + $0x58] sm:$0xff]
    %v214 = vld [vmem:[#allocation2 + $0x60] sm:$0xff]
    %v215 = vld [vmem:[#allocation2 + $0x68] sm:$0xff]
    %v216 = vld [vmem:[#allocation2 + $0x70] sm:$0xff]
    %v217 = vld [vmem:[#allocation2 + $0x78] sm:$0xff]
    %v218 = vld [vmem:[%s2] sm:$0x1]
    %v220 = vperm.slane %v218, 0
    %v222 = vadd.f32 %v202, %v220
    %v223 = vadd.f32 %v203, %v220
    %v224 = vadd.f32 %v204, %v220
    %v225 = vadd.f32 %v205, %v220
    %v226 = vadd.f32 %v206, %v220
    %v227 = vadd.f32 %v207, %v220
    %v228 = vadd.f32 %v208, %v220
    %v229 = vadd.f32 %v209, %v220
    %v230 = vadd.f32 %v210, %v220
    %v231 = vadd.f32 %v211, %v220
    %v232 = vadd.f32 %v212, %v220
    %v233 = vadd.f32 %v213, %v220
    %v234 = vadd.f32 %v214, %v220
    %v235 = vadd.f32 %v215, %v220
    %v236 = vadd.f32 %v216, %v220
    %v237 = vadd.f32 %v217, %v220
    %238 = vst.msk [vmem:[%s3] sm:$0xff] %vm182, %v222
    %239 = vst.msk [vmem:[%s3 + $0x8] sm:$0xff] %vm182, %v223
    %240 = vst.msk [vmem:[%s3 + $0x10] sm:$0xff] %vm182, %v224
    %241 = vst.msk [vmem:[%s3 + $0x18] sm:$0xff] %vm182, %v225
    %242 = vst.msk [vmem:[%s3 + $0x20] sm:$0xff] %vm182, %v226
    %243 = vst.msk [vmem:[%s3 + $0x28] sm:$0xff] %vm182, %v227
    %244 = vst.msk [vmem:[%s3 + $0x30] sm:$0xff] %vm182, %v228
    %245 = vst.msk [vmem:[%s3 + $0x38] sm:$0xff] %vm182, %v229
    %246 = vst.msk [vmem:[%s3 + $0x40] sm:$0xff] %vm182, %v230
    %247 = vst.msk [vmem:[%s3 + $0x48] sm:$0xff] %vm182, %v231
    %248 = vst.msk [vmem:[%s3 + $0x50] sm:$0xff] %vm182, %v232
    %249 = vst.msk [vmem:[%s3 + $0x58] sm:$0xff] %vm182, %v233
    %250 = vst.msk [vmem:[%s3 + $0x60] sm:$0xff] %vm182, %v234
    %251 = vst.msk [vmem:[%s3 + $0x68] sm:$0xff] %vm182, %v235
    %252 = vst.msk [vmem:[%s3 + $0x70] sm:$0xff] %vm182, %v236
    %253 = vst.msk [vmem:[%s3 + $0x78] sm:$0xff] %vm182, %v237
  $region21: #{forward.14} parent=0 // pred_fallthru
    _
  // Predicated region
  $region22: #{forward.14} parent=0 // pred_check
    _
  $region23: #{forward.14} parent=0 // pred_check_branch
    %255 = sbr.rel (0) target = $region25
  $region24: #{forward.14} parent=0 // pred_region
    _
  $region25: #{forward.14} parent=0 // pred_fallthru
    _
  // Predicated region
  $region26: #{forward.14} parent=0 // pred_check
    _
  $region27: #{forward.14} parent=0 // pred_check_branch
    %257 = sbr.rel (0) target = $region29
  $region28: #{forward.14} parent=0 // pred_region
    _
  $region29: #{forward.14} parent=0 // pred_fallthru
    _

// kernel: forward.15
$region0: #{forward.15}
  #allocation0 [shape = 'u32[]', space=smem, size = 0x4, offset = 0x4, fixed_abs, tag = 'smem constant byte address 0x4 - core index']
  #allocation1 [shape = 'u32[72,128]{1,0:T(1,128)}', space=vmem, size = 0x9000, scoped, tag = 'internal scratch']
  #allocation2 [shape = 'bf16[128,64]{1,0:T(8,128)(2,1)}', space=vmem, size = 0x8000, scoped, tag = 'scratch operand']
  %s0 = inlined_call_operand.vmem [shape: f32[128,64], index: 0, kind: input, shape index: {}]
  %s1 = inlined_call_operand.vmem [shape: f32[1,64], index: 1, kind: input, shape index: {}]
  %s2 = inlined_call_operand.vmem [shape: bf16[64,192], index: 2, kind: input, shape index: {}]
  %s3 = inlined_call_operand.vmem [shape: f32[1,192], index: 3, kind: input, shape index: {}]
  %s4 = inlined_call_operand.vmem [shape: bf16[128,192], index: 4, kind: output, shape index: {}]
  %s5 = sld [smem:[#allocation0]]
  $region30: #{forward.15} parent=0
    _
  %s7 = ssub.s32 1, %s5
  %s8 = scalar_select 0, %s7, %s5
  // Predicated region
  $region2: #{forward.15} parent=0 // pred_check
    _
  $region3: #{forward.15} parent=0 // pred_check_branch
    %10 = sbr.rel (0) target = $region5
  $region4: #{forward.15} parent=0 // pred_region
    _
  $region5: #{forward.15} parent=0 // pred_fallthru
    _
  // Predicated region
  $region6: #{forward.15} parent=0 // pred_check
    _
  $region7: #{forward.15} parent=0 // pred_check_branch
    %12 = sbr.rel (0) target = $region9
  $region8: #{forward.15} parent=0 // pred_region
    _
  $region9: #{forward.15} parent=0 // pred_fallthru
    _
  // Predicated region
  $region10: #{forward.15} parent=0 // pred_check
    _
  $region11: #{forward.15} parent=0 // pred_check_branch
    %14 = sbr.rel (0) target = $region13
  $region12: #{forward.15} parent=0 // pred_region
    _
  $region13: #{forward.15} parent=0 // pred_fallthru
    _
  // Predicated region
  $region14: #{forward.15} parent=0 // pred_check
    _
  $region15: #{forward.15} parent=0 // pred_check_branch
    %16 = sbr.rel (0) target = $region17
  $region16: #{forward.15} parent=0 // pred_region
    _
  $region17: #{forward.15} parent=0 // pred_fallthru
    _
  %p18 = scmp.eq.s32.totalorder 0, 0
  // Predicated region
  $region18: #{forward.15} parent=0 // pred_check
    %p19 = pneg %p18
  $region19: #{forward.15} parent=0 // pred_check_branch
    %21 = sbr.rel (%p19) target = $region21
  $region20: #{forward.15} parent=0 // pred_region
    %v22 = vld [vmem:[%s0] sm:$0xff]
    %v23 = vld [vmem:[%s0 + $0x8] sm:$0xff]
    %v24 = vld [vmem:[%s0 + $0x10] sm:$0xff]
    %v25 = vld [vmem:[%s0 + $0x18] sm:$0xff]
    %v26 = vld [vmem:[%s0 + $0x20] sm:$0xff]
    %v27 = vld [vmem:[%s0 + $0x28] sm:$0xff]
    %v28 = vld [vmem:[%s0 + $0x30] sm:$0xff]
    %v29 = vld [vmem:[%s0 + $0x38] sm:$0xff]
    %v30 = vld [vmem:[%s0 + $0x40] sm:$0xff]
    %v31 = vld [vmem:[%s0 + $0x48] sm:$0xff]
    %v32 = vld [vmem:[%s0 + $0x50] sm:$0xff]
    %v33 = vld [vmem:[%s0 + $0x58] sm:$0xff]
    %v34 = vld [vmem:[%s0 + $0x60] sm:$0xff]
    %v35 = vld [vmem:[%s0 + $0x68] sm:$0xff]
    %v36 = vld [vmem:[%s0 + $0x70] sm:$0xff]
    %v37 = vld [vmem:[%s0 + $0x78] sm:$0xff]
    %v38 = vmul.f32 %v22, %v22
    %v39 = vmul.f32 %v23, %v23
    %v40 = vmul.f32 %v24, %v24
    %v41 = vmul.f32 %v25, %v25
    %v42 = vmul.f32 %v26, %v26
    %v43 = vmul.f32 %v27, %v27
    %v44 = vmul.f32 %v28, %v28
    %v45 = vmul.f32 %v29, %v29
    %v46 = vmul.f32 %v30, %v30
    %v47 = vmul.f32 %v31, %v31
    %v48 = vmul.f32 %v32, %v32
    %v49 = vmul.f32 %v33, %v33
    %v50 = vmul.f32 %v34, %v34
    %v51 = vmul.f32 %v35, %v35
    %v52 = vmul.f32 %v36, %v36
    %v53 = vmul.f32 %v37, %v37
    %vm54 = vcmask 523264
    %v55 = vsel %vm54, %v38, 0.0
    %56 = vadd.xlane.f32.xlu0 %v55
    %v57 = vpop.xlane.xlu0 %56
    %v58 = vsel %vm54, %v39, 0.0
    %59 = vadd.xlane.f32.xlu0 %v58
    %v60 = vpop.xlane.xlu0 %59
    %v61 = vsel %vm54, %v40, 0.0
    %62 = vadd.xlane.f32.xlu0 %v61
    %v63 = vpop.xlane.xlu0 %62
    %v64 = vsel %vm54, %v41, 0.0
    %65 = vadd.xlane.f32.xlu0 %v64
    %v66 = vpop.xlane.xlu0 %65
    %v67 = vsel %vm54, %v42, 0.0
    %68 = vadd.xlane.f32.xlu0 %v67
    %v69 = vpop.xlane.xlu0 %68
    %v70 = vsel %vm54, %v43, 0.0
    %71 = vadd.xlane.f32.xlu0 %v70
    %v72 = vpop.xlane.xlu0 %71
    %v73 = vsel %vm54, %v44, 0.0
    %74 = vadd.xlane.f32.xlu0 %v73
    %v75 = vpop.xlane.xlu0 %74
    %v76 = vsel %vm54, %v45, 0.0
    %77 = vadd.xlane.f32.xlu0 %v76
    %v78 = vpop.xlane.xlu0 %77
    %v79 = vsel %vm54, %v46, 0.0
    %80 = vadd.xlane.f32.xlu0 %v79
    %v81 = vpop.xlane.xlu0 %80
    %v82 = vsel %vm54, %v47, 0.0
    %83 = vadd.xlane.f32.xlu0 %v82
    %v84 = vpop.xlane.xlu0 %83
    %v85 = vsel %vm54, %v48, 0.0
    %86 = vadd.xlane.f32.xlu0 %v85
    %v87 = vpop.xlane.xlu0 %86
    %v88 = vsel %vm54, %v49, 0.0
    %89 = vadd.xlane.f32.xlu0 %v88
    %v90 = vpop.xlane.xlu0 %89
    %v91 = vsel %vm54, %v50, 0.0
    %92 = vadd.xlane.f32.xlu0 %v91
    %v93 = vpop.xlane.xlu0 %92
    %v94 = vsel %vm54, %v51, 0.0
    %95 = vadd.xlane.f32.xlu0 %v94
    %v96 = vpop.xlane.xlu0 %95
    %v97 = vsel %vm54, %v52, 0.0
    %98 = vadd.xlane.f32.xlu0 %v97
    %v99 = vpop.xlane.xlu0 %98
    %v100 = vsel %vm54, %v53, 0.0
    %101 = vadd.xlane.f32.xlu0 %v100
    %v102 = vpop.xlane.xlu0 %101
    %v103 = vrcp.pop 64.0
    %v104 = vmul.f32 64.0, %v103
    %v105 = vsub.f32 1.0, %v104
    %v106 = vmul.f32 %v103, %v105
    %v107 = vadd.f32 %v103, %v106
    %vm108 = vweird.f32 %v103
    %v109 = vsel %vm108, %v103, %v107
    %v110 = vmul.f32 %v57, %v109
    %v111 = vmul.f32 %v60, %v109
    %v112 = vmul.f32 %v63, %v109
    %v113 = vmul.f32 %v66, %v109
    %v114 = vmul.f32 %v69, %v109
    %v115 = vmul.f32 %v72, %v109
    %v116 = vmul.f32 %v75, %v109
    %v117 = vmul.f32 %v78, %v109
    %v118 = vmul.f32 %v81, %v109
    %v119 = vmul.f32 %v84, %v109
    %v120 = vmul.f32 %v87, %v109
    %v121 = vmul.f32 %v90, %v109
    %v122 = vmul.f32 %v93, %v109
    %v123 = vmul.f32 %v96, %v109
    %v124 = vmul.f32 %v99, %v109
    %v125 = vmul.f32 %v102, %v109
    %v126 = vadd.f32 %v110, 1e-06
    %v127 = vadd.f32 %v111, 1e-06
    %v128 = vadd.f32 %v112, 1e-06
    %v129 = vadd.f32 %v113, 1e-06
    %v130 = vadd.f32 %v114, 1e-06
    %v131 = vadd.f32 %v115, 1e-06
    %v132 = vadd.f32 %v116, 1e-06
    %v133 = vadd.f32 %v117, 1e-06
    %v134 = vadd.f32 %v118, 1e-06
    %v135 = vadd.f32 %v119, 1e-06
    %v136 = vadd.f32 %v120, 1e-06
    %v137 = vadd.f32 %v121, 1e-06
    %v138 = vadd.f32 %v122, 1e-06
    %v139 = vadd.f32 %v123, 1e-06
    %v140 = vadd.f32 %v124, 1e-06
    %v141 = vadd.f32 %v125, 1e-06
    %v142 = vrsqrt.pop %v126
    %v143 = vmul.f32 %v142, %v126
    %v144 = vmul.f32 %v143, %v142
    %v145 = vmul.f32 0.5, %v144
    %v146 = vsub.f32 1.5, %v145
    %v147 = vmul.f32 %v142, %v146
    %vm148 = vweird.f32 %v126
    %vm149 = vweird.f32 %v142
    %vm150 = vmor %vm148, %vm149
    %v151 = vsel %vm150, %v142, %v147
    %v152 = vrsqrt.pop %v127
    %v153 = vmul.f32 %v152, %v127
    %v154 = vmul.f32 %v153, %v152
    %v155 = vmul.f32 0.5, %v154
    %v156 = vsub.f32 1.5, %v155
    %v157 = vmul.f32 %v152, %v156
    %vm158 = vweird.f32 %v127
    %vm159 = vweird.f32 %v152
    %vm160 = vmor %vm158, %vm159
    %v161 = vsel %vm160, %v152, %v157
    %v162 = vrsqrt.pop %v128
    %v163 = vmul.f32 %v162, %v128
    %v164 = vmul.f32 %v163, %v162
    %v165 = vmul.f32 0.5, %v164
    %v166 = vsub.f32 1.5, %v165
    %v167 = vmul.f32 %v162, %v166
    %vm168 = vweird.f32 %v128
    %vm169 = vweird.f32 %v162
    %vm170 = vmor %vm168, %vm169
    %v171 = vsel %vm170, %v162, %v167
    %v172 = vrsqrt.pop %v129
    %v173 = vmul.f32 %v172, %v129
    %v174 = vmul.f32 %v173, %v172
    %v175 = vmul.f32 0.5, %v174
    %v176 = vsub.f32 1.5, %v175
    %v177 = vmul.f32 %v172, %v176
    %vm178 = vweird.f32 %v129
    %vm179 = vweird.f32 %v172
    %vm180 = vmor %vm178, %vm179
    %v181 = vsel %vm180, %v172, %v177
    %v182 = vrsqrt.pop %v130
    %v183 = vmul.f32 %v182, %v130
    %v184 = vmul.f32 %v183, %v182
    %v185 = vmul.f32 0.5, %v184
    %v186 = vsub.f32 1.5, %v185
    %v187 = vmul.f32 %v182, %v186
    %vm188 = vweird.f32 %v130
    %vm189 = vweird.f32 %v182
    %vm190 = vmor %vm188, %vm189
    %v191 = vsel %vm190, %v182, %v187
    %v192 = vrsqrt.pop %v131
    %v193 = vmul.f32 %v192, %v131
    %v194 = vmul.f32 %v193, %v192
    %v195 = vmul.f32 0.5, %v194
    %v196 = vsub.f32 1.5, %v195
    %v197 = vmul.f32 %v192, %v196
    %vm198 = vweird.f32 %v131
    %vm199 = vweird.f32 %v192
    %vm200 = vmor %vm198, %vm199
    %v201 = vsel %vm200, %v192, %v197
    %v202 = vrsqrt.pop %v132
    %v203 = vmul.f32 %v202, %v132
    %v204 = vmul.f32 %v203, %v202
    %v205 = vmul.f32 0.5, %v204
    %v206 = vsub.f32 1.5, %v205
    %v207 = vmul.f32 %v202, %v206
    %vm208 = vweird.f32 %v132
    %vm209 = vweird.f32 %v202
    %vm210 = vmor %vm208, %vm209
    %v211 = vsel %vm210, %v202, %v207
    %v212 = vrsqrt.pop %v133
    %v213 = vmul.f32 %v212, %v133
    %v214 = vmul.f32 %v213, %v212
    %v215 = vmul.f32 0.5, %v214
    %v216 = vsub.f32 1.5, %v215
    %v217 = vmul.f32 %v212, %v216
    %vm218 = vweird.f32 %v133
    %vm219 = vweird.f32 %v212
    %vm220 = vmor %vm218, %vm219
    %v221 = vsel %vm220, %v212, %v217
    %v222 = vrsqrt.pop %v134
    %v223 = vmul.f32 %v222, %v134
    %v224 = vmul.f32 %v223, %v222
    %v225 = vmul.f32 0.5, %v224
    %v226 = vsub.f32 1.5, %v225
    %v227 = vmul.f32 %v222, %v226
    %vm228 = vweird.f32 %v134
    %vm229 = vweird.f32 %v222
    %vm230 = vmor %vm228, %vm229
    %v231 = vsel %vm230, %v222, %v227
    %v232 = vrsqrt.pop %v135
    %v233 = vmul.f32 %v232, %v135
    %v234 = vmul.f32 %v233, %v232
    %v235 = vmul.f32 0.5, %v234
    %v236 = vsub.f32 1.5, %v235
    %v237 = vmul.f32 %v232, %v236
    %vm238 = vweird.f32 %v135
    %vm239 = vweird.f32 %v232
    %vm240 = vmor %vm238, %vm239
    %v241 = vsel %vm240, %v232, %v237
    %v242 = vrsqrt.pop %v136
    %v243 = vmul.f32 %v242, %v136
    %v244 = vmul.f32 %v243, %v242
    %v245 = vmul.f32 0.5, %v244
    %v246 = vsub.f32 1.5, %v245
    %v247 = vmul.f32 %v242, %v246
    %vm248 = vweird.f32 %v136
    %vm249 = vweird.f32 %v242
    %vm250 = vmor %vm248, %vm249
    %v251 = vsel %vm250, %v242, %v247
    %v252 = vrsqrt.pop %v137
    %v253 = vmul.f32 %v252, %v137
    %v254 = vmul.f32 %v253, %v252
    %v255 = vmul.f32 0.5, %v254
    %v256 = vsub.f32 1.5, %v255
    %v257 = vmul.f32 %v252, %v256
    %vm258 = vweird.f32 %v137
    %vm259 = vweird.f32 %v252
    %vm260 = vmor %vm258, %vm259
    %v261 = vsel %vm260, %v252, %v257
    %v262 = vrsqrt.pop %v138
    %v263 = vmul.f32 %v262, %v138
    %v264 = vmul.f32 %v263, %v262
    %v265 = vmul.f32 0.5, %v264
    %v266 = vsub.f32 1.5, %v265
    %v267 = vmul.f32 %v262, %v266
    %vm268 = vweird.f32 %v138
    %vm269 = vweird.f32 %v262
    %vm270 = vmor %vm268, %vm269
    %v271 = vsel %vm270, %v262, %v267
    %v272 = vrsqrt.pop %v139
    %v273 = vmul.f32 %v272, %v139
    %v274 = vmul.f32 %v273, %v272
    %v275 = vmul.f32 0.5, %v274
    %v276 = vsub.f32 1.5, %v275
    %v277 = vmul.f32 %v272, %v276
    %vm278 = vweird.f32 %v139
    %vm279 = vweird.f32 %v272
    %vm280 = vmor %vm278, %vm279
    %v281 = vsel %vm280, %v272, %v277
    %v282 = vrsqrt.pop %v140
    %v283 = vmul.f32 %v282, %v140
    %v284 = vmul.f32 %v283, %v282
    %v285 = vmul.f32 0.5, %v284
    %v286 = vsub.f32 1.5, %v285
    %v287 = vmul.f32 %v282, %v286
    %vm288 = vweird.f32 %v140
    %vm289 = vweird.f32 %v282
    %vm290 = vmor %vm288, %vm289
    %v291 = vsel %vm290, %v282, %v287
    %v292 = vrsqrt.pop %v141
    %v293 = vmul.f32 %v292, %v141
    %v294 = vmul.f32 %v293, %v292
    %v295 = vmul.f32 0.5, %v294
    %v296 = vsub.f32 1.5, %v295
    %v297 = vmul.f32 %v292, %v296
    %vm298 = vweird.f32 %v141
    %vm299 = vweird.f32 %v292
    %vm300 = vmor %vm298, %vm299
    %v301 = vsel %vm300, %v292, %v297
    %v302 = vmul.f32 %v22, %v151
    %v303 = vmul.f32 %v23, %v161
    %v304 = vmul.f32 %v24, %v171
    %v305 = vmul.f32 %v25, %v181
    %v306 = vmul.f32 %v26, %v191
    %v307 = vmul.f32 %v27, %v201
    %v308 = vmul.f32 %v28, %v211
    %v309 = vmul.f32 %v29, %v221
    %v310 = vmul.f32 %v30, %v231
    %v311 = vmul.f32 %v31, %v241
    %v312 = vmul.f32 %v32, %v251
    %v313 = vmul.f32 %v33, %v261
    %v314 = vmul.f32 %v34, %v271
    %v315 = vmul.f32 %v35, %v281
    %v316 = vmul.f32 %v36, %v291
    %v317 = vmul.f32 %v37, %v301
    %v318 = vld [vmem:[%s1] sm:$0x1]
    %v320 = vperm.slane %v318, 0
    %v322 = vmul.f32 %v302, %v320
    %v323 = vmul.f32 %v303, %v320
    %v324 = vmul.f32 %v304, %v320
    %v325 = vmul.f32 %v305, %v320
    %v326 = vmul.f32 %v306, %v320
    %v327 = vmul.f32 %v307, %v320
    %v328 = vmul.f32 %v308, %v320
    %v329 = vmul.f32 %v309, %v320
    %v330 = vmul.f32 %v310, %v320
    %v331 = vmul.f32 %v311, %v320
    %v332 = vmul.f32 %v312, %v320
    %v333 = vmul.f32 %v313, %v320
    %v334 = vmul.f32 %v314, %v320
    %v335 = vmul.f32 %v315, %v320
    %v336 = vmul.f32 %v316, %v320
    %v337 = vmul.f32 %v317, %v320
    %v338 = vpack.c.bf16 %v322, %v322
    %v339 = vpack.c.bf16 %v323, %v323
    %v340 = vpack.c.bf16 %v324, %v324
    %v341 = vpack.c.bf16 %v325, %v325
    %v342 = vpack.c.bf16 %v326, %v326
    %v343 = vpack.c.bf16 %v327, %v327
    %v344 = vpack.c.bf16 %v328, %v328
    %v345 = vpack.c.bf16 %v329, %v329
    %v346 = vpack.c.bf16 %v330, %v330
    %v347 = vpack.c.bf16 %v331, %v331
    %v348 = vpack.c.bf16 %v332, %v332
    %v349 = vpack.c.bf16 %v333, %v333
    %v350 = vpack.c.bf16 %v334, %v334
    %v351 = vpack.c.bf16 %v335, %v335
    %v352 = vpack.c.bf16 %v336, %v336
    %v353 = vpack.c.bf16 %v337, %v337
    %vm354 = vcmask 519168
    %355 = vst.msk [vmem:[#allocation2] sm:$0xf] %vm354, %v338
    %356 = vst.msk [vmem:[#allocation2 + $0x4] sm:$0xf] %vm354, %v339
    %357 = vst.msk [vmem:[#allocation2 + $0x8] sm:$0xf] %vm354, %v340
    %358 = vst.msk [vmem:[#allocation2 + $0xc] sm:$0xf] %vm354, %v341
    %359 = vst.msk [vmem:[#allocation2 + $0x10] sm:$0xf] %vm354, %v342
    %360 = vst.msk [vmem:[#allocation2 + $0x14] sm:$0xf] %vm354, %v343
    %361 = vst.msk [vmem:[#allocation2 + $0x18] sm:$0xf] %vm354, %v344
    %362 = vst.msk [vmem:[#allocation2 + $0x1c] sm:$0xf] %vm354, %v345
    %363 = vst.msk [vmem:[#allocation2 + $0x20] sm:$0xf] %vm354, %v346
    %364 = vst.msk [vmem:[#allocation2 + $0x24] sm:$0xf] %vm354, %v347
    %365 = vst.msk [vmem:[#allocation2 + $0x28] sm:$0xf] %vm354, %v348
    %366 = vst.msk [vmem:[#allocation2 + $0x2c] sm:$0xf] %vm354, %v349
    %367 = vst.msk [vmem:[#allocation2 + $0x30] sm:$0xf] %vm354, %v350
    %368 = vst.msk [vmem:[#allocation2 + $0x34] sm:$0xf] %vm354, %v351
    %369 = vst.msk [vmem:[#allocation2 + $0x38] sm:$0xf] %vm354, %v352
    %370 = vst.msk [vmem:[#allocation2 + $0x3c] sm:$0xf] %vm354, %v353
  $region21: #{forward.15} parent=0 // pred_fallthru
    _
  %v371 = vld [vmem:[#allocation2] sm:$0xf]
  %v372 = vld [vmem:[#allocation2 + $0x4] sm:$0xf]
  %v373 = vld [vmem:[#allocation2 + $0x8] sm:$0xf]
  %v374 = vld [vmem:[#allocation2 + $0xc] sm:$0xf]
  %v375 = vld [vmem:[#allocation2 + $0x10] sm:$0xf]
  %v376 = vld [vmem:[#allocation2 + $0x14] sm:$0xf]
  %v377 = vld [vmem:[#allocation2 + $0x18] sm:$0xf]
  %v378 = vld [vmem:[#allocation2 + $0x1c] sm:$0xf]
  %v379 = vld [vmem:[#allocation2 + $0x20] sm:$0xf]
  %v380 = vld [vmem:[#allocation2 + $0x24] sm:$0xf]
  %v381 = vld [vmem:[#allocation2 + $0x28] sm:$0xf]
  %v382 = vld [vmem:[#allocation2 + $0x2c] sm:$0xf]
  %v383 = vld [vmem:[#allocation2 + $0x30] sm:$0xf]
  %v384 = vld [vmem:[#allocation2 + $0x34] sm:$0xf]
  %v385 = vld [vmem:[#allocation2 + $0x38] sm:$0xf]
  %v386 = vld [vmem:[#allocation2 + $0x3c] sm:$0xf]
  %v387 = vld [vmem:[%s2] sm:$0xff]
  %v388 = vld [vmem:[%s2 + $0x8] sm:$0xff]
  %v389 = vld [vmem:[%s2 + $0x10] sm:$0xff]
  %v390 = vld [vmem:[%s2 + $0x18] sm:$0xff]
  %v391 = vld [vmem:[%s2 + $0x20] sm:$0xff]
  %v392 = vld [vmem:[%s2 + $0x28] sm:$0xff]
  %v393 = vld [vmem:[%s2 + $0x30] sm:$0xff]
  %v394 = vld [vmem:[%s2 + $0x38] sm:$0xff]
  %v395 = vld [vmem:[%s3] sm:$0x3]
  %v397 = vperm.slane %v395, 0
  %v398 = vperm.slane %v395, 1
  %v417 = vunpack.c.l.b16 %v371
  %v418 = vunpack.c.l.b16 %v372
  %v419 = vunpack.c.l.b16 %v373
  %v420 = vunpack.c.l.b16 %v374
  %v421 = vunpack.c.l.b16 %v375
  %v422 = vunpack.c.l.b16 %v376
  %v423 = vunpack.c.l.b16 %v377
  %v424 = vunpack.c.l.b16 %v378
  %v425 = vunpack.c.l.b16 %v379
  %v426 = vunpack.c.l.b16 %v380
  %v427 = vunpack.c.l.b16 %v381
  %v428 = vunpack.c.l.b16 %v382
  %v429 = vunpack.c.l.b16 %v383
  %v430 = vunpack.c.l.b16 %v384
  %v431 = vunpack.c.l.b16 %v385
  %v432 = vunpack.c.l.b16 %v386
  %v433 = vpack.c.b16 %v418, %v417
  %v434 = vpack.c.b16 %v420, %v419
  %v435 = vpack.c.b16 %v422, %v421
  %v436 = vpack.c.b16 %v424, %v423
  %v437 = vpack.c.b16 %v426, %v425
  %v438 = vpack.c.b16 %v428, %v427
  %v439 = vpack.c.b16 %v430, %v429
  %v440 = vpack.c.b16 %v432, %v431
  %v449 = vunpack.c.l.b16 %v387
  %v450 = vunpack.c.h.b16 %v387
  %v451 = vunpack.c.l.b16 %v388
  %v452 = vunpack.c.h.b16 %v388
  %v453 = vunpack.c.l.b16 %v389
  %v454 = vunpack.c.h.b16 %v389
  %v455 = vunpack.c.l.b16 %v390
  %v456 = vunpack.c.h.b16 %v390
  %v457 = vunpack.c.l.b16 %v391
  %v458 = vunpack.c.h.b16 %v391
  %v459 = vunpack.c.l.b16 %v392
  %v460 = vunpack.c.h.b16 %v392
  %v461 = vunpack.c.l.b16 %v393
  %v462 = vunpack.c.h.b16 %v393
  %v463 = vunpack.c.l.b16 %v394
  %v464 = vunpack.c.h.b16 %v394
  %v465 = vpack.c.b16 %v451, %v449
  %v466 = vpack.c.b16 %v452, %v450
  %v467 = vpack.c.b16 %v455, %v453
  %v468 = vpack.c.b16 %v456, %v454
  %v469 = vpack.c.b16 %v459, %v457
  %v470 = vpack.c.b16 %v460, %v458
  %v471 = vpack.c.b16 %v463, %v461
  %v472 = vpack.c.b16 %v464, %v462
  %vm481 = vcmask 523264
  %v483 = vsel %vm481, %v433, 0
  %v486 = vsel %vm481, %v434, 0
  %v489 = vsel %vm481, %v435, 0
  %v492 = vsel %vm481, %v436, 0
  %v495 = vsel %vm481, %v437, 0
  %v498 = vsel %vm481, %v438, 0
  %v501 = vsel %vm481, %v439, 0
  %v504 = vsel %vm481, %v440, 0
  %506 = vmatpush.bf16.msra.mxu0 0
  %507 = vmatpush.bf16.msra.mxu0 0
  %508 = vmatpush.bf16.msra.mxu0 0
  %509 = vmatpush.bf16.msra.mxu0 0
  %510 = vmatpush.bf16.msra.mxu0 %v471
  %511 = vmatpush.bf16.msra.mxu0 %v469
  %512 = vmatpush.bf16.msra.mxu0 %v467
  %513 = vmatpush.bf16.msra.mxu0 %v465
  %514 = vmatmul.bf16.gmra.mxu0 %v483
  %v515 = vpop.f32.mrf.mxu0
  %v516 = vadd.f32 %v397, %v515
  %v517 = vpop.f32.mrf.mxu0
  %v518 = vadd.f32 %v397, %v517
  %519 = vmatmul.bf16.gmra.mxu0 %v486
  %v520 = vpop.f32.mrf.mxu0
  %v521 = vadd.f32 %v397, %v520
  %v522 = vpop.f32.mrf.mxu0
  %v523 = vadd.f32 %v397, %v522
  %524 = vmatmul.bf16.gmra.mxu0 %v489
  %v525 = vpop.f32.mrf.mxu0
  %v526 = vadd.f32 %v397, %v525
  %v527 = vpop.f32.mrf.mxu0
  %v528 = vadd.f32 %v397, %v527
  %529 = vmatmul.bf16.gmra.mxu0 %v492
  %v530 = vpop.f32.mrf.mxu0
  %v531 = vadd.f32 %v397, %v530
  %v532 = vpop.f32.mrf.mxu0
  %v533 = vadd.f32 %v397, %v532
  %534 = vmatmul.bf16.gmra.mxu0 %v495
  %v535 = vpop.f32.mrf.mxu0
  %v536 = vadd.f32 %v397, %v535
  %v537 = vpop.f32.mrf.mxu0
  %v538 = vadd.f32 %v397, %v537
  %539 = vmatmul.bf16.gmra.mxu0 %v498
  %v540 = vpop.f32.mrf.mxu0
  %v541 = vadd.f32 %v397, %v540
  %v542 = vpop.f32.mrf.mxu0
  %v543 = vadd.f32 %v397, %v542
  %544 = vmatmul.bf16.gmra.mxu0 %v501
  %v545 = vpop.f32.mrf.mxu0
  %v546 = vadd.f32 %v397, %v545
  %v547 = vpop.f32.mrf.mxu0
  %v548 = vadd.f32 %v397, %v547
  %549 = vmatmul.bf16.gmra.mxu0 %v504
  %v550 = vpop.f32.mrf.mxu0
  %v551 = vadd.f32 %v397, %v550
  %v552 = vpop.f32.mrf.mxu0
  %v553 = vadd.f32 %v397, %v552
  %554 = vdwg.mxu0
  %555 = vmatpush.bf16.msra.mxu0 0
  %556 = vmatpush.bf16.msra.mxu0 0
  %557 = vmatpush.bf16.msra.mxu0 0
  %558 = vmatpush.bf16.msra.mxu0 0
  %559 = vmatpush.bf16.msra.mxu0 %v472
  %560 = vmatpush.bf16.msra.mxu0 %v470
  %561 = vmatpush.bf16.msra.mxu0 %v468
  %562 = vmatpush.bf16.msra.mxu0 %v466
  %563 = vmatmul.bf16.gmra.mxu0 %v483
  %v564 = vpop.f32.mrf.mxu0
  %v565 = vadd.f32 %v398, %v564
  %v566 = vpop.f32.mrf.mxu0
  %v567 = vadd.f32 %v398, %v566
  %568 = vmatmul.bf16.gmra.mxu0 %v486
  %v569 = vpop.f32.mrf.mxu0
  %v570 = vadd.f32 %v398, %v569
  %v571 = vpop.f32.mrf.mxu0
  %v572 = vadd.f32 %v398, %v571
  %573 = vmatmul.bf16.gmra.mxu0 %v489
  %v574 = vpop.f32.mrf.mxu0
  %v575 = vadd.f32 %v398, %v574
  %v576 = vpop.f32.mrf.mxu0
  %v577 = vadd.f32 %v398, %v576
  %578 = vmatmul.bf16.gmra.mxu0 %v492
  %v579 = vpop.f32.mrf.mxu0
  %v580 = vadd.f32 %v398, %v579
  %v581 = vpop.f32.mrf.mxu0
  %v582 = vadd.f32 %v398, %v581
  %583 = vmatmul.bf16.gmra.mxu0 %v495
  %v584 = vpop.f32.mrf.mxu0
  %v585 = vadd.f32 %v398, %v584
  %v586 = vpop.f32.mrf.mxu0
  %v587 = vadd.f32 %v398, %v586
  %588 = vmatmul.bf16.gmra.mxu0 %v498
  %v589 = vpop.f32.mrf.mxu0
  %v590 = vadd.f32 %v398, %v589
  %v591 = vpop.f32.mrf.mxu0
  %v592 = vadd.f32 %v398, %v591
  %593 = vmatmul.bf16.gmra.mxu0 %v501
  %v594 = vpop.f32.mrf.mxu0
  %v595 = vadd.f32 %v398, %v594
  %v596 = vpop.f32.mrf.mxu0
  %v597 = vadd.f32 %v398, %v596
  %598 = vmatmul.bf16.gmra.mxu0 %v504
  %v599 = vpop.f32.mrf.mxu0
  %v600 = vadd.f32 %v398, %v599
  %v601 = vpop.f32.mrf.mxu0
  %v602 = vadd.f32 %v398, %v601
  %603 = vdwg.mxu0
  %v604 = vpack.c.bf16 %v565, %v516
  %v605 = vpack.c.bf16 %v567, %v518
  %v606 = vpack.c.bf16 %v570, %v521
  %v607 = vpack.c.bf16 %v572, %v523
  %v608 = vpack.c.bf16 %v575, %v526
  %v609 = vpack.c.bf16 %v577, %v528
  %v610 = vpack.c.bf16 %v580, %v531
  %v611 = vpack.c.bf16 %v582, %v533
  %v612 = vpack.c.bf16 %v585, %v536
  %v613 = vpack.c.bf16 %v587, %v538
  %v614 = vpack.c.bf16 %v590, %v541
  %v615 = vpack.c.bf16 %v592, %v543
  %v616 = vpack.c.bf16 %v595, %v546
  %v617 = vpack.c.bf16 %v597, %v548
  %v618 = vpack.c.bf16 %v600, %v551
  %v619 = vpack.c.bf16 %v602, %v553
  %vm620 = vcmask 1043456
  %vm621 = vcmask 523268
  %vm622 = vmor %vm621, %vm620
  %623 = vst.msk [vmem:[%s4] sm:$0xff] %vm622, %v604
  %624 = vst.msk [vmem:[%s4 + $0x8] sm:$0xff] %vm622, %v605
  %625 = vst.msk [vmem:[%s4 + $0x10] sm:$0xff] %vm622, %v606
  %626 = vst.msk [vmem:[%s4 + $0x18] sm:$0xff] %vm622, %v607
  %627 = vst.msk [vmem:[%s4 + $0x20] sm:$0xff] %vm622, %v608
  %628 = vst.msk [vmem:[%s4 + $0x28] sm:$0xff] %vm622, %v609
  %629 = vst.msk [vmem:[%s4 + $0x30] sm:$0xff] %vm622, %v610
  %630 = vst.msk [vmem:[%s4 + $0x38] sm:$0xff] %vm622, %v611
  %631 = vst.msk [vmem:[%s4 + $0x40] sm:$0xff] %vm622, %v612
  %632 = vst.msk [vmem:[%s4 + $0x48] sm:$0xff] %vm622, %v613
  %633 = vst.msk [vmem:[%s4 + $0x50] sm:$0xff] %vm622, %v614
  %634 = vst.msk [vmem:[%s4 + $0x58] sm:$0xff] %vm622, %v615
  %635 = vst.msk [vmem:[%s4 + $0x60] sm:$0xff] %vm622, %v616
  %636 = vst.msk [vmem:[%s4 + $0x68] sm:$0xff] %vm622, %v617
  %637 = vst.msk [vmem:[%s4 + $0x70] sm:$0xff] %vm622, %v618
  %638 = vst.msk [vmem:[%s4 + $0x78] sm:$0xff] %vm622, %v619
  // Predicated region
  $region22: #{forward.15} parent=0 // pred_check
    _
  $region23: #{forward.15} parent=0 // pred_check_branch
    %640 = sbr.rel (0) target = $region25
  $region24: #{forward.15} parent=0 // pred_region
    _
  $region25: #{forward.15} parent=0 // pred_fallthru
    _
  // Predicated region
  $region26: #{forward.15} parent=0 // pred_check
    _
  $region27: #{forward.15} parent=0 // pred_check_branch
    %642 = sbr.rel (0) target = $region29
  $region28: #{forward.15} parent=0 // pred_region
    _
  $region29: #{forward.15} parent=0 // pred_fallthru
    _

// kernel: forward.16
$region0: #{forward.16}
  #allocation0 [shape = 'u32[]', space=smem, size = 0x4, offset = 0x4, fixed_abs, tag = 'smem constant byte address 0x4 - core index']
  #allocation1 [shape = 'u32[72,128]{1,0:T(1,128)}', space=vmem, size = 0x9000, scoped, tag = 'internal scratch']
  #allocation2 [shape = 'f32[16,1]{1,0:T(8,128)}', space=vmem, size = 0x2000, scoped, tag = 'scratch operand']
  #allocation3 [shape = 'f32[16,1]{1,0:T(8,128)}', space=vmem, size = 0x2000, scoped, tag = 'scratch operand']
  #allocation4 [shape = 'f32[16,16]{1,0:T(8,128)}', space=vmem, size = 0x2000, scoped, tag = 'scratch operand']
  %s0 = inlined_call_operand.vmem [shape: bf16[2,12,16,16], index: 0, kind: input, shape index: {}, may-alias: {0,1,2}]
  %s1 = inlined_call_operand.vmem [shape: bf16[2,12,16,16], index: 1, kind: input, shape index: {}, may-alias: {0,1,2}]
  %s2 = inlined_call_operand.vmem [shape: bf16[2,12,16,16], index: 2, kind: input, shape index: {}, may-alias: {0,1,2}]
  %s3 = inlined_call_operand.vmem [shape: bf16[4,16,16], index: 3, kind: input, shape index: {}]
  %s4 = inlined_call_operand.vmem [shape: bf16[2,4,16,16], index: 4, kind: output, shape index: {}]
  %s5 = sld [smem:[#allocation0]]
  $region57: #{forward.16} parent=0
    _
  %s7 = ssub.s32 1, %s5
  %s8 = scalar_select 0, %s7, %s5
  loop: start=0, step=1, limit=10
  $region2: #{forward.16} parent=0 // loop_pre_header
    _
  $region3: #{forward.16} parent=0 // loop_header
    %s10 = sphi 0, %s14
    %p11 = scmp.ge.s32.totalorder %s10, 10
    %s17 = sphi 0, %s36
    %s18 = sphi 0, %s32
    %s19 = sphi 0, %s28
    %s20 = sphi 0, %s17
    %s21 = sphi 0, %s18
    %s22 = sphi 0, %s19
    %s23 = sphi 0, %s20
    %s24 = sphi 0, %s21
    %s25 = sphi 0, %s22
    %s41 = sphi 0, %s43
    %s44 = sphi 0, %s41
    %s45 = sphi 0, %s44
    %s61 = sphi 0, %s45
    %s73 = sphi 0, %s75
    %s76 = sphi 0, %s73
    %s77 = sphi 0, %s76
    %s93 = sphi 0, %s77
    %s105 = sphi 0, %s107
    %s108 = sphi 0, %s105
    %s109 = sphi 0, %s108
    %s125 = sphi 0, %s109
    %s133 = sphi 0, %s135
    %s136 = sphi 0, %s133
    %s137 = sphi 0, %s136
    %s153 = sphi 0, %s137
    %s161 = sphi 0, %s163
    %s164 = sphi 0, %s161
    %s165 = sphi 0, %s164
    %s181 = sphi 0, %s165
  $region4: #{forward.16} parent=0 // loop_header_branch
    %13 = sbr.rel (%p11) target = $region8
  $region5: #{forward.16} parent=0 // loop_body
    %s15 = ssub.s32 %s10, 1
    %s16 = ssub.s32 %s10, 2
    %s26 = sadd.s32 1, %s19
    %p27 = scmp.ge.s32.totalorder %s26, 1
    %s28 = scalar_select %p27, 0, %s26
    %s29 = sadd.s32 1, %s18
    %s30 = scalar_select %p27, %s29, %s18
    %p31 = scmp.ge.s32.totalorder %s30, 4
    %s32 = scalar_select %p31, 0, %s30
    %s33 = sadd.s32 1, %s17
    %s34 = scalar_select %p31, %s33, %s17
    %p35 = scmp.ge.s32.totalorder %s34, 2
    %s36 = scalar_select %p35, 0, %s34
    %s37 = ssub.s32 %s17, %s36
    %s38 = ssub.s32 %s18, %s32
    %s39 = sor.u32 %s37, %s38
    %p40 = scmp.eq.s32.totalorder %s39, 0
    %s42 = sadd.s32 %s41, 1
    %s43 = scalar_select %p40, %s41, %s42
    %p46 = pneg %p40
    %p47 = scmp.eq.s32.totalorder %s10, 7
    %p48 = por %p46, %p47
    %p49 = scmp.ne.s32.totalorder %s41, %s44
    %p50 = scmp.eq.s32.totalorder %s10, 0
    %p51 = por %p49, %p50
    %p52 = scmp.ne.s32.totalorder %s41, %s44
    %p53 = scmp.eq.s32.totalorder %s15, 7
    %p54 = por %p52, %p53
    %p55 = scmp.ne.s32.totalorder %s44, %s45
    %p56 = scmp.eq.s32.totalorder %s15, 0
    %p57 = por %p55, %p56
    %p58 = scmp.ne.s32.totalorder %s44, %s45
    %p59 = scmp.eq.s32.totalorder %s16, 7
    %p60 = por %p58, %p59
    %p62 = scmp.ne.s32.totalorder %s45, %s61
    %p63 = scmp.eq.s32.totalorder %s16, 0
    %p64 = por %p62, %p63
    %s65 = sadd.s32 %s18, 4
    %s66 = sadd.s32 %s32, 4
    %s67 = ssub.s32 %s17, %s36
    %s68 = ssub.s32 %s65, %s66
    %s69 = sor.u32 %s67, %s68
    %s70 = ssub.s32 %s19, %s28
    %s71 = sor.u32 %s69, %s70
    %p72 = scmp.eq.s32.totalorder %s71, 0
    %s74 = sadd.s32 %s73, 1
    %s75 = scalar_select %p72, %s73, %s74
    %p78 = pneg %p72
    %p79 = scmp.eq.s32.totalorder %s10, 7
    %p80 = por %p78, %p79
    %p81 = scmp.ne.s32.totalorder %s73, %s76
    %p82 = scmp.eq.s32.totalorder %s10, 0
    %p83 = por %p81, %p82
    %p84 = scmp.ne.s32.totalorder %s73, %s76
    %p85 = scmp.eq.s32.totalorder %s15, 7
    %p86 = por %p84, %p85
    %p87 = scmp.ne.s32.totalorder %s76, %s77
    %p88 = scmp.eq.s32.totalorder %s15, 0
    %p89 = por %p87, %p88
    %p90 = scmp.ne.s32.totalorder %s76, %s77
    %p91 = scmp.eq.s32.totalorder %s16, 7
    %p92 = por %p90, %p91
    %p94 = scmp.ne.s32.totalorder %s77, %s93
    %p95 = scmp.eq.s32.totalorder %s16, 0
    %p96 = por %p94, %p95
    %s97 = sadd.s32 %s18, 8
    %s98 = sadd.s32 %s32, 8
    %s99 = ssub.s32 %s17, %s36
    %s100 = ssub.s32 %s97, %s98
    %s101 = sor.u32 %s99, %s100
    %s102 = ssub.s32 %s19, %s28
    %s103 = sor.u32 %s101, %s102
    %p104 = scmp.eq.s32.totalorder %s103, 0
    %s106 = sadd.s32 %s105, 1
    %s107 = scalar_select %p104, %s105, %s106
    %p110 = pneg %p104
    %p111 = scmp.eq.s32.totalorder %s10, 7
    %p112 = por %p110, %p111
    %p113 = scmp.ne.s32.totalorder %s105, %s108
    %p114 = scmp.eq.s32.totalorder %s10, 0
    %p115 = por %p113, %p114
    %p116 = scmp.ne.s32.totalorder %s105, %s108
    %p117 = scmp.eq.s32.totalorder %s15, 7
    %p118 = por %p116, %p117
    %p119 = scmp.ne.s32.totalorder %s108, %s109
    %p120 = scmp.eq.s32.totalorder %s15, 0
    %p121 = por %p119, %p120
    %p122 = scmp.ne.s32.totalorder %s108, %s109
    %p123 = scmp.eq.s32.totalorder %s16, 7
    %p124 = por %p122, %p123
    %p126 = scmp.ne.s32.totalorder %s109, %s125
    %p127 = scmp.eq.s32.totalorder %s16, 0
    %p128 = por %p126, %p127
    %s129 = ssub.s32 %s18, %s32
    %s130 = ssub.s32 %s19, %s28
    %s131 = sor.u32 %s129, %s130
    %p132 = scmp.eq.s32.totalorder %s131, 0
    %s134 = sadd.s32 %s133, 1
    %s135 = scalar_select %p132, %s133, %s134
    %p138 = pneg %p132
    %p139 = scmp.eq.s32.totalorder %s10, 7
    %p140 = por %p138, %p139
    %p141 = scmp.ne.s32.totalorder %s133, %s136
    %p142 = scmp.eq.s32.totalorder %s10, 0
    %p143 = por %p141, %p142
    %p144 = scmp.ne.s32.totalorder %s133, %s136
    %p145 = scmp.eq.s32.totalorder %s15, 7
    %p146 = por %p144, %p145
    %p147 = scmp.ne.s32.totalorder %s136, %s137
    %p148 = scmp.eq.s32.totalorder %s15, 0
    %p149 = por %p147, %p148
    %p150 = scmp.ne.s32.totalorder %s136, %s137
    %p151 = scmp.eq.s32.totalorder %s16, 7
    %p152 = por %p150, %p151
    %p154 = scmp.ne.s32.totalorder %s137, %s153
    %p155 = scmp.eq.s32.totalorder %s16, 0
    %p156 = por %p154, %p155
    %s157 = ssub.s32 %s17, %s36
    %s158 = ssub.s32 %s18, %s32
    %s159 = sor.u32 %s157, %s158
    %p160 = scmp.eq.s32.totalorder %s159, 0
    %s162 = sadd.s32 %s161, 1
    %s163 = scalar_select %p160, %s161, %s162
    %p166 = pneg %p160
    %p167 = scmp.eq.s32.totalorder %s10, 7
    %p168 = por %p166, %p167
    %p169 = scmp.ne.s32.totalorder %s161, %s164
    %p170 = scmp.eq.s32.totalorder %s10, 0
    %p171 = por %p169, %p170
    %p172 = scmp.ne.s32.totalorder %s161, %s164
    %p173 = scmp.eq.s32.totalorder %s15, 7
    %p174 = por %p172, %p173
    %p175 = scmp.ne.s32.totalorder %s164, %s165
    %p176 = scmp.eq.s32.totalorder %s15, 0
    %p177 = por %p175, %p176
    %p178 = scmp.ne.s32.totalorder %s164, %s165
    %p179 = scmp.eq.s32.totalorder %s16, 7
    %p180 = por %p178, %p179
    %p182 = scmp.ne.s32.totalorder %s165, %s181
    %p183 = scmp.eq.s32.totalorder %s16, 0
    %p184 = por %p182, %p183
    %p185 = scmp.le.s32.totalorder 1, %s10
    %p186 = scmp.lt.s32.totalorder %s10, 9
    %p187 = pnand %p185, %p186
    %p188 = pneg %p187
    // Predicated region
    $region9: #{forward.16} parent=5 // pred_check
      _
    $region10: #{forward.16} parent=5 // pred_check_branch
      %190 = sbr.rel (%p187) target = $region12
    $region11: #{forward.16} parent=5 // pred_region
      %s191 = ssub.s32 %s10, 1
    $region12: #{forward.16} parent=5 // pred_fallthru
      _
    %p192 = scmp.lt.s32.totalorder %s10, 8
    // Predicated region
    $region13: #{forward.16} parent=5 // pred_check
      %p193 = pneg %p192
    $region14: #{forward.16} parent=5 // pred_check_branch
      %195 = sbr.rel (%p193) target = $region16
    $region15: #{forward.16} parent=5 // pred_region
      // Predicated region
      $region17: #{forward.16} parent=15 // pred_check
        %p196 = pneg %p51
      $region18: #{forward.16} parent=15 // pred_check_branch
        %198 = sbr.rel (%p196) target = $region20
      $region19: #{forward.16} parent=15 // pred_region
        %p199 = scmp.lt.s32.totalorder %s17, 1
        %s200 = scalar_select %p199, %s17, 1
        %p201 = scmp.lt.s32.totalorder %s18, 11
        %s202 = scalar_select %p201, %s18, 11
        %s203 = smul.addr %s202, 2
        %s204 = smul.addr %s200, 24
        %s205 = sadd.s32 %s203, %s204
        %s206 = smul.addr %s205, 4
        %s207 = scalar_lea.vmem %s0, %s206
      $region20: #{forward.16} parent=15 // pred_fallthru
        _
      // Predicated region
      $region21: #{forward.16} parent=15 // pred_check
        %p208 = pneg %p83
      $region22: #{forward.16} parent=15 // pred_check_branch
        %210 = sbr.rel (%p208) target = $region24
      $region23: #{forward.16} parent=15 // pred_region
        %s211 = sadd.s32 %s18, 4
        %s212 = smul.u32 2, %s19
        %p213 = scmp.lt.s32.totalorder %s17, 1
        %s214 = scalar_select %p213, %s17, 1
        %p215 = scmp.lt.s32.totalorder %s211, 11
        %s216 = scalar_select %p215, %s211, 11
        %p217 = scmp.lt.s32.totalorder %s212, 1
        %s218 = scalar_select %p217, %s212, 1
        %s219 = smul.addr %s216, 2
        %s220 = sadd.s32 %s218, %s219
        %s221 = smul.addr %s214, 24
        %s222 = sadd.s32 %s220, %s221
        %s223 = smul.addr %s222, 4
        %s224 = scalar_lea.vmem %s1, %s223
        %s225 = sadd.s32 %s18, 4
        %s226 = smul.u32 2, %s19
      $region24: #{forward.16} parent=15 // pred_fallthru
        _
      // Predicated region
      $region25: #{forward.16} parent=15 // pred_check
        %p227 = pneg %p115
      $region26: #{forward.16} parent=15 // pred_check_branch
        %229 = sbr.rel (%p227) target = $region28
      $region27: #{forward.16} parent=15 // pred_region
        %s230 = sadd.s32 %s18, 8
        %s231 = smul.u32 2, %s19
        %p232 = scmp.lt.s32.totalorder %s17, 1
        %s233 = scalar_select %p232, %s17, 1
        %p234 = scmp.lt.s32.totalorder %s230, 11
        %s235 = scalar_select %p234, %s230, 11
        %p236 = scmp.lt.s32.totalorder %s231, 1
        %s237 = scalar_select %p236, %s231, 1
        %s238 = smul.addr %s235, 2
        %s239 = sadd.s32 %s237, %s238
        %s240 = smul.addr %s233, 24
        %s241 = sadd.s32 %s239, %s240
        %s242 = smul.addr %s241, 4
        %s243 = scalar_lea.vmem %s2, %s242
        %s244 = sadd.s32 %s18, 8
        %s245 = smul.u32 2, %s19
      $region28: #{forward.16} parent=15 // pred_fallthru
        _
      // Predicated region
      $region29: #{forward.16} parent=15 // pred_check
        %p246 = pneg %p143
      $region30: #{forward.16} parent=15 // pred_check_branch
        %248 = sbr.rel (%p246) target = $region32
      $region31: #{forward.16} parent=15 // pred_region
        %p249 = scmp.lt.s32.totalorder %s18, 3
        %s250 = scalar_select %p249, %s18, 3
        %p251 = scmp.lt.s32.totalorder %s19, 0
        %s252 = scalar_select %p251, %s19, 0
        %s253 = smul.addr %s250, 2
        %s254 = sadd.s32 %s252, %s253
        %s255 = smul.addr %s254, 4
        %s256 = scalar_lea.vmem %s3, %s255
      $region32: #{forward.16} parent=15 // pred_fallthru
        _
    $region16: #{forward.16} parent=5 // pred_fallthru
      _
    %p257 = scmp.le.s32.totalorder 1, %s10
    %p258 = scmp.lt.s32.totalorder %s10, 9
    %p259 = pnand %p257, %p258
    %p260 = pneg %p259
    // Predicated region
    $region33: #{forward.16} parent=5 // pred_check
      _
    $region34: #{forward.16} parent=5 // pred_check_branch
      %262 = sbr.rel (%p259) target = $region36
    $region35: #{forward.16} parent=5 // pred_region
      %s263 = ssub.s32 %s10, 1
      %p264 = scmp.lt.s32.totalorder %s20, 1
      %s265 = scalar_select %p264, %s20, 1
      %p266 = scmp.lt.s32.totalorder %s21, 11
      %s267 = scalar_select %p266, %s21, 11
      %s268 = smul.addr %s267, 2
      %s269 = smul.addr %s265, 24
      %s270 = sadd.s32 %s268, %s269
      %s271 = smul.addr %s270, 4
      %s272 = scalar_lea.vmem %s0, %s271
      %p273 = pneg %p57
      %p274 = pneg %p54
      %s275 = sadd.s32 %s21, 4
      %s276 = smul.u32 2, %s22
      %p277 = scmp.lt.s32.totalorder %s20, 1
      %s278 = scalar_select %p277, %s20, 1
      %p279 = scmp.lt.s32.totalorder %s275, 11
      %s280 = scalar_select %p279, %s275, 11
      %p281 = scmp.lt.s32.totalorder %s276, 1
      %s282 = scalar_select %p281, %s276, 1
      %s283 = smul.addr %s280, 2
      %s284 = sadd.s32 %s282, %s283
      %s285 = smul.addr %s278, 24
      %s286 = sadd.s32 %s284, %s285
      %s287 = smul.addr %s286, 4
      %s288 = scalar_lea.vmem %s1, %s287
      %p289 = pneg %p89
      %p290 = pneg %p86
      %s291 = sadd.s32 %s21, 8
      %s292 = smul.u32 2, %s22
      %p293 = scmp.lt.s32.totalorder %s20, 1
      %s294 = scalar_select %p293, %s20, 1
      %p295 = scmp.lt.s32.totalorder %s291, 11
      %s296 = scalar_select %p295, %s291, 11
      %p297 = scmp.lt.s32.totalorder %s292, 1
      %s298 = scalar_select %p297, %s292, 1
      %s299 = smul.addr %s296, 2
      %s300 = sadd.s32 %s298, %s299
      %s301 = smul.addr %s294, 24
      %s302 = sadd.s32 %s300, %s301
      %s303 = smul.addr %s302, 4
      %s304 = scalar_lea.vmem %s2, %s303
      %p305 = pneg %p121
      %p306 = pneg %p118
      %p307 = scmp.lt.s32.totalorder %s21, 3
      %s308 = scalar_select %p307, %s21, 3
      %p309 = scmp.lt.s32.totalorder %s22, 0
      %s310 = scalar_select %p309, %s22, 0
      %s311 = smul.addr %s308, 2
      %s312 = sadd.s32 %s310, %s311
      %s313 = smul.addr %s312, 4
      %s314 = scalar_lea.vmem %s3, %s313
      %p315 = pneg %p149
      %p316 = pneg %p146
      %p317 = pneg %p177
      %p318 = pneg %p174
      %p319 = scmp.lt.s32.totalorder %s20, 1
      %s320 = scalar_select %p319, %s20, 1
      %p321 = scmp.lt.s32.totalorder %s21, 3
      %s322 = scalar_select %p321, %s21, 3
      %s323 = smul.addr %s322, 2
      %s324 = smul.addr %s320, 8
      %s325 = sadd.s32 %s323, %s324
      %s326 = smul.addr %s325, 4
      %s327 = scalar_lea.vmem %s4, %s326
      %p328 = scmp.lt.s32.totalorder %s20, 1
      %s329 = scalar_select %p328, %s20, 1
      %p330 = scmp.lt.s32.totalorder %s21, 11
      %s331 = scalar_select %p330, %s21, 11
      %s332 = smul.addr %s331, 2
      %s333 = smul.addr %s329, 24
      %s334 = sadd.s32 %s332, %s333
      %s335 = smul.addr %s334, 4
      %s336 = scalar_lea.vmem %s0, %s335
      %s337 = sadd.s32 %s21, 4
      %s338 = smul.u32 2, %s22
      %p339 = scmp.lt.s32.totalorder %s20, 1
      %s340 = scalar_select %p339, %s20, 1
      %p341 = scmp.lt.s32.totalorder %s337, 11
      %s342 = scalar_select %p341, %s337, 11
      %p343 = scmp.lt.s32.totalorder %s338, 1
      %s344 = scalar_select %p343, %s338, 1
      %s345 = smul.addr %s342, 2
      %s346 = sadd.s32 %s344, %s345
      %s347 = smul.addr %s340, 24
      %s348 = sadd.s32 %s346, %s347
      %s349 = smul.addr %s348, 4
      %s350 = scalar_lea.vmem %s1, %s349
      %s351 = sadd.s32 %s21, 4
      %s352 = smul.u32 2, %s22
      %s353 = sadd.s32 %s21, 8
      %s354 = smul.u32 2, %s22
      %p355 = scmp.lt.s32.totalorder %s20, 1
      %s356 = scalar_select %p355, %s20, 1
      %p357 = scmp.lt.s32.totalorder %s353, 11
      %s358 = scalar_select %p357, %s353, 11
      %p359 = scmp.lt.s32.totalorder %s354, 1
      %s360 = scalar_select %p359, %s354, 1
      %s361 = smul.addr %s358, 2
      %s362 = sadd.s32 %s360, %s361
      %s363 = smul.addr %s356, 24
      %s364 = sadd.s32 %s362, %s363
      %s365 = smul.addr %s364, 4
      %s366 = scalar_lea.vmem %s2, %s365
      %s367 = sadd.s32 %s21, 8
      %s368 = smul.u32 2, %s22
      %p369 = scmp.lt.s32.totalorder %s21, 3
      %s370 = scalar_select %p369, %s21, 3
      %p371 = scmp.lt.s32.totalorder %s22, 0
      %s372 = scalar_select %p371, %s22, 0
      %s373 = smul.addr %s370, 2
      %s374 = sadd.s32 %s372, %s373
      %s375 = smul.addr %s374, 4
      %s376 = scalar_lea.vmem %s3, %s375
      %p377 = scmp.lt.s32.totalorder %s20, 1
      %s378 = scalar_select %p377, %s20, 1
      %p379 = scmp.lt.s32.totalorder %s21, 3
      %s380 = scalar_select %p379, %s21, 3
      %s381 = smul.addr %s380, 2
      %s382 = smul.addr %s378, 8
      %s383 = sadd.s32 %s381, %s382
      %s384 = smul.addr %s383, 4
      %s385 = scalar_lea.vmem %s4, %s384
      %p387 = scmp.eq.s32.totalorder %s22, 0
      // Predicated region
      $region37: #{forward.16} parent=35 // pred_check
        %p388 = pneg %p387
      $region38: #{forward.16} parent=35 // pred_check_branch
        %390 = sbr.rel (%p388) target = $region40
      $region39: #{forward.16} parent=35 // pred_region
        %vm391 = vcmask 7168
        %392 = vst.msk [vmem:[#allocation2] sm:$0xff] %vm391, -inf
        %393 = vst.msk [vmem:[#allocation2 + $0x8] sm:$0xff] %vm391, -inf
        %394 = vst.msk [vmem:[#allocation3] sm:$0xff] %vm391, 0.0
        %395 = vst.msk [vmem:[#allocation3 + $0x8] sm:$0xff] %vm391, 0.0
        %vm396 = vcmask 130048
        %397 = vst.msk [vmem:[#allocation4] sm:$0xff] %vm396, 0.0
        %398 = vst.msk [vmem:[#allocation4 + $0x8] sm:$0xff] %vm396, 0.0
      $region40: #{forward.16} parent=35 // pred_fallthru
        _
      %v399 = vld [vmem:[%s336] sm:$0xf]
      %v400 = vld [vmem:[%s336 + $0x4] sm:$0xf]
      %v401 = vld [vmem:[%s350] sm:$0xf]
      %v402 = vld [vmem:[%s350 + $0x4] sm:$0xf]
      %v403 = vld [vmem:[%s366] sm:$0xf]
      %v404 = vld [vmem:[%s366 + $0x4] sm:$0xf]
      %v405 = vld [vmem:[%s376] sm:$0xf]
      %v406 = vld [vmem:[%s376 + $0x4] sm:$0xf]
      %v407 = vunpack.c.l.bf16 %v405
      %v408 = vunpack.c.l.bf16 %v406
      %v411 = vunpack.c.l.b16 %v399
      %v412 = vunpack.c.l.b16 %v400
      %v413 = vpack.c.b16 %v412, %v411
      %v416 = vunpack.c.l.b16 %v401
      %v417 = vunpack.c.l.b16 %v402
      %v418 = vpack.c.b16 %v417, %v416
      %vm419 = vcmask 130048
      %v421 = vsel %vm419, %v413, 0
      %v424 = vsel %vm419, %v418, 0
      %426 = vmatpush.bf16.xpose.msra.mxu0 0
      %427 = vmatpush.bf16.xpose.msra.mxu0 0
      %428 = vmatpush.bf16.xpose.msra.mxu0 0
      %429 = vmatpush.bf16.xpose.msra.mxu0 0
      %430 = vmatpush.bf16.xpose.msra.mxu0 0
      %431 = vmatpush.bf16.xpose.msra.mxu0 0
      %432 = vmatpush.bf16.xpose.msra.mxu0 0
      %433 = vmatpush.bf16.xpose.msra.mxu0 %v424
      %434 = vmatmul.bf16.gmra.mxu0 %v421
      %v435 = vpop.f32.mrf.mxu0
      %v436 = vadd.f32 %v407, %v435
      %v437 = vpop.f32.mrf.mxu0
      %v438 = vadd.f32 %v408, %v437
      %439 = vdwg.mxu0
      %v440 = vld [vmem:[#allocation2] sm:$0xff]
      %v441 = vld [vmem:[#allocation2 + $0x8] sm:$0xff]
      %v442 = vsel %vm419, %v436, -inf
      %443 = vmax.xlane.f32.xlu0 %v442
      %v444 = vpop.xlane.xlu0 %443
      %v445 = vsel %vm419, %v438, -inf
      %446 = vmax.xlane.f32.xlu0 %v445
      %v447 = vpop.xlane.xlu0 %446
      %v448 = vmax.f32 %v440, %v444
      %v449 = vmax.f32 %v441, %v447
      %v450 = vsub.f32 %v440, %v448
      %v451 = vsub.f32 %v441, %v449
      %v452 = vmul.f32 %v450, 1.442695
      %v453 = vpow.pop %v452
      %v454 = vmul.f32 %v451, 1.442695
      %v455 = vpow.pop %v454
      %457 = vset.pattern.permute.xlu0 0
      %458 = vperm.xlu0 %457, %v448
      %v459 = vpop.permute.xlu0 %458
      %462 = vset.pattern.permute.xlu0 0
      %463 = vperm.xlu0 %462, %v449
      %v464 = vpop.permute.xlu0 %463
      %v466 = vsub.f32 %v436, %v459
      %v467 = vsub.f32 %v438, %v464
      %v468 = vmul.f32 %v466, 1.442695
      %v469 = vpow.pop %v468
      %v470 = vmul.f32 %v467, 1.442695
      %v471 = vpow.pop %v470
      %v472 = vld [vmem:[#allocation3] sm:$0xff]
      %v473 = vld [vmem:[#allocation3 + $0x8] sm:$0xff]
      %v474 = vmul.f32 %v453, %v472
      %v475 = vmul.f32 %v455, %v473
      %v476 = vsel %vm419, %v469, 0.0
      %477 = vadd.xlane.f32.xlu0 %v476
      %v478 = vpop.xlane.xlu0 %477
      %v479 = vsel %vm419, %v471, 0.0
      %480 = vadd.xlane.f32.xlu0 %v479
      %v481 = vpop.xlane.xlu0 %480
      %v482 = vadd.f32 %v474, %v478
      %v483 = vadd.f32 %v475, %v481
      %vm484 = vcmask 7168
      %485 = vst.msk [vmem:[#allocation3] sm:$0xff] %vm484, %v482
      %486 = vst.msk [vmem:[#allocation3 + $0x8] sm:$0xff] %vm484, %v483
      %v487 = vld [vmem:[#allocation4] sm:$0xff]
      %v488 = vld [vmem:[#allocation4 + $0x8] sm:$0xff]
      %490 = vset.pattern.permute.xlu0 0
      %491 = vperm.xlu0 %490, %v453
      %v492 = vpop.permute.xlu0 %491
      %495 = vset.pattern.permute.xlu0 0
      %496 = vperm.xlu0 %495, %v455
      %v497 = vpop.permute.xlu0 %496
      %v499 = vmul.f32 %v492, %v487
      %v500 = vmul.f32 %v497, %v488
      %v501 = vpack.c.bf16 %v471, %v469
      %v504 = vunpack.c.l.b16 %v403
      %v505 = vunpack.c.l.b16 %v404
      %v506 = vpack.c.b16 %v505, %v504
      %v509 = vsel %vm419, %v501, 0
      %511 = vmatpush.bf16.msra.mxu0 0
      %512 = vmatpush.bf16.msra.mxu0 0
      %513 = vmatpush.bf16.msra.mxu0 0
      %514 = vmatpush.bf16.msra.mxu0 0
      %515 = vmatpush.bf16.msra.mxu0 0
      %516 = vmatpush.bf16.msra.mxu0 0
      %517 = vmatpush.bf16.msra.mxu0 0
      %518 = vmatpush.bf16.msra.mxu0 %v506
      %519 = vmatmul.bf16.gmra.mxu0 %v509
      %v520 = vpop.f32.mrf.mxu0
      %v521 = vadd.f32 0.0, %v520
      %v522 = vpop.f32.mrf.mxu0
      %v523 = vadd.f32 0.0, %v522
      %524 = vdwg.mxu0
      %v525 = vadd.f32 %v499, %v521
      %v526 = vadd.f32 %v500, %v523
      %527 = vst.msk [vmem:[#allocation4] sm:$0xff] %vm419, %v525
      %528 = vst.msk [vmem:[#allocation4 + $0x8] sm:$0xff] %vm419, %v526
      %529 = vst.msk [vmem:[#allocation2] sm:$0xff] %vm484, %v448
      %530 = vst.msk [vmem:[#allocation2 + $0x8] sm:$0xff] %vm484, %v449
      // Predicated region
      $region41: #{forward.16} parent=35 // pred_check
        %p531 = pneg %p387
      $region42: #{forward.16} parent=35 // pred_check_branch
        %533 = sbr.rel (%p531) target = $region44
      $region43: #{forward.16} parent=35 // pred_region
        %v534 = vld [vmem:[#allocation4] sm:$0xff]
        %v535 = vld [vmem:[#allocation4 + $0x8] sm:$0xff]
        %v536 = vld [vmem:[#allocation3] sm:$0xff]
        %v537 = vld [vmem:[#allocation3 + $0x8] sm:$0xff]
        %v538 = vrcp.pop %v536
        %v539 = vrcp.pop %v537
        %541 = vset.pattern.permute.xlu0 0
        %542 = vperm.xlu0 %541, %v538
        %v543 = vpop.permute.xlu0 %542
        %546 = vset.pattern.permute.xlu0 0
        %547 = vperm.xlu0 %546, %v539
        %v548 = vpop.permute.xlu0 %547
        %v550 = vmul.f32 %v534, %v543
        %v551 = vmul.f32 %v535, %v548
        %v552 = vpack.c.bf16 %v550, %v550
        %v553 = vpack.c.bf16 %v551, %v551
        %vm554 = vcmask 125952
        %555 = vst.msk [vmem:[%s385] sm:$0xf] %vm554, %v552
        %556 = vst.msk [vmem:[%s385 + $0x4] sm:$0xf] %vm554, %v553
      $region44: #{forward.16} parent=35 // pred_fallthru
        _
      %p557 = scmp.lt.s32.totalorder %s20, 1
      %s558 = scalar_select %p557, %s20, 1
      %p559 = scmp.lt.s32.totalorder %s21, 3
      %s560 = scalar_select %p559, %s21, 3
      %s561 = smul.addr %s560, 2
      %s562 = smul.addr %s558, 8
      %s563 = sadd.s32 %s561, %s562
      %s564 = smul.addr %s563, 4
      %s565 = scalar_lea.vmem %s4, %s564
      // Predicated region
      $region45: #{forward.16} parent=35 // pred_check
        %p566 = pneg %p174
      $region46: #{forward.16} parent=35 // pred_check_branch
        %568 = sbr.rel (%p566) target = $region48
      $region47: #{forward.16} parent=35 // pred_region
        _
      $region48: #{forward.16} parent=35 // pred_fallthru
        _
    $region36: #{forward.16} parent=5 // pred_fallthru
      _
    %p569 = scmp.le.s32.totalorder 2, %s10
    // Predicated region
    $region49: #{forward.16} parent=5 // pred_check
      %p570 = pneg %p569
    $region50: #{forward.16} parent=5 // pred_check_branch
      %572 = sbr.rel (%p570) target = $region52
    $region51: #{forward.16} parent=5 // pred_region
      %s573 = ssub.s32 %s10, 2
      // Predicated region
      $region53: #{forward.16} parent=51 // pred_check
        %p574 = pneg %p180
      $region54: #{forward.16} parent=51 // pred_check_branch
        %576 = sbr.rel (%p574) target = $region56
      $region55: #{forward.16} parent=51 // pred_region
        %p577 = scmp.lt.s32.totalorder %s23, 1
        %s578 = scalar_select %p577, %s23, 1
        %p579 = scmp.lt.s32.totalorder %s24, 3
        %s580 = scalar_select %p579, %s24, 3
        %s581 = smul.addr %s580, 2
        %s582 = smul.addr %s578, 8
        %s583 = sadd.s32 %s581, %s582
        %s584 = smul.addr %s583, 4
        %s585 = scalar_lea.vmem %s4, %s584
      $region56: #{forward.16} parent=51 // pred_fallthru
        _
    $region52: #{forward.16} parent=5 // pred_fallthru
      _
  $region6: #{forward.16} parent=0 // loop_footer
    %s14 = sadd.s32 1, %s10
  $region7: #{forward.16} parent=0 // loop_footer_branch
    %9 = sbr.rel target = $region3
  $region8: #{forward.16} parent=0 // loop_exit
    _

// kernel: forward.17
$region0: #{forward.17}
  #allocation0 [shape = 'u32[]', space=smem, size = 0x4, offset = 0x4, fixed_abs, tag = 'smem constant byte address 0x4 - core index']
  #allocation1 [shape = 'u32[72,128]{1,0:T(1,128)}', space=vmem, size = 0x9000, scoped, tag = 'internal scratch']
  #allocation2 [shape = 'f32[128,64]{1,0:T(8,128)}', space=vmem, size = 0x10000, scoped, tag = 'scratch operand']
  %s0 = inlined_call_operand.vmem [shape: bf16[128,64], index: 0, kind: input, shape index: {}]
  %s1 = inlined_call_operand.vmem [shape: bf16[64,64], index: 1, kind: input, shape index: {}]
  %s2 = inlined_call_operand.vmem [shape: f32[128,64], index: 2, kind: input, shape index: {}]
  %s3 = inlined_call_operand.vmem [shape: f32[128,64], index: 3, kind: output, shape index: {}]
  %s4 = sld [smem:[#allocation0]]
  $region30: #{forward.17} parent=0
    _
  %s6 = ssub.s32 1, %s4
  %s7 = scalar_select 0, %s6, %s4
  // Predicated region
  $region2: #{forward.17} parent=0 // pred_check
    _
  $region3: #{forward.17} parent=0 // pred_check_branch
    %9 = sbr.rel (0) target = $region5
  $region4: #{forward.17} parent=0 // pred_region
    _
  $region5: #{forward.17} parent=0 // pred_fallthru
    _
  // Predicated region
  $region6: #{forward.17} parent=0 // pred_check
    _
  $region7: #{forward.17} parent=0 // pred_check_branch
    %11 = sbr.rel (0) target = $region9
  $region8: #{forward.17} parent=0 // pred_region
    _
  $region9: #{forward.17} parent=0 // pred_fallthru
    _
  // Predicated region
  $region10: #{forward.17} parent=0 // pred_check
    _
  $region11: #{forward.17} parent=0 // pred_check_branch
    %13 = sbr.rel (0) target = $region13
  $region12: #{forward.17} parent=0 // pred_region
    _
  $region13: #{forward.17} parent=0 // pred_fallthru
    _
  %p15 = scmp.eq.s32.totalorder 0, 0
  // Predicated region
  $region14: #{forward.17} parent=0 // pred_check
    %p16 = pneg %p15
  $region15: #{forward.17} parent=0 // pred_check_branch
    %18 = sbr.rel (%p16) target = $region17
  $region16: #{forward.17} parent=0 // pred_region
    %vm19 = vcmask 523264
    %20 = vst.msk [vmem:[#allocation2] sm:$0xff] %vm19, 0.0
    %21 = vst.msk [vmem:[#allocation2 + $0x8] sm:$0xff] %vm19, 0.0
    %22 = vst.msk [vmem:[#allocation2 + $0x10] sm:$0xff] %vm19, 0.0
    %23 = vst.msk [vmem:[#allocation2 + $0x18] sm:$0xff] %vm19, 0.0
    %24 = vst.msk [vmem:[#allocation2 + $0x20] sm:$0xff] %vm19, 0.0
    %25 = vst.msk [vmem:[#allocation2 + $0x28] sm:$0xff] %vm19, 0.0
    %26 = vst.msk [vmem:[#allocation2 + $0x30] sm:$0xff] %vm19, 0.0
    %27 = vst.msk [vmem:[#allocation2 + $0x38] sm:$0xff] %vm19, 0.0
    %28 = vst.msk [vmem:[#allocation2 + $0x40] sm:$0xff] %vm19, 0.0
    %29 = vst.msk [vmem:[#allocation2 + $0x48] sm:$0xff] %vm19, 0.0
    %30 = vst.msk [vmem:[#allocation2 + $0x50] sm:$0xff] %vm19, 0.0
    %31 = vst.msk [vmem:[#allocation2 + $0x58] sm:$0xff] %vm19, 0.0
    %32 = vst.msk [vmem:[#allocation2 + $0x60] sm:$0xff] %vm19, 0.0
    %33 = vst.msk [vmem:[#allocation2 + $0x68] sm:$0xff] %vm19, 0.0
    %34 = vst.msk [vmem:[#allocation2 + $0x70] sm:$0xff] %vm19, 0.0
    %35 = vst.msk [vmem:[#allocation2 + $0x78] sm:$0xff] %vm19, 0.0
  $region17: #{forward.17} parent=0 // pred_fallthru
    _
  %v36 = vld [vmem:[#allocation2] sm:$0xff]
  %v37 = vld [vmem:[#allocation2 + $0x8] sm:$0xff]
  %v38 = vld [vmem:[#allocation2 + $0x10] sm:$0xff]
  %v39 = vld [vmem:[#allocation2 + $0x18] sm:$0xff]
  %v40 = vld [vmem:[#allocation2 + $0x20] sm:$0xff]
  %v41 = vld [vmem:[#allocation2 + $0x28] sm:$0xff]
  %v42 = vld [vmem:[#allocation2 + $0x30] sm:$0xff]
  %v43 = vld [vmem:[#allocation2 + $0x38] sm:$0xff]
  %v44 = vld [vmem:[#allocation2 + $0x40] sm:$0xff]
  %v45 = vld [vmem:[#allocation2 + $0x48] sm:$0xff]
  %v46 = vld [vmem:[#allocation2 + $0x50] sm:$0xff]
  %v47 = vld [vmem:[#allocation2 + $0x58] sm:$0xff]
  %v48 = vld [vmem:[#allocation2 + $0x60] sm:$0xff]
  %v49 = vld [vmem:[#allocation2 + $0x68] sm:$0xff]
  %v50 = vld [vmem:[#allocation2 + $0x70] sm:$0xff]
  %v51 = vld [vmem:[#allocation2 + $0x78] sm:$0xff]
  %v52 = vld [vmem:[%s0] sm:$0xf]
  %v53 = vld [vmem:[%s0 + $0x4] sm:$0xf]
  %v54 = vld [vmem:[%s0 + $0x8] sm:$0xf]
  %v55 = vld [vmem:[%s0 + $0xc] sm:$0xf]
  %v56 = vld [vmem:[%s0 + $0x10] sm:$0xf]
  %v57 = vld [vmem:[%s0 + $0x14] sm:$0xf]
  %v58 = vld [vmem:[%s0 + $0x18] sm:$0xf]
  %v59 = vld [vmem:[%s0 + $0x1c] sm:$0xf]
  %v60 = vld [vmem:[%s0 + $0x20] sm:$0xf]
  %v61 = vld [vmem:[%s0 + $0x24] sm:$0xf]
  %v62 = vld [vmem:[%s0 + $0x28] sm:$0xf]
  %v63 = vld [vmem:[%s0 + $0x2c] sm:$0xf]
  %v64 = vld [vmem:[%s0 + $0x30] sm:$0xf]
  %v65 = vld [vmem:[%s0 + $0x34] sm:$0xf]
  %v66 = vld [vmem:[%s0 + $0x38] sm:$0xf]
  %v67 = vld [vmem:[%s0 + $0x3c] sm:$0xf]
  %v68 = vld [vmem:[%s1] sm:$0xf]
  %v69 = vld [vmem:[%s1 + $0x4] sm:$0xf]
  %v70 = vld [vmem:[%s1 + $0x8] sm:$0xf]
  %v71 = vld [vmem:[%s1 + $0xc] sm:$0xf]
  %v72 = vld [vmem:[%s1 + $0x10] sm:$0xf]
  %v73 = vld [vmem:[%s1 + $0x14] sm:$0xf]
  %v74 = vld [vmem:[%s1 + $0x18] sm:$0xf]
  %v75 = vld [vmem:[%s1 + $0x1c] sm:$0xf]
  %v92 = vunpack.c.l.b16 %v52
  %v93 = vunpack.c.l.b16 %v53
  %v94 = vunpack.c.l.b16 %v54
  %v95 = vunpack.c.l.b16 %v55
  %v96 = vunpack.c.l.b16 %v56
  %v97 = vunpack.c.l.b16 %v57
  %v98 = vunpack.c.l.b16 %v58
  %v99 = vunpack.c.l.b16 %v59
  %v100 = vunpack.c.l.b16 %v60
  %v101 = vunpack.c.l.b16 %v61
  %v102 = vunpack.c.l.b16 %v62
  %v103 = vunpack.c.l.b16 %v63
  %v104 = vunpack.c.l.b16 %v64
  %v105 = vunpack.c.l.b16 %v65
  %v106 = vunpack.c.l.b16 %v66
  %v107 = vunpack.c.l.b16 %v67
  %v108 = vpack.c.b16 %v93, %v92
  %v109 = vpack.c.b16 %v95, %v94
  %v110 = vpack.c.b16 %v97, %v96
  %v111 = vpack.c.b16 %v99, %v98
  %v112 = vpack.c.b16 %v101, %v100
  %v113 = vpack.c.b16 %v103, %v102
  %v114 = vpack.c.b16 %v105, %v104
  %v115 = vpack.c.b16 %v107, %v106
  %v124 = vunpack.c.l.b16 %v68
  %v125 = vunpack.c.l.b16 %v69
  %v126 = vunpack.c.l.b16 %v70
  %v127 = vunpack.c.l.b16 %v71
  %v128 = vunpack.c.l.b16 %v72
  %v129 = vunpack.c.l.b16 %v73
  %v130 = vunpack.c.l.b16 %v74
  %v131 = vunpack.c.l.b16 %v75
  %v132 = vpack.c.b16 %v125, %v124
  %v133 = vpack.c.b16 %v127, %v126
  %v134 = vpack.c.b16 %v129, %v128
  %v135 = vpack.c.b16 %v131, %v130
  %vm140 = vcmask 523264
  %v142 = vsel %vm140, %v108, 0
  %v145 = vsel %vm140, %v109, 0
  %v148 = vsel %vm140, %v110, 0
  %v151 = vsel %vm140, %v111, 0
  %v154 = vsel %vm140, %v112, 0
  %v157 = vsel %vm140, %v113, 0
  %v160 = vsel %vm140, %v114, 0
  %v163 = vsel %vm140, %v115, 0
  %165 = vmatpush.bf16.msra.mxu0 0
  %166 = vmatpush.bf16.msra.mxu0 0
  %167 = vmatpush.bf16.msra.mxu0 0
  %168 = vmatpush.bf16.msra.mxu0 0
  %169 = vmatpush.bf16.msra.mxu0 %v135
  %170 = vmatpush.bf16.msra.mxu0 %v134
  %171 = vmatpush.bf16.msra.mxu0 %v133
  %172 = vmatpush.bf16.msra.mxu0 %v132
  %173 = vmatmul.bf16.gmra.mxu0 %v142
  %v174 = vpop.f32.mrf.mxu0
  %v175 = vadd.f32 0.0, %v174
  %v176 = vpop.f32.mrf.mxu0
  %v177 = vadd.f32 0.0, %v176
  %178 = vmatmul.bf16.gmra.mxu0 %v145
  %v179 = vpop.f32.mrf.mxu0
  %v180 = vadd.f32 0.0, %v179
  %v181 = vpop.f32.mrf.mxu0
  %v182 = vadd.f32 0.0, %v181
  %183 = vmatmul.bf16.gmra.mxu0 %v148
  %v184 = vpop.f32.mrf.mxu0
  %v185 = vadd.f32 0.0, %v184
  %v186 = vpop.f32.mrf.mxu0
  %v187 = vadd.f32 0.0, %v186
  %188 = vmatmul.bf16.gmra.mxu0 %v151
  %v189 = vpop.f32.mrf.mxu0
  %v190 = vadd.f32 0.0, %v189
  %v191 = vpop.f32.mrf.mxu0
  %v192 = vadd.f32 0.0, %v191
  %193 = vmatmul.bf16.gmra.mxu0 %v154
  %v194 = vpop.f32.mrf.mxu0
  %v195 = vadd.f32 0.0, %v194
  %v196 = vpop.f32.mrf.mxu0
  %v197 = vadd.f32 0.0, %v196
  %198 = vmatmul.bf16.gmra.mxu0 %v157
  %v199 = vpop.f32.mrf.mxu0
  %v200 = vadd.f32 0.0, %v199
  %v201 = vpop.f32.mrf.mxu0
  %v202 = vadd.f32 0.0, %v201
  %203 = vmatmul.bf16.gmra.mxu0 %v160
  %v204 = vpop.f32.mrf.mxu0
  %v205 = vadd.f32 0.0, %v204
  %v206 = vpop.f32.mrf.mxu0
  %v207 = vadd.f32 0.0, %v206
  %208 = vmatmul.bf16.gmra.mxu0 %v163
  %v209 = vpop.f32.mrf.mxu0
  %v210 = vadd.f32 0.0, %v209
  %v211 = vpop.f32.mrf.mxu0
  %v212 = vadd.f32 0.0, %v211
  %213 = vdwg.mxu0
  %v214 = vadd.f32 %v36, %v175
  %v215 = vadd.f32 %v37, %v177
  %v216 = vadd.f32 %v38, %v180
  %v217 = vadd.f32 %v39, %v182
  %v218 = vadd.f32 %v40, %v185
  %v219 = vadd.f32 %v41, %v187
  %v220 = vadd.f32 %v42, %v190
  %v221 = vadd.f32 %v43, %v192
  %v222 = vadd.f32 %v44, %v195
  %v223 = vadd.f32 %v45, %v197
  %v224 = vadd.f32 %v46, %v200
  %v225 = vadd.f32 %v47, %v202
  %v226 = vadd.f32 %v48, %v205
  %v227 = vadd.f32 %v49, %v207
  %v228 = vadd.f32 %v50, %v210
  %v229 = vadd.f32 %v51, %v212
  %230 = vst.msk [vmem:[#allocation2] sm:$0xff] %vm140, %v214
  %231 = vst.msk [vmem:[#allocation2 + $0x8] sm:$0xff] %vm140, %v215
  %232 = vst.msk [vmem:[#allocation2 + $0x10] sm:$0xff] %vm140, %v216
  %233 = vst.msk [vmem:[#allocation2 + $0x18] sm:$0xff] %vm140, %v217
  %234 = vst.msk [vmem:[#allocation2 + $0x20] sm:$0xff] %vm140, %v218
  %235 = vst.msk [vmem:[#allocation2 + $0x28] sm:$0xff] %vm140, %v219
  %236 = vst.msk [vmem:[#allocation2 + $0x30] sm:$0xff] %vm140, %v220
  %237 = vst.msk [vmem:[#allocation2 + $0x38] sm:$0xff] %vm140, %v221
  %238 = vst.msk [vmem:[#allocation2 + $0x40] sm:$0xff] %vm140, %v222
  %239 = vst.msk [vmem:[#allocation2 + $0x48] sm:$0xff] %vm140, %v223
  %240 = vst.msk [vmem:[#allocation2 + $0x50] sm:$0xff] %vm140, %v224
  %241 = vst.msk [vmem:[#allocation2 + $0x58] sm:$0xff] %vm140, %v225
  %242 = vst.msk [vmem:[#allocation2 + $0x60] sm:$0xff] %vm140, %v226
  %243 = vst.msk [vmem:[#allocation2 + $0x68] sm:$0xff] %vm140, %v227
  %244 = vst.msk [vmem:[#allocation2 + $0x70] sm:$0xff] %vm140, %v228
  %245 = vst.msk [vmem:[#allocation2 + $0x78] sm:$0xff] %vm140, %v229
  // Predicated region
  $region18: #{forward.17} parent=0 // pred_check
    %p246 = pneg %p15
  $region19: #{forward.17} parent=0 // pred_check_branch
    %248 = sbr.rel (%p246) target = $region21
  $region20: #{forward.17} parent=0 // pred_region
    %v249 = vld [vmem:[#allocation2] sm:$0xff]
    %v250 = vld [vmem:[#allocation2 + $0x8] sm:$0xff]
    %v251 = vld [vmem:[#allocation2 + $0x10] sm:$0xff]
    %v252 = vld [vmem:[#allocation2 + $0x18] sm:$0xff]
    %v253 = vld [vmem:[#allocation2 + $0x20] sm:$0xff]
    %v254 = vld [vmem:[#allocation2 + $0x28] sm:$0xff]
    %v255 = vld [vmem:[#allocation2 + $0x30] sm:$0xff]
    %v256 = vld [vmem:[#allocation2 + $0x38] sm:$0xff]
    %v257 = vld [vmem:[#allocation2 + $0x40] sm:$0xff]
    %v258 = vld [vmem:[#allocation2 + $0x48] sm:$0xff]
    %v259 = vld [vmem:[#allocation2 + $0x50] sm:$0xff]
    %v260 = vld [vmem:[#allocation2 + $0x58] sm:$0xff]
    %v261 = vld [vmem:[#allocation2 + $0x60] sm:$0xff]
    %v262 = vld [vmem:[#allocation2 + $0x68] sm:$0xff]
    %v263 = vld [vmem:[#allocation2 + $0x70] sm:$0xff]
    %v264 = vld [vmem:[#allocation2 + $0x78] sm:$0xff]
    %v265 = vld [vmem:[%s2] sm:$0xff]
    %v266 = vld [vmem:[%s2 + $0x8] sm:$0xff]
    %v267 = vld [vmem:[%s2 + $0x10] sm:$0xff]
    %v268 = vld [vmem:[%s2 + $0x18] sm:$0xff]
    %v269 = vld [vmem:[%s2 + $0x20] sm:$0xff]
    %v270 = vld [vmem:[%s2 + $0x28] sm:$0xff]
    %v271 = vld [vmem:[%s2 + $0x30] sm:$0xff]
    %v272 = vld [vmem:[%s2 + $0x38] sm:$0xff]
    %v273 = vld [vmem:[%s2 + $0x40] sm:$0xff]
    %v274 = vld [vmem:[%s2 + $0x48] sm:$0xff]
    %v275 = vld [vmem:[%s2 + $0x50] sm:$0xff]
    %v276 = vld [vmem:[%s2 + $0x58] sm:$0xff]
    %v277 = vld [vmem:[%s2 + $0x60] sm:$0xff]
    %v278 = vld [vmem:[%s2 + $0x68] sm:$0xff]
    %v279 = vld [vmem:[%s2 + $0x70] sm:$0xff]
    %v280 = vld [vmem:[%s2 + $0x78] sm:$0xff]
    %v281 = vadd.f32 %v249, %v265
    %v282 = vadd.f32 %v250, %v266
    %v283 = vadd.f32 %v251, %v267
    %v284 = vadd.f32 %v252, %v268
    %v285 = vadd.f32 %v253, %v269
    %v286 = vadd.f32 %v254, %v270
    %v287 = vadd.f32 %v255, %v271
    %v288 = vadd.f32 %v256, %v272
    %v289 = vadd.f32 %v257, %v273
    %v290 = vadd.f32 %v258, %v274
    %v291 = vadd.f32 %v259, %v275
    %v292 = vadd.f32 %v260, %v276
    %v293 = vadd.f32 %v261, %v277
    %v294 = vadd.f32 %v262, %v278
    %v295 = vadd.f32 %v263, %v279
    %v296 = vadd.f32 %v264, %v280
    %297 = vst.msk [vmem:[%s3] sm:$0xff] %vm140, %v281
    %298 = vst.msk [vmem:[%s3 + $0x8] sm:$0xff] %vm140, %v282
    %299 = vst.msk [vmem:[%s3 + $0x10] sm:$0xff] %vm140, %v283
    %300 = vst.msk [vmem:[%s3 + $0x18] sm:$0xff] %vm140, %v284
    %301 = vst.msk [vmem:[%s3 + $0x20] sm:$0xff] %vm140, %v285
    %302 = vst.msk [vmem:[%s3 + $0x28] sm:$0xff] %vm140, %v286
    %303 = vst.msk [vmem:[%s3 + $0x30] sm:$0xff] %vm140, %v287
    %304 = vst.msk [vmem:[%s3 + $0x38] sm:$0xff] %vm140, %v288
    %305 = vst.msk [vmem:[%s3 + $0x40] sm:$0xff] %vm140, %v289
    %306 = vst.msk [vmem:[%s3 + $0x48] sm:$0xff] %vm140, %v290
    %307 = vst.msk [vmem:[%s3 + $0x50] sm:$0xff] %vm140, %v291
    %308 = vst.msk [vmem:[%s3 + $0x58] sm:$0xff] %vm140, %v292
    %309 = vst.msk [vmem:[%s3 + $0x60] sm:$0xff] %vm140, %v293
    %310 = vst.msk [vmem:[%s3 + $0x68] sm:$0xff] %vm140, %v294
    %311 = vst.msk [vmem:[%s3 + $0x70] sm:$0xff] %vm140, %v295
    %312 = vst.msk [vmem:[%s3 + $0x78] sm:$0xff] %vm140, %v296
  $region21: #{forward.17} parent=0 // pred_fallthru
    _
  // Predicated region
  $region22: #{forward.17} parent=0 // pred_check
    _
  $region23: #{forward.17} parent=0 // pred_check_branch
    %314 = sbr.rel (0) target = $region25
  $region24: #{forward.17} parent=0 // pred_region
    _
  $region25: #{forward.17} parent=0 // pred_fallthru
    _
  // Predicated region
  $region26: #{forward.17} parent=0 // pred_check
    _
  $region27: #{forward.17} parent=0 // pred_check_branch
    %316 = sbr.rel (0) target = $region29
  $region28: #{forward.17} parent=0 // pred_region
    _
  $region29: #{forward.17} parent=0 // pred_fallthru
    _

// kernel: forward.18
$region0: #{forward.18}
  #allocation0 [shape = 'u32[]', space=smem, size = 0x4, offset = 0x4, fixed_abs, tag = 'smem constant byte address 0x4 - core index']
  #allocation1 [shape = 'u32[72,128]{1,0:T(1,128)}', space=vmem, size = 0x9000, scoped, tag = 'internal scratch']
  %s0 = inlined_call_operand.vmem [shape: f32[128,64], index: 0, kind: input, shape index: {}]
  %s1 = inlined_call_operand.vmem [shape: f32[1,64], index: 1, kind: input, shape index: {}]
  %s2 = inlined_call_operand.vmem [shape: bf16[64,128], index: 2, kind: input, shape index: {}]
  %s3 = inlined_call_operand.vmem [shape: f32[1,128], index: 3, kind: input, shape index: {}]
  %s4 = inlined_call_operand.vmem [shape: bf16[128,64], index: 4, kind: output, shape index: {}]
  %s5 = sld [smem:[#allocation0]]
  $region26: #{forward.18} parent=0
    _
  %s7 = ssub.s32 1, %s5
  %s8 = scalar_select 0, %s7, %s5
  // Predicated region
  $region2: #{forward.18} parent=0 // pred_check
    _
  $region3: #{forward.18} parent=0 // pred_check_branch
    %10 = sbr.rel (0) target = $region5
  $region4: #{forward.18} parent=0 // pred_region
    _
  $region5: #{forward.18} parent=0 // pred_fallthru
    _
  // Predicated region
  $region6: #{forward.18} parent=0 // pred_check
    _
  $region7: #{forward.18} parent=0 // pred_check_branch
    %12 = sbr.rel (0) target = $region9
  $region8: #{forward.18} parent=0 // pred_region
    _
  $region9: #{forward.18} parent=0 // pred_fallthru
    _
  // Predicated region
  $region10: #{forward.18} parent=0 // pred_check
    _
  $region11: #{forward.18} parent=0 // pred_check_branch
    %14 = sbr.rel (0) target = $region13
  $region12: #{forward.18} parent=0 // pred_region
    _
  $region13: #{forward.18} parent=0 // pred_fallthru
    _
  // Predicated region
  $region14: #{forward.18} parent=0 // pred_check
    _
  $region15: #{forward.18} parent=0 // pred_check_branch
    %16 = sbr.rel (0) target = $region17
  $region16: #{forward.18} parent=0 // pred_region
    _
  $region17: #{forward.18} parent=0 // pred_fallthru
    _
  %v18 = vld [vmem:[%s0] sm:$0xff]
  %v19 = vld [vmem:[%s0 + $0x8] sm:$0xff]
  %v20 = vld [vmem:[%s0 + $0x10] sm:$0xff]
  %v21 = vld [vmem:[%s0 + $0x18] sm:$0xff]
  %v22 = vld [vmem:[%s0 + $0x20] sm:$0xff]
  %v23 = vld [vmem:[%s0 + $0x28] sm:$0xff]
  %v24 = vld [vmem:[%s0 + $0x30] sm:$0xff]
  %v25 = vld [vmem:[%s0 + $0x38] sm:$0xff]
  %v26 = vld [vmem:[%s0 + $0x40] sm:$0xff]
  %v27 = vld [vmem:[%s0 + $0x48] sm:$0xff]
  %v28 = vld [vmem:[%s0 + $0x50] sm:$0xff]
  %v29 = vld [vmem:[%s0 + $0x58] sm:$0xff]
  %v30 = vld [vmem:[%s0 + $0x60] sm:$0xff]
  %v31 = vld [vmem:[%s0 + $0x68] sm:$0xff]
  %v32 = vld [vmem:[%s0 + $0x70] sm:$0xff]
  %v33 = vld [vmem:[%s0 + $0x78] sm:$0xff]
  %v34 = vmul.f32 %v18, %v18
  %v35 = vmul.f32 %v19, %v19
  %v36 = vmul.f32 %v20, %v20
  %v37 = vmul.f32 %v21, %v21
  %v38 = vmul.f32 %v22, %v22
  %v39 = vmul.f32 %v23, %v23
  %v40 = vmul.f32 %v24, %v24
  %v41 = vmul.f32 %v25, %v25
  %v42 = vmul.f32 %v26, %v26
  %v43 = vmul.f32 %v27, %v27
  %v44 = vmul.f32 %v28, %v28
  %v45 = vmul.f32 %v29, %v29
  %v46 = vmul.f32 %v30, %v30
  %v47 = vmul.f32 %v31, %v31
  %v48 = vmul.f32 %v32, %v32
  %v49 = vmul.f32 %v33, %v33
  %vm50 = vcmask 523264
  %v51 = vsel %vm50, %v34, 0.0
  %52 = vadd.xlane.f32.xlu0 %v51
  %v53 = vpop.xlane.xlu0 %52
  %v54 = vsel %vm50, %v35, 0.0
  %55 = vadd.xlane.f32.xlu0 %v54
  %v56 = vpop.xlane.xlu0 %55
  %v57 = vsel %vm50, %v36, 0.0
  %58 = vadd.xlane.f32.xlu0 %v57
  %v59 = vpop.xlane.xlu0 %58
  %v60 = vsel %vm50, %v37, 0.0
  %61 = vadd.xlane.f32.xlu0 %v60
  %v62 = vpop.xlane.xlu0 %61
  %v63 = vsel %vm50, %v38, 0.0
  %64 = vadd.xlane.f32.xlu0 %v63
  %v65 = vpop.xlane.xlu0 %64
  %v66 = vsel %vm50, %v39, 0.0
  %67 = vadd.xlane.f32.xlu0 %v66
  %v68 = vpop.xlane.xlu0 %67
  %v69 = vsel %vm50, %v40, 0.0
  %70 = vadd.xlane.f32.xlu0 %v69
  %v71 = vpop.xlane.xlu0 %70
  %v72 = vsel %vm50, %v41, 0.0
  %73 = vadd.xlane.f32.xlu0 %v72
  %v74 = vpop.xlane.xlu0 %73
  %v75 = vsel %vm50, %v42, 0.0
  %76 = vadd.xlane.f32.xlu0 %v75
  %v77 = vpop.xlane.xlu0 %76
  %v78 = vsel %vm50, %v43, 0.0
  %79 = vadd.xlane.f32.xlu0 %v78
  %v80 = vpop.xlane.xlu0 %79
  %v81 = vsel %vm50, %v44, 0.0
  %82 = vadd.xlane.f32.xlu0 %v81
  %v83 = vpop.xlane.xlu0 %82
  %v84 = vsel %vm50, %v45, 0.0
  %85 = vadd.xlane.f32.xlu0 %v84
  %v86 = vpop.xlane.xlu0 %85
  %v87 = vsel %vm50, %v46, 0.0
  %88 = vadd.xlane.f32.xlu0 %v87
  %v89 = vpop.xlane.xlu0 %88
  %v90 = vsel %vm50, %v47, 0.0
  %91 = vadd.xlane.f32.xlu0 %v90
  %v92 = vpop.xlane.xlu0 %91
  %v93 = vsel %vm50, %v48, 0.0
  %94 = vadd.xlane.f32.xlu0 %v93
  %v95 = vpop.xlane.xlu0 %94
  %v96 = vsel %vm50, %v49, 0.0
  %97 = vadd.xlane.f32.xlu0 %v96
  %v98 = vpop.xlane.xlu0 %97
  %v99 = vrcp.pop 64.0
  %v100 = vmul.f32 64.0, %v99
  %v101 = vsub.f32 1.0, %v100
  %v102 = vmul.f32 %v99, %v101
  %v103 = vadd.f32 %v99, %v102
  %vm104 = vweird.f32 %v99
  %v105 = vsel %vm104, %v99, %v103
  %v106 = vmul.f32 %v53, %v105
  %v107 = vmul.f32 %v56, %v105
  %v108 = vmul.f32 %v59, %v105
  %v109 = vmul.f32 %v62, %v105
  %v110 = vmul.f32 %v65, %v105
  %v111 = vmul.f32 %v68, %v105
  %v112 = vmul.f32 %v71, %v105
  %v113 = vmul.f32 %v74, %v105
  %v114 = vmul.f32 %v77, %v105
  %v115 = vmul.f32 %v80, %v105
  %v116 = vmul.f32 %v83, %v105
  %v117 = vmul.f32 %v86, %v105
  %v118 = vmul.f32 %v89, %v105
  %v119 = vmul.f32 %v92, %v105
  %v120 = vmul.f32 %v95, %v105
  %v121 = vmul.f32 %v98, %v105
  %v122 = vadd.f32 %v106, 1e-06
  %v123 = vadd.f32 %v107, 1e-06
  %v124 = vadd.f32 %v108, 1e-06
  %v125 = vadd.f32 %v109, 1e-06
  %v126 = vadd.f32 %v110, 1e-06
  %v127 = vadd.f32 %v111, 1e-06
  %v128 = vadd.f32 %v112, 1e-06
  %v129 = vadd.f32 %v113, 1e-06
  %v130 = vadd.f32 %v114, 1e-06
  %v131 = vadd.f32 %v115, 1e-06
  %v132 = vadd.f32 %v116, 1e-06
  %v133 = vadd.f32 %v117, 1e-06
  %v134 = vadd.f32 %v118, 1e-06
  %v135 = vadd.f32 %v119, 1e-06
  %v136 = vadd.f32 %v120, 1e-06
  %v137 = vadd.f32 %v121, 1e-06
  %v138 = vrsqrt.pop %v122
  %v139 = vmul.f32 %v138, %v122
  %v140 = vmul.f32 %v139, %v138
  %v141 = vmul.f32 0.5, %v140
  %v142 = vsub.f32 1.5, %v141
  %v143 = vmul.f32 %v138, %v142
  %vm144 = vweird.f32 %v122
  %vm145 = vweird.f32 %v138
  %vm146 = vmor %vm144, %vm145
  %v147 = vsel %vm146, %v138, %v143
  %v148 = vrsqrt.pop %v123
  %v149 = vmul.f32 %v148, %v123
  %v150 = vmul.f32 %v149, %v148
  %v151 = vmul.f32 0.5, %v150
  %v152 = vsub.f32 1.5, %v151
  %v153 = vmul.f32 %v148, %v152
  %vm154 = vweird.f32 %v123
  %vm155 = vweird.f32 %v148
  %vm156 = vmor %vm154, %vm155
  %v157 = vsel %vm156, %v148, %v153
  %v158 = vrsqrt.pop %v124
  %v159 = vmul.f32 %v158, %v124
  %v160 = vmul.f32 %v159, %v158
  %v161 = vmul.f32 0.5, %v160
  %v162 = vsub.f32 1.5, %v161
  %v163 = vmul.f32 %v158, %v162
  %vm164 = vweird.f32 %v124
  %vm165 = vweird.f32 %v158
  %vm166 = vmor %vm164, %vm165
  %v167 = vsel %vm166, %v158, %v163
  %v168 = vrsqrt.pop %v125
  %v169 = vmul.f32 %v168, %v125
  %v170 = vmul.f32 %v169, %v168
  %v171 = vmul.f32 0.5, %v170
  %v172 = vsub.f32 1.5, %v171
  %v173 = vmul.f32 %v168, %v172
  %vm174 = vweird.f32 %v125
  %vm175 = vweird.f32 %v168
  %vm176 = vmor %vm174, %vm175
  %v177 = vsel %vm176, %v168, %v173
  %v178 = vrsqrt.pop %v126
  %v179 = vmul.f32 %v178, %v126
  %v180 = vmul.f32 %v179, %v178
  %v181 = vmul.f32 0.5, %v180
  %v182 = vsub.f32 1.5, %v181
  %v183 = vmul.f32 %v178, %v182
  %vm184 = vweird.f32 %v126
  %vm185 = vweird.f32 %v178
  %vm186 = vmor %vm184, %vm185
  %v187 = vsel %vm186, %v178, %v183
  %v188 = vrsqrt.pop %v127
  %v189 = vmul.f32 %v188, %v127
  %v190 = vmul.f32 %v189, %v188
  %v191 = vmul.f32 0.5, %v190
  %v192 = vsub.f32 1.5, %v191
  %v193 = vmul.f32 %v188, %v192
  %vm194 = vweird.f32 %v127
  %vm195 = vweird.f32 %v188
  %vm196 = vmor %vm194, %vm195
  %v197 = vsel %vm196, %v188, %v193
  %v198 = vrsqrt.pop %v128
  %v199 = vmul.f32 %v198, %v128
  %v200 = vmul.f32 %v199, %v198
  %v201 = vmul.f32 0.5, %v200
  %v202 = vsub.f32 1.5, %v201
  %v203 = vmul.f32 %v198, %v202
  %vm204 = vweird.f32 %v128
  %vm205 = vweird.f32 %v198
  %vm206 = vmor %vm204, %vm205
  %v207 = vsel %vm206, %v198, %v203
  %v208 = vrsqrt.pop %v129
  %v209 = vmul.f32 %v208, %v129
  %v210 = vmul.f32 %v209, %v208
  %v211 = vmul.f32 0.5, %v210
  %v212 = vsub.f32 1.5, %v211
  %v213 = vmul.f32 %v208, %v212
  %vm214 = vweird.f32 %v129
  %vm215 = vweird.f32 %v208
  %vm216 = vmor %vm214, %vm215
  %v217 = vsel %vm216, %v208, %v213
  %v218 = vrsqrt.pop %v130
  %v219 = vmul.f32 %v218, %v130
  %v220 = vmul.f32 %v219, %v218
  %v221 = vmul.f32 0.5, %v220
  %v222 = vsub.f32 1.5, %v221
  %v223 = vmul.f32 %v218, %v222
  %vm224 = vweird.f32 %v130
  %vm225 = vweird.f32 %v218
  %vm226 = vmor %vm224, %vm225
  %v227 = vsel %vm226, %v218, %v223
  %v228 = vrsqrt.pop %v131
  %v229 = vmul.f32 %v228, %v131
  %v230 = vmul.f32 %v229, %v228
  %v231 = vmul.f32 0.5, %v230
  %v232 = vsub.f32 1.5, %v231
  %v233 = vmul.f32 %v228, %v232
  %vm234 = vweird.f32 %v131
  %vm235 = vweird.f32 %v228
  %vm236 = vmor %vm234, %vm235
  %v237 = vsel %vm236, %v228, %v233
  %v238 = vrsqrt.pop %v132
  %v239 = vmul.f32 %v238, %v132
  %v240 = vmul.f32 %v239, %v238
  %v241 = vmul.f32 0.5, %v240
  %v242 = vsub.f32 1.5, %v241
  %v243 = vmul.f32 %v238, %v242
  %vm244 = vweird.f32 %v132
  %vm245 = vweird.f32 %v238
  %vm246 = vmor %vm244, %vm245
  %v247 = vsel %vm246, %v238, %v243
  %v248 = vrsqrt.pop %v133
  %v249 = vmul.f32 %v248, %v133
  %v250 = vmul.f32 %v249, %v248
  %v251 = vmul.f32 0.5, %v250
  %v252 = vsub.f32 1.5, %v251
  %v253 = vmul.f32 %v248, %v252
  %vm254 = vweird.f32 %v133
  %vm255 = vweird.f32 %v248
  %vm256 = vmor %vm254, %vm255
  %v257 = vsel %vm256, %v248, %v253
  %v258 = vrsqrt.pop %v134
  %v259 = vmul.f32 %v258, %v134
  %v260 = vmul.f32 %v259, %v258
  %v261 = vmul.f32 0.5, %v260
  %v262 = vsub.f32 1.5, %v261
  %v263 = vmul.f32 %v258, %v262
  %vm264 = vweird.f32 %v134
  %vm265 = vweird.f32 %v258
  %vm266 = vmor %vm264, %vm265
  %v267 = vsel %vm266, %v258, %v263
  %v268 = vrsqrt.pop %v135
  %v269 = vmul.f32 %v268, %v135
  %v270 = vmul.f32 %v269, %v268
  %v271 = vmul.f32 0.5, %v270
  %v272 = vsub.f32 1.5, %v271
  %v273 = vmul.f32 %v268, %v272
  %vm274 = vweird.f32 %v135
  %vm275 = vweird.f32 %v268
  %vm276 = vmor %vm274, %vm275
  %v277 = vsel %vm276, %v268, %v273
  %v278 = vrsqrt.pop %v136
  %v279 = vmul.f32 %v278, %v136
  %v280 = vmul.f32 %v279, %v278
  %v281 = vmul.f32 0.5, %v280
  %v282 = vsub.f32 1.5, %v281
  %v283 = vmul.f32 %v278, %v282
  %vm284 = vweird.f32 %v136
  %vm285 = vweird.f32 %v278
  %vm286 = vmor %vm284, %vm285
  %v287 = vsel %vm286, %v278, %v283
  %v288 = vrsqrt.pop %v137
  %v289 = vmul.f32 %v288, %v137
  %v290 = vmul.f32 %v289, %v288
  %v291 = vmul.f32 0.5, %v290
  %v292 = vsub.f32 1.5, %v291
  %v293 = vmul.f32 %v288, %v292
  %vm294 = vweird.f32 %v137
  %vm295 = vweird.f32 %v288
  %vm296 = vmor %vm294, %vm295
  %v297 = vsel %vm296, %v288, %v293
  %v298 = vmul.f32 %v18, %v147
  %v299 = vmul.f32 %v19, %v157
  %v300 = vmul.f32 %v20, %v167
  %v301 = vmul.f32 %v21, %v177
  %v302 = vmul.f32 %v22, %v187
  %v303 = vmul.f32 %v23, %v197
  %v304 = vmul.f32 %v24, %v207
  %v305 = vmul.f32 %v25, %v217
  %v306 = vmul.f32 %v26, %v227
  %v307 = vmul.f32 %v27, %v237
  %v308 = vmul.f32 %v28, %v247
  %v309 = vmul.f32 %v29, %v257
  %v310 = vmul.f32 %v30, %v267
  %v311 = vmul.f32 %v31, %v277
  %v312 = vmul.f32 %v32, %v287
  %v313 = vmul.f32 %v33, %v297
  %v314 = vld [vmem:[%s1] sm:$0x1]
  %v316 = vperm.slane %v314, 0
  %v318 = vmul.f32 %v298, %v316
  %v319 = vmul.f32 %v299, %v316
  %v320 = vmul.f32 %v300, %v316
  %v321 = vmul.f32 %v301, %v316
  %v322 = vmul.f32 %v302, %v316
  %v323 = vmul.f32 %v303, %v316
  %v324 = vmul.f32 %v304, %v316
  %v325 = vmul.f32 %v305, %v316
  %v326 = vmul.f32 %v306, %v316
  %v327 = vmul.f32 %v307, %v316
  %v328 = vmul.f32 %v308, %v316
  %v329 = vmul.f32 %v309, %v316
  %v330 = vmul.f32 %v310, %v316
  %v331 = vmul.f32 %v311, %v316
  %v332 = vmul.f32 %v312, %v316
  %v333 = vmul.f32 %v313, %v316
  %v334 = vpack.c.bf16 %v319, %v318
  %v335 = vpack.c.bf16 %v321, %v320
  %v336 = vpack.c.bf16 %v323, %v322
  %v337 = vpack.c.bf16 %v325, %v324
  %v338 = vpack.c.bf16 %v327, %v326
  %v339 = vpack.c.bf16 %v329, %v328
  %v340 = vpack.c.bf16 %v331, %v330
  %v341 = vpack.c.bf16 %v333, %v332
  %v342 = vld [vmem:[%s2] sm:$0xf]
  %v343 = vld [vmem:[%s2 + $0x4] sm:$0xf]
  %v344 = vld [vmem:[%s2 + $0x8] sm:$0xf]
  %v345 = vld [vmem:[%s2 + $0xc] sm:$0xf]
  %v346 = vld [vmem:[%s2 + $0x10] sm:$0xf]
  %v347 = vld [vmem:[%s2 + $0x14] sm:$0xf]
  %v348 = vld [vmem:[%s2 + $0x18] sm:$0xf]
  %v349 = vld [vmem:[%s2 + $0x1c] sm:$0xf]
  %v350 = vld [vmem:[%s3] sm:$0x1]
  %v352 = vperm.slane %v350, 0
  %v362 = vunpack.c.l.b16 %v342
  %v363 = vunpack.c.l.b16 %v343
  %v364 = vunpack.c.l.b16 %v344
  %v365 = vunpack.c.l.b16 %v345
  %v366 = vunpack.c.l.b16 %v346
  %v367 = vunpack.c.l.b16 %v347
  %v368 = vunpack.c.l.b16 %v348
  %v369 = vunpack.c.l.b16 %v349
  %v370 = vpack.c.b16 %v363, %v362
  %v371 = vpack.c.b16 %v365, %v364
  %v372 = vpack.c.b16 %v367, %v366
  %v373 = vpack.c.b16 %v369, %v368
  %v379 = vsel %vm50, %v334, 0
  %v382 = vsel %vm50, %v335, 0
  %v385 = vsel %vm50, %v336, 0
  %v388 = vsel %vm50, %v337, 0
  %v391 = vsel %vm50, %v338, 0
  %v394 = vsel %vm50, %v339, 0
  %v397 = vsel %vm50, %v340, 0
  %v400 = vsel %vm50, %v341, 0
  %402 = vmatpush.bf16.msra.mxu0 0
  %403 = vmatpush.bf16.msra.mxu0 0
  %404 = vmatpush.bf16.msra.mxu0 0
  %405 = vmatpush.bf16.msra.mxu0 0
  %406 = vmatpush.bf16.msra.mxu0 %v373
  %407 = vmatpush.bf16.msra.mxu0 %v372
  %408 = vmatpush.bf16.msra.mxu0 %v371
  %409 = vmatpush.bf16.msra.mxu0 %v370
  %410 = vmatmul.bf16.gmra.mxu0 %v379
  %v411 = vpop.f32.mrf.mxu0
  %v412 = vadd.f32 %v352, %v411
  %v413 = vpop.f32.mrf.mxu0
  %v414 = vadd.f32 %v352, %v413
  %415 = vmatmul.bf16.gmra.mxu0 %v382
  %v416 = vpop.f32.mrf.mxu0
  %v417 = vadd.f32 %v352, %v416
  %v418 = vpop.f32.mrf.mxu0
  %v419 = vadd.f32 %v352, %v418
  %420 = vmatmul.bf16.gmra.mxu0 %v385
  %v421 = vpop.f32.mrf.mxu0
  %v422 = vadd.f32 %v352, %v421
  %v423 = vpop.f32.mrf.mxu0
  %v424 = vadd.f32 %v352, %v423
  %425 = vmatmul.bf16.gmra.mxu0 %v388
  %v426 = vpop.f32.mrf.mxu0
  %v427 = vadd.f32 %v352, %v426
  %v428 = vpop.f32.mrf.mxu0
  %v429 = vadd.f32 %v352, %v428
  %430 = vmatmul.bf16.gmra.mxu0 %v391
  %v431 = vpop.f32.mrf.mxu0
  %v432 = vadd.f32 %v352, %v431
  %v433 = vpop.f32.mrf.mxu0
  %v434 = vadd.f32 %v352, %v433
  %435 = vmatmul.bf16.gmra.mxu0 %v394
  %v436 = vpop.f32.mrf.mxu0
  %v437 = vadd.f32 %v352, %v436
  %v438 = vpop.f32.mrf.mxu0
  %v439 = vadd.f32 %v352, %v438
  %440 = vmatmul.bf16.gmra.mxu0 %v397
  %v441 = vpop.f32.mrf.mxu0
  %v442 = vadd.f32 %v352, %v441
  %v443 = vpop.f32.mrf.mxu0
  %v444 = vadd.f32 %v352, %v443
  %445 = vmatmul.bf16.gmra.mxu0 %v400
  %v446 = vpop.f32.mrf.mxu0
  %v447 = vadd.f32 %v352, %v446
  %v448 = vpop.f32.mrf.mxu0
  %v449 = vadd.f32 %v352, %v448
  %450 = vdwg.mxu0
  %v451 = vmul.f32 %v412, %v318
  %v452 = vmul.f32 %v414, %v319
  %v453 = vmul.f32 %v417, %v320
  %v454 = vmul.f32 %v419, %v321
  %v455 = vmul.f32 %v422, %v322
  %v456 = vmul.f32 %v424, %v323
  %v457 = vmul.f32 %v427, %v324
  %v458 = vmul.f32 %v429, %v325
  %v459 = vmul.f32 %v432, %v326
  %v460 = vmul.f32 %v434, %v327
  %v461 = vmul.f32 %v437, %v328
  %v462 = vmul.f32 %v439, %v329
  %v463 = vmul.f32 %v442, %v330
  %v464 = vmul.f32 %v444, %v331
  %v465 = vmul.f32 %v447, %v332
  %v466 = vmul.f32 %v449, %v333
  %483 = vrot.lane.b32.xlu0 %v412, 64
  %v484 = vpop.permute.xlu0 %483
  %485 = vrot.lane.b32.xlu0 %v414, 64
  %v486 = vpop.permute.xlu0 %485
  %487 = vrot.lane.b32.xlu0 %v417, 64
  %v488 = vpop.permute.xlu0 %487
  %489 = vrot.lane.b32.xlu0 %v419, 64
  %v490 = vpop.permute.xlu0 %489
  %491 = vrot.lane.b32.xlu0 %v422, 64
  %v492 = vpop.permute.xlu0 %491
  %493 = vrot.lane.b32.xlu0 %v424, 64
  %v494 = vpop.permute.xlu0 %493
  %495 = vrot.lane.b32.xlu0 %v427, 64
  %v496 = vpop.permute.xlu0 %495
  %497 = vrot.lane.b32.xlu0 %v429, 64
  %v498 = vpop.permute.xlu0 %497
  %499 = vrot.lane.b32.xlu0 %v432, 64
  %v500 = vpop.permute.xlu0 %499
  %501 = vrot.lane.b32.xlu0 %v434, 64
  %v502 = vpop.permute.xlu0 %501
  %503 = vrot.lane.b32.xlu0 %v437, 64
  %v504 = vpop.permute.xlu0 %503
  %505 = vrot.lane.b32.xlu0 %v439, 64
  %v506 = vpop.permute.xlu0 %505
  %507 = vrot.lane.b32.xlu0 %v442, 64
  %v508 = vpop.permute.xlu0 %507
  %509 = vrot.lane.b32.xlu0 %v444, 64
  %v510 = vpop.permute.xlu0 %509
  %511 = vrot.lane.b32.xlu0 %v447, 64
  %v512 = vpop.permute.xlu0 %511
  %513 = vrot.lane.b32.xlu0 %v449, 64
  %v514 = vpop.permute.xlu0 %513
  %v531 = vadd.f32 %v451, %v484
  %v532 = vadd.f32 %v452, %v486
  %v533 = vadd.f32 %v453, %v488
  %v534 = vadd.f32 %v454, %v490
  %v535 = vadd.f32 %v455, %v492
  %v536 = vadd.f32 %v456, %v494
  %v537 = vadd.f32 %v457, %v496
  %v538 = vadd.f32 %v458, %v498
  %v539 = vadd.f32 %v459, %v500
  %v540 = vadd.f32 %v460, %v502
  %v541 = vadd.f32 %v461, %v504
  %v542 = vadd.f32 %v462, %v506
  %v543 = vadd.f32 %v463, %v508
  %v544 = vadd.f32 %v464, %v510
  %v545 = vadd.f32 %v465, %v512
  %v546 = vadd.f32 %v466, %v514
  %v547 = vpack.c.bf16 %v531, %v531
  %v548 = vpack.c.bf16 %v532, %v532
  %v549 = vpack.c.bf16 %v533, %v533
  %v550 = vpack.c.bf16 %v534, %v534
  %v551 = vpack.c.bf16 %v535, %v535
  %v552 = vpack.c.bf16 %v536, %v536
  %v553 = vpack.c.bf16 %v537, %v537
  %v554 = vpack.c.bf16 %v538, %v538
  %v555 = vpack.c.bf16 %v539, %v539
  %v556 = vpack.c.bf16 %v540, %v540
  %v557 = vpack.c.bf16 %v541, %v541
  %v558 = vpack.c.bf16 %v542, %v542
  %v559 = vpack.c.bf16 %v543, %v543
  %v560 = vpack.c.bf16 %v544, %v544
  %v561 = vpack.c.bf16 %v545, %v545
  %v562 = vpack.c.bf16 %v546, %v546
  %vm563 = vcmask 519168
  %564 = vst.msk [vmem:[%s4] sm:$0xf] %vm563, %v547
  %565 = vst.msk [vmem:[%s4 + $0x4] sm:$0xf] %vm563, %v548
  %566 = vst.msk [vmem:[%s4 + $0x8] sm:$0xf] %vm563, %v549
  %567 = vst.msk [vmem:[%s4 + $0xc] sm:$0xf] %vm563, %v550
  %568 = vst.msk [vmem:[%s4 + $0x10] sm:$0xf] %vm563, %v551
  %569 = vst.msk [vmem:[%s4 + $0x14] sm:$0xf] %vm563, %v552
  %570 = vst.msk [vmem:[%s4 + $0x18] sm:$0xf] %vm563, %v553
  %571 = vst.msk [vmem:[%s4 + $0x1c] sm:$0xf] %vm563, %v554
  %572 = vst.msk [vmem:[%s4 + $0x20] sm:$0xf] %vm563, %v555
  %573 = vst.msk [vmem:[%s4 + $0x24] sm:$0xf] %vm563, %v556
  %574 = vst.msk [vmem:[%s4 + $0x28] sm:$0xf] %vm563, %v557
  %575 = vst.msk [vmem:[%s4 + $0x2c] sm:$0xf] %vm563, %v558
  %576 = vst.msk [vmem:[%s4 + $0x30] sm:$0xf] %vm563, %v559
  %577 = vst.msk [vmem:[%s4 + $0x34] sm:$0xf] %vm563, %v560
  %578 = vst.msk [vmem:[%s4 + $0x38] sm:$0xf] %vm563, %v561
  %579 = vst.msk [vmem:[%s4 + $0x3c] sm:$0xf] %vm563, %v562
  // Predicated region
  $region18: #{forward.18} parent=0 // pred_check
    _
  $region19: #{forward.18} parent=0 // pred_check_branch
    %581 = sbr.rel (0) target = $region21
  $region20: #{forward.18} parent=0 // pred_region
    _
  $region21: #{forward.18} parent=0 // pred_fallthru
    _
  // Predicated region
  $region22: #{forward.18} parent=0 // pred_check
    _
  $region23: #{forward.18} parent=0 // pred_check_branch
    %583 = sbr.rel (0) target = $region25
  $region24: #{forward.18} parent=0 // pred_region
    _
  $region25: #{forward.18} parent=0 // pred_fallthru
    _

// kernel: forward.19
$region0: #{forward.19}
  #allocation0 [shape = 'u32[]', space=smem, size = 0x4, offset = 0x4, fixed_abs, tag = 'smem constant byte address 0x4 - core index']
  #allocation1 [shape = 'u32[72,128]{1,0:T(1,128)}', space=vmem, size = 0x9000, scoped, tag = 'internal scratch']
  %s0 = inlined_call_operand.vmem [shape: bf16[128,64], index: 0, kind: input, shape index: {}]
  %s1 = inlined_call_operand.vmem [shape: bf16[64,128], index: 1, kind: input, shape index: {}]
  %s2 = inlined_call_operand.vmem [shape: bf16[64,128], index: 2, kind: input, shape index: {}]
  %s3 = inlined_call_operand.vmem [shape: bf16[128,128], index: 3, kind: output, shape index: {}]
  %s4 = sld [smem:[#allocation0]]
  $region22: #{forward.19} parent=0
    _
  %s6 = ssub.s32 1, %s4
  %s7 = scalar_select 0, %s6, %s4
  // Predicated region
  $region2: #{forward.19} parent=0 // pred_check
    _
  $region3: #{forward.19} parent=0 // pred_check_branch
    %9 = sbr.rel (0) target = $region5
  $region4: #{forward.19} parent=0 // pred_region
    _
  $region5: #{forward.19} parent=0 // pred_fallthru
    _
  // Predicated region
  $region6: #{forward.19} parent=0 // pred_check
    _
  $region7: #{forward.19} parent=0 // pred_check_branch
    %11 = sbr.rel (0) target = $region9
  $region8: #{forward.19} parent=0 // pred_region
    _
  $region9: #{forward.19} parent=0 // pred_fallthru
    _
  // Predicated region
  $region10: #{forward.19} parent=0 // pred_check
    _
  $region11: #{forward.19} parent=0 // pred_check_branch
    %13 = sbr.rel (0) target = $region13
  $region12: #{forward.19} parent=0 // pred_region
    _
  $region13: #{forward.19} parent=0 // pred_fallthru
    _
  %v15 = vld [vmem:[%s0] sm:$0xf]
  %v16 = vld [vmem:[%s0 + $0x4] sm:$0xf]
  %v17 = vld [vmem:[%s0 + $0x8] sm:$0xf]
  %v18 = vld [vmem:[%s0 + $0xc] sm:$0xf]
  %v19 = vld [vmem:[%s0 + $0x10] sm:$0xf]
  %v20 = vld [vmem:[%s0 + $0x14] sm:$0xf]
  %v21 = vld [vmem:[%s0 + $0x18] sm:$0xf]
  %v22 = vld [vmem:[%s0 + $0x1c] sm:$0xf]
  %v23 = vld [vmem:[%s0 + $0x20] sm:$0xf]
  %v24 = vld [vmem:[%s0 + $0x24] sm:$0xf]
  %v25 = vld [vmem:[%s0 + $0x28] sm:$0xf]
  %v26 = vld [vmem:[%s0 + $0x2c] sm:$0xf]
  %v27 = vld [vmem:[%s0 + $0x30] sm:$0xf]
  %v28 = vld [vmem:[%s0 + $0x34] sm:$0xf]
  %v29 = vld [vmem:[%s0 + $0x38] sm:$0xf]
  %v30 = vld [vmem:[%s0 + $0x3c] sm:$0xf]
  %v31 = vld [vmem:[%s1] sm:$0xf]
  %v32 = vld [vmem:[%s1 + $0x4] sm:$0xf]
  %v33 = vld [vmem:[%s1 + $0x8] sm:$0xf]
  %v34 = vld [vmem:[%s1 + $0xc] sm:$0xf]
  %v35 = vld [vmem:[%s1 + $0x10] sm:$0xf]
  %v36 = vld [vmem:[%s1 + $0x14] sm:$0xf]
  %v37 = vld [vmem:[%s1 + $0x18] sm:$0xf]
  %v38 = vld [vmem:[%s1 + $0x1c] sm:$0xf]
  %v55 = vunpack.c.l.b16 %v15
  %v56 = vunpack.c.l.b16 %v16
  %v57 = vunpack.c.l.b16 %v17
  %v58 = vunpack.c.l.b16 %v18
  %v59 = vunpack.c.l.b16 %v19
  %v60 = vunpack.c.l.b16 %v20
  %v61 = vunpack.c.l.b16 %v21
  %v62 = vunpack.c.l.b16 %v22
  %v63 = vunpack.c.l.b16 %v23
  %v64 = vunpack.c.l.b16 %v24
  %v65 = vunpack.c.l.b16 %v25
  %v66 = vunpack.c.l.b16 %v26
  %v67 = vunpack.c.l.b16 %v27
  %v68 = vunpack.c.l.b16 %v28
  %v69 = vunpack.c.l.b16 %v29
  %v70 = vunpack.c.l.b16 %v30
  %v71 = vpack.c.b16 %v56, %v55
  %v72 = vpack.c.b16 %v58, %v57
  %v73 = vpack.c.b16 %v60, %v59
  %v74 = vpack.c.b16 %v62, %v61
  %v75 = vpack.c.b16 %v64, %v63
  %v76 = vpack.c.b16 %v66, %v65
  %v77 = vpack.c.b16 %v68, %v67
  %v78 = vpack.c.b16 %v70, %v69
  %v87 = vunpack.c.l.b16 %v31
  %v88 = vunpack.c.l.b16 %v32
  %v89 = vunpack.c.l.b16 %v33
  %v90 = vunpack.c.l.b16 %v34
  %v91 = vunpack.c.l.b16 %v35
  %v92 = vunpack.c.l.b16 %v36
  %v93 = vunpack.c.l.b16 %v37
  %v94 = vunpack.c.l.b16 %v38
  %v95 = vpack.c.b16 %v88, %v87
  %v96 = vpack.c.b16 %v90, %v89
  %v97 = vpack.c.b16 %v92, %v91
  %v98 = vpack.c.b16 %v94, %v93
  %vm103 = vcmask 523264
  %v105 = vsel %vm103, %v71, 0
  %v108 = vsel %vm103, %v72, 0
  %v111 = vsel %vm103, %v73, 0
  %v114 = vsel %vm103, %v74, 0
  %v117 = vsel %vm103, %v75, 0
  %v120 = vsel %vm103, %v76, 0
  %v123 = vsel %vm103, %v77, 0
  %v126 = vsel %vm103, %v78, 0
  %128 = vmatpush.bf16.msra.mxu0 0
  %129 = vmatpush.bf16.msra.mxu0 0
  %130 = vmatpush.bf16.msra.mxu0 0
  %131 = vmatpush.bf16.msra.mxu0 0
  %132 = vmatpush.bf16.msra.mxu0 %v98
  %133 = vmatpush.bf16.msra.mxu0 %v97
  %134 = vmatpush.bf16.msra.mxu0 %v96
  %135 = vmatpush.bf16.msra.mxu0 %v95
  %136 = vmatmul.bf16.gmra.mxu0 %v105
  %v137 = vpop.f32.mrf.mxu0
  %v138 = vadd.f32 0.0, %v137
  %v139 = vpop.f32.mrf.mxu0
  %v140 = vadd.f32 0.0, %v139
  %141 = vmatmul.bf16.gmra.mxu0 %v108
  %v142 = vpop.f32.mrf.mxu0
  %v143 = vadd.f32 0.0, %v142
  %v144 = vpop.f32.mrf.mxu0
  %v145 = vadd.f32 0.0, %v144
  %146 = vmatmul.bf16.gmra.mxu0 %v111
  %v147 = vpop.f32.mrf.mxu0
  %v148 = vadd.f32 0.0, %v147
  %v149 = vpop.f32.mrf.mxu0
  %v150 = vadd.f32 0.0, %v149
  %151 = vmatmul.bf16.gmra.mxu0 %v114
  %v152 = vpop.f32.mrf.mxu0
  %v153 = vadd.f32 0.0, %v152
  %v154 = vpop.f32.mrf.mxu0
  %v155 = vadd.f32 0.0, %v154
  %156 = vmatmul.bf16.gmra.mxu0 %v117
  %v157 = vpop.f32.mrf.mxu0
  %v158 = vadd.f32 0.0, %v157
  %v159 = vpop.f32.mrf.mxu0
  %v160 = vadd.f32 0.0, %v159
  %161 = vmatmul.bf16.gmra.mxu0 %v120
  %v162 = vpop.f32.mrf.mxu0
  %v163 = vadd.f32 0.0, %v162
  %v164 = vpop.f32.mrf.mxu0
  %v165 = vadd.f32 0.0, %v164
  %166 = vmatmul.bf16.gmra.mxu0 %v123
  %v167 = vpop.f32.mrf.mxu0
  %v168 = vadd.f32 0.0, %v167
  %v169 = vpop.f32.mrf.mxu0
  %v170 = vadd.f32 0.0, %v169
  %171 = vmatmul.bf16.gmra.mxu0 %v126
  %v172 = vpop.f32.mrf.mxu0
  %v173 = vadd.f32 0.0, %v172
  %v174 = vpop.f32.mrf.mxu0
  %v175 = vadd.f32 0.0, %v174
  %176 = vdwg.mxu0
  %v177 = vld [vmem:[%s2] sm:$0xf]
  %v178 = vld [vmem:[%s2 + $0x4] sm:$0xf]
  %v179 = vld [vmem:[%s2 + $0x8] sm:$0xf]
  %v180 = vld [vmem:[%s2 + $0xc] sm:$0xf]
  %v181 = vld [vmem:[%s2 + $0x10] sm:$0xf]
  %v182 = vld [vmem:[%s2 + $0x14] sm:$0xf]
  %v183 = vld [vmem:[%s2 + $0x18] sm:$0xf]
  %v184 = vld [vmem:[%s2 + $0x1c] sm:$0xf]
  %v193 = vunpack.c.l.b16 %v177
  %v194 = vunpack.c.l.b16 %v178
  %v195 = vunpack.c.l.b16 %v179
  %v196 = vunpack.c.l.b16 %v180
  %v197 = vunpack.c.l.b16 %v181
  %v198 = vunpack.c.l.b16 %v182
  %v199 = vunpack.c.l.b16 %v183
  %v200 = vunpack.c.l.b16 %v184
  %v201 = vpack.c.b16 %v194, %v193
  %v202 = vpack.c.b16 %v196, %v195
  %v203 = vpack.c.b16 %v198, %v197
  %v204 = vpack.c.b16 %v200, %v199
  %209 = vmatpush.bf16.msra.mxu0 0
  %210 = vmatpush.bf16.msra.mxu0 0
  %211 = vmatpush.bf16.msra.mxu0 0
  %212 = vmatpush.bf16.msra.mxu0 0
  %213 = vmatpush.bf16.msra.mxu0 %v204
  %214 = vmatpush.bf16.msra.mxu0 %v203
  %215 = vmatpush.bf16.msra.mxu0 %v202
  %216 = vmatpush.bf16.msra.mxu0 %v201
  %217 = vmatmul.bf16.gmra.mxu0 %v105
  %v218 = vpop.f32.mrf.mxu0
  %v219 = vadd.f32 0.0, %v218
  %v220 = vpop.f32.mrf.mxu0
  %v221 = vadd.f32 0.0, %v220
  %222 = vmatmul.bf16.gmra.mxu0 %v108
  %v223 = vpop.f32.mrf.mxu0
  %v224 = vadd.f32 0.0, %v223
  %v225 = vpop.f32.mrf.mxu0
  %v226 = vadd.f32 0.0, %v225
  %227 = vmatmul.bf16.gmra.mxu0 %v111
  %v228 = vpop.f32.mrf.mxu0
  %v229 = vadd.f32 0.0, %v228
  %v230 = vpop.f32.mrf.mxu0
  %v231 = vadd.f32 0.0, %v230
  %232 = vmatmul.bf16.gmra.mxu0 %v114
  %v233 = vpop.f32.mrf.mxu0
  %v234 = vadd.f32 0.0, %v233
  %v235 = vpop.f32.mrf.mxu0
  %v236 = vadd.f32 0.0, %v235
  %237 = vmatmul.bf16.gmra.mxu0 %v117
  %v238 = vpop.f32.mrf.mxu0
  %v239 = vadd.f32 0.0, %v238
  %v240 = vpop.f32.mrf.mxu0
  %v241 = vadd.f32 0.0, %v240
  %242 = vmatmul.bf16.gmra.mxu0 %v120
  %v243 = vpop.f32.mrf.mxu0
  %v244 = vadd.f32 0.0, %v243
  %v245 = vpop.f32.mrf.mxu0
  %v246 = vadd.f32 0.0, %v245
  %247 = vmatmul.bf16.gmra.mxu0 %v123
  %v248 = vpop.f32.mrf.mxu0
  %v249 = vadd.f32 0.0, %v248
  %v250 = vpop.f32.mrf.mxu0
  %v251 = vadd.f32 0.0, %v250
  %252 = vmatmul.bf16.gmra.mxu0 %v126
  %v253 = vpop.f32.mrf.mxu0
  %v254 = vadd.f32 0.0, %v253
  %v255 = vpop.f32.mrf.mxu0
  %v256 = vadd.f32 0.0, %v255
  %257 = vdwg.mxu0
  %v258 = vmul.f32 %v219, 0.5
  %v259 = vmul.f32 %v221, 0.5
  %v260 = vmul.f32 %v224, 0.5
  %v261 = vmul.f32 %v226, 0.5
  %v262 = vmul.f32 %v229, 0.5
  %v263 = vmul.f32 %v231, 0.5
  %v264 = vmul.f32 %v234, 0.5
  %v265 = vmul.f32 %v236, 0.5
  %v266 = vmul.f32 %v239, 0.5
  %v267 = vmul.f32 %v241, 0.5
  %v268 = vmul.f32 %v244, 0.5
  %v269 = vmul.f32 %v246, 0.5
  %v270 = vmul.f32 %v249, 0.5
  %v271 = vmul.f32 %v251, 0.5
  %v272 = vmul.f32 %v254, 0.5
  %v273 = vmul.f32 %v256, 0.5
  %v274 = vmul.f32 %v219, 0.044715
  %v275 = vmul.f32 %v221, 0.044715
  %v276 = vmul.f32 %v224, 0.044715
  %v277 = vmul.f32 %v226, 0.044715
  %v278 = vmul.f32 %v229, 0.044715
  %v279 = vmul.f32 %v231, 0.044715
  %v280 = vmul.f32 %v234, 0.044715
  %v281 = vmul.f32 %v236, 0.044715
  %v282 = vmul.f32 %v239, 0.044715
  %v283 = vmul.f32 %v241, 0.044715
  %v284 = vmul.f32 %v244, 0.044715
  %v285 = vmul.f32 %v246, 0.044715
  %v286 = vmul.f32 %v249, 0.044715
  %v287 = vmul.f32 %v251, 0.044715
  %v288 = vmul.f32 %v254, 0.044715
  %v289 = vmul.f32 %v256, 0.044715
  %v290 = vmul.f32 %v274, %v219
  %v291 = vmul.f32 %v275, %v221
  %v292 = vmul.f32 %v276, %v224
  %v293 = vmul.f32 %v277, %v226
  %v294 = vmul.f32 %v278, %v229
  %v295 = vmul.f32 %v279, %v231
  %v296 = vmul.f32 %v280, %v234
  %v297 = vmul.f32 %v281, %v236
  %v298 = vmul.f32 %v282, %v239
  %v299 = vmul.f32 %v283, %v241
  %v300 = vmul.f32 %v284, %v244
  %v301 = vmul.f32 %v285, %v246
  %v302 = vmul.f32 %v286, %v249
  %v303 = vmul.f32 %v287, %v251
  %v304 = vmul.f32 %v288, %v254
  %v305 = vmul.f32 %v289, %v256
  %v306 = vmul.f32 %v290, %v219
  %v307 = vmul.f32 %v291, %v221
  %v308 = vmul.f32 %v292, %v224
  %v309 = vmul.f32 %v293, %v226
  %v310 = vmul.f32 %v294, %v229
  %v311 = vmul.f32 %v295, %v231
  %v312 = vmul.f32 %v296, %v234
  %v313 = vmul.f32 %v297, %v236
  %v314 = vmul.f32 %v298, %v239
  %v315 = vmul.f32 %v299, %v241
  %v316 = vmul.f32 %v300, %v244
  %v317 = vmul.f32 %v301, %v246
  %v318 = vmul.f32 %v302, %v249
  %v319 = vmul.f32 %v303, %v251
  %v320 = vmul.f32 %v304, %v254
  %v321 = vmul.f32 %v305, %v256
  %v322 = vadd.f32 %v219, %v306
  %v323 = vadd.f32 %v221, %v307
  %v324 = vadd.f32 %v224, %v308
  %v325 = vadd.f32 %v226, %v309
  %v326 = vadd.f32 %v229, %v310
  %v327 = vadd.f32 %v231, %v311
  %v328 = vadd.f32 %v234, %v312
  %v329 = vadd.f32 %v236, %v313
  %v330 = vadd.f32 %v239, %v314
  %v331 = vadd.f32 %v241, %v315
  %v332 = vadd.f32 %v244, %v316
  %v333 = vadd.f32 %v246, %v317
  %v334 = vadd.f32 %v249, %v318
  %v335 = vadd.f32 %v251, %v319
  %v336 = vadd.f32 %v254, %v320
  %v337 = vadd.f32 %v256, %v321
  %v338 = vmul.f32 %v322, 0.7978846
  %v339 = vmul.f32 %v323, 0.7978846
  %v340 = vmul.f32 %v324, 0.7978846
  %v341 = vmul.f32 %v325, 0.7978846
  %v342 = vmul.f32 %v326, 0.7978846
  %v343 = vmul.f32 %v327, 0.7978846
  %v344 = vmul.f32 %v328, 0.7978846
  %v345 = vmul.f32 %v329, 0.7978846
  %v346 = vmul.f32 %v330, 0.7978846
  %v347 = vmul.f32 %v331, 0.7978846
  %v348 = vmul.f32 %v332, 0.7978846
  %v349 = vmul.f32 %v333, 0.7978846
  %v350 = vmul.f32 %v334, 0.7978846
  %v351 = vmul.f32 %v335, 0.7978846
  %v352 = vmul.f32 %v336, 0.7978846
  %v353 = vmul.f32 %v337, 0.7978846
  %v354 = vtanh.pop %v338
  %v355 = vtanh.pop %v339
  %v356 = vtanh.pop %v340
  %v357 = vtanh.pop %v341
  %v358 = vtanh.pop %v342
  %v359 = vtanh.pop %v343
  %v360 = vtanh.pop %v344
  %v361 = vtanh.pop %v345
  %v362 = vtanh.pop %v346
  %v363 = vtanh.pop %v347
  %v364 = vtanh.pop %v348
  %v365 = vtanh.pop %v349
  %v366 = vtanh.pop %v350
  %v367 = vtanh.pop %v351
  %v368 = vtanh.pop %v352
  %v369 = vtanh.pop %v353
  %v370 = vadd.f32 %v354, 1.0
  %v371 = vadd.f32 %v355, 1.0
  %v372 = vadd.f32 %v356, 1.0
  %v373 = vadd.f32 %v357, 1.0
  %v374 = vadd.f32 %v358, 1.0
  %v375 = vadd.f32 %v359, 1.0
  %v376 = vadd.f32 %v360, 1.0
  %v377 = vadd.f32 %v361, 1.0
  %v378 = vadd.f32 %v362, 1.0
  %v379 = vadd.f32 %v363, 1.0
  %v380 = vadd.f32 %v364, 1.0
  %v381 = vadd.f32 %v365, 1.0
  %v382 = vadd.f32 %v366, 1.0
  %v383 = vadd.f32 %v367, 1.0
  %v384 = vadd.f32 %v368, 1.0
  %v385 = vadd.f32 %v369, 1.0
  %v386 = vmul.f32 %v258, %v370
  %v387 = vmul.f32 %v259, %v371
  %v388 = vmul.f32 %v260, %v372
  %v389 = vmul.f32 %v261, %v373
  %v390 = vmul.f32 %v262, %v374
  %v391 = vmul.f32 %v263, %v375
  %v392 = vmul.f32 %v264, %v376
  %v393 = vmul.f32 %v265, %v377
  %v394 = vmul.f32 %v266, %v378
  %v395 = vmul.f32 %v267, %v379
  %v396 = vmul.f32 %v268, %v380
  %v397 = vmul.f32 %v269, %v381
  %v398 = vmul.f32 %v270, %v382
  %v399 = vmul.f32 %v271, %v383
  %v400 = vmul.f32 %v272, %v384
  %v401 = vmul.f32 %v273, %v385
  %v402 = vmul.f32 %v138, %v386
  %v403 = vmul.f32 %v140, %v387
  %v404 = vmul.f32 %v143, %v388
  %v405 = vmul.f32 %v145, %v389
  %v406 = vmul.f32 %v148, %v390
  %v407 = vmul.f32 %v150, %v391
  %v408 = vmul.f32 %v153, %v392
  %v409 = vmul.f32 %v155, %v393
  %v410 = vmul.f32 %v158, %v394
  %v411 = vmul.f32 %v160, %v395
  %v412 = vmul.f32 %v163, %v396
  %v413 = vmul.f32 %v165, %v397
  %v414 = vmul.f32 %v168, %v398
  %v415 = vmul.f32 %v170, %v399
  %v416 = vmul.f32 %v173, %v400
  %v417 = vmul.f32 %v175, %v401
  %v418 = vpack.c.bf16 %v402, %v402
  %v419 = vpack.c.bf16 %v403, %v403
  %v420 = vpack.c.bf16 %v404, %v404
  %v421 = vpack.c.bf16 %v405, %v405
  %v422 = vpack.c.bf16 %v406, %v406
  %v423 = vpack.c.bf16 %v407, %v407
  %v424 = vpack.c.bf16 %v408, %v408
  %v425 = vpack.c.bf16 %v409, %v409
  %v426 = vpack.c.bf16 %v410, %v410
  %v427 = vpack.c.bf16 %v411, %v411
  %v428 = vpack.c.bf16 %v412, %v412
  %v429 = vpack.c.bf16 %v413, %v413
  %v430 = vpack.c.bf16 %v414, %v414
  %v431 = vpack.c.bf16 %v415, %v415
  %v432 = vpack.c.bf16 %v416, %v416
  %v433 = vpack.c.bf16 %v417, %v417
  %434 = vst [vmem:[%s3] sm:$0xf] %v418
  %435 = vst [vmem:[%s3 + $0x4] sm:$0xf] %v419
  %436 = vst [vmem:[%s3 + $0x8] sm:$0xf] %v420
  %437 = vst [vmem:[%s3 + $0xc] sm:$0xf] %v421
  %438 = vst [vmem:[%s3 + $0x10] sm:$0xf] %v422
  %439 = vst [vmem:[%s3 + $0x14] sm:$0xf] %v423
  %440 = vst [vmem:[%s3 + $0x18] sm:$0xf] %v424
  %441 = vst [vmem:[%s3 + $0x1c] sm:$0xf] %v425
  %442 = vst [vmem:[%s3 + $0x20] sm:$0xf] %v426
  %443 = vst [vmem:[%s3 + $0x24] sm:$0xf] %v427
  %444 = vst [vmem:[%s3 + $0x28] sm:$0xf] %v428
  %445 = vst [vmem:[%s3 + $0x2c] sm:$0xf] %v429
  %446 = vst [vmem:[%s3 + $0x30] sm:$0xf] %v430
  %447 = vst [vmem:[%s3 + $0x34] sm:$0xf] %v431
  %448 = vst [vmem:[%s3 + $0x38] sm:$0xf] %v432
  %449 = vst [vmem:[%s3 + $0x3c] sm:$0xf] %v433
  // Predicated region
  $region14: #{forward.19} parent=0 // pred_check
    _
  $region15: #{forward.19} parent=0 // pred_check_branch
    %451 = sbr.rel (0) target = $region17
  $region16: #{forward.19} parent=0 // pred_region
    _
  $region17: #{forward.19} parent=0 // pred_fallthru
    _
  // Predicated region
  $region18: #{forward.19} parent=0 // pred_check
    _
  $region19: #{forward.19} parent=0 // pred_check_branch
    %453 = sbr.rel (0) target = $region21
  $region20: #{forward.19} parent=0 // pred_region
    _
  $region21: #{forward.19} parent=0 // pred_fallthru
    _

// kernel: forward.22
$region0: #{forward.22}
  #allocation0 [shape = 'u32[]', space=smem, size = 0x4, offset = 0x4, fixed_abs, tag = 'smem constant byte address 0x4 - core index']
  #allocation1 [shape = 'u32[72,128]{1,0:T(1,128)}', space=vmem, size = 0x9000, scoped, tag = 'internal scratch']
  #allocation2 [shape = 'f32[16,1]{1,0:T(8,128)}', space=vmem, size = 0x2000, scoped, tag = 'scratch operand']
  #allocation3 [shape = 'f32[16,1]{1,0:T(8,128)}', space=vmem, size = 0x2000, scoped, tag = 'scratch operand']
  #allocation4 [shape = 'f32[16,16]{1,0:T(8,128)}', space=vmem, size = 0x2000, scoped, tag = 'scratch operand']
  %s0 = inlined_call_operand.vmem [shape: bf16[2,12,16,16], index: 0, kind: input, shape index: {}, may-alias: {0,1,2}]
  %s1 = inlined_call_operand.vmem [shape: bf16[2,12,16,16], index: 1, kind: input, shape index: {}, may-alias: {0,1,2}]
  %s2 = inlined_call_operand.vmem [shape: bf16[2,12,16,16], index: 2, kind: input, shape index: {}, may-alias: {0,1,2}]
  %s3 = inlined_call_operand.vmem [shape: bf16[2,4,16,16], index: 3, kind: output, shape index: {}]
  %s4 = sld [smem:[#allocation0]]
  $region53: #{forward.22} parent=0
    _
  %s6 = ssub.s32 1, %s4
  %s7 = scalar_select 0, %s6, %s4
  loop: start=0, step=1, limit=10
  $region2: #{forward.22} parent=0 // loop_pre_header
    _
  $region3: #{forward.22} parent=0 // loop_header
    %s9 = sphi 0, %s13
    %p10 = scmp.ge.s32.totalorder %s9, 10
    %s16 = sphi 0, %s35
    %s17 = sphi 0, %s31
    %s18 = sphi 0, %s27
    %s19 = sphi 0, %s16
    %s20 = sphi 0, %s17
    %s21 = sphi 0, %s18
    %s22 = sphi 0, %s19
    %s23 = sphi 0, %s20
    %s24 = sphi 0, %s21
    %s40 = sphi 0, %s42
    %s43 = sphi 0, %s40
    %s44 = sphi 0, %s43
    %s60 = sphi 0, %s44
    %s72 = sphi 0, %s74
    %s75 = sphi 0, %s72
    %s76 = sphi 0, %s75
    %s92 = sphi 0, %s76
    %s104 = sphi 0, %s106
    %s107 = sphi 0, %s104
    %s108 = sphi 0, %s107
    %s124 = sphi 0, %s108
    %s132 = sphi 0, %s134
    %s135 = sphi 0, %s132
    %s136 = sphi 0, %s135
    %s152 = sphi 0, %s136
  $region4: #{forward.22} parent=0 // loop_header_branch
    %12 = sbr.rel (%p10) target = $region8
  $region5: #{forward.22} parent=0 // loop_body
    %s14 = ssub.s32 %s9, 1
    %s15 = ssub.s32 %s9, 2
    %s25 = sadd.s32 1, %s18
    %p26 = scmp.ge.s32.totalorder %s25, 1
    %s27 = scalar_select %p26, 0, %s25
    %s28 = sadd.s32 1, %s17
    %s29 = scalar_select %p26, %s28, %s17
    %p30 = scmp.ge.s32.totalorder %s29, 4
    %s31 = scalar_select %p30, 0, %s29
    %s32 = sadd.s32 1, %s16
    %s33 = scalar_select %p30, %s32, %s16
    %p34 = scmp.ge.s32.totalorder %s33, 2
    %s35 = scalar_select %p34, 0, %s33
    %s36 = ssub.s32 %s16, %s35
    %s37 = ssub.s32 %s17, %s31
    %s38 = sor.u32 %s36, %s37
    %p39 = scmp.eq.s32.totalorder %s38, 0
    %s41 = sadd.s32 %s40, 1
    %s42 = scalar_select %p39, %s40, %s41
    %p45 = pneg %p39
    %p46 = scmp.eq.s32.totalorder %s9, 7
    %p47 = por %p45, %p46
    %p48 = scmp.ne.s32.totalorder %s40, %s43
    %p49 = scmp.eq.s32.totalorder %s9, 0
    %p50 = por %p48, %p49
    %p51 = scmp.ne.s32.totalorder %s40, %s43
    %p52 = scmp.eq.s32.totalorder %s14, 7
    %p53 = por %p51, %p52
    %p54 = scmp.ne.s32.totalorder %s43, %s44
    %p55 = scmp.eq.s32.totalorder %s14, 0
    %p56 = por %p54, %p55
    %p57 = scmp.ne.s32.totalorder %s43, %s44
    %p58 = scmp.eq.s32.totalorder %s15, 7
    %p59 = por %p57, %p58
    %p61 = scmp.ne.s32.totalorder %s44, %s60
    %p62 = scmp.eq.s32.totalorder %s15, 0
    %p63 = por %p61, %p62
    %s64 = sadd.s32 %s17, 4
    %s65 = sadd.s32 %s31, 4
    %s66 = ssub.s32 %s16, %s35
    %s67 = ssub.s32 %s64, %s65
    %s68 = sor.u32 %s66, %s67
    %s69 = ssub.s32 %s18, %s27
    %s70 = sor.u32 %s68, %s69
    %p71 = scmp.eq.s32.totalorder %s70, 0
    %s73 = sadd.s32 %s72, 1
    %s74 = scalar_select %p71, %s72, %s73
    %p77 = pneg %p71
    %p78 = scmp.eq.s32.totalorder %s9, 7
    %p79 = por %p77, %p78
    %p80 = scmp.ne.s32.totalorder %s72, %s75
    %p81 = scmp.eq.s32.totalorder %s9, 0
    %p82 = por %p80, %p81
    %p83 = scmp.ne.s32.totalorder %s72, %s75
    %p84 = scmp.eq.s32.totalorder %s14, 7
    %p85 = por %p83, %p84
    %p86 = scmp.ne.s32.totalorder %s75, %s76
    %p87 = scmp.eq.s32.totalorder %s14, 0
    %p88 = por %p86, %p87
    %p89 = scmp.ne.s32.totalorder %s75, %s76
    %p90 = scmp.eq.s32.totalorder %s15, 7
    %p91 = por %p89, %p90
    %p93 = scmp.ne.s32.totalorder %s76, %s92
    %p94 = scmp.eq.s32.totalorder %s15, 0
    %p95 = por %p93, %p94
    %s96 = sadd.s32 %s17, 8
    %s97 = sadd.s32 %s31, 8
    %s98 = ssub.s32 %s16, %s35
    %s99 = ssub.s32 %s96, %s97
    %s100 = sor.u32 %s98, %s99
    %s101 = ssub.s32 %s18, %s27
    %s102 = sor.u32 %s100, %s101
    %p103 = scmp.eq.s32.totalorder %s102, 0
    %s105 = sadd.s32 %s104, 1
    %s106 = scalar_select %p103, %s104, %s105
    %p109 = pneg %p103
    %p110 = scmp.eq.s32.totalorder %s9, 7
    %p111 = por %p109, %p110
    %p112 = scmp.ne.s32.totalorder %s104, %s107
    %p113 = scmp.eq.s32.totalorder %s9, 0
    %p114 = por %p112, %p113
    %p115 = scmp.ne.s32.totalorder %s104, %s107
    %p116 = scmp.eq.s32.totalorder %s14, 7
    %p117 = por %p115, %p116
    %p118 = scmp.ne.s32.totalorder %s107, %s108
    %p119 = scmp.eq.s32.totalorder %s14, 0
    %p120 = por %p118, %p119
    %p121 = scmp.ne.s32.totalorder %s107, %s108
    %p122 = scmp.eq.s32.totalorder %s15, 7
    %p123 = por %p121, %p122
    %p125 = scmp.ne.s32.totalorder %s108, %s124
    %p126 = scmp.eq.s32.totalorder %s15, 0
    %p127 = por %p125, %p126
    %s128 = ssub.s32 %s16, %s35
    %s129 = ssub.s32 %s17, %s31
    %s130 = sor.u32 %s128, %s129
    %p131 = scmp.eq.s32.totalorder %s130, 0
    %s133 = sadd.s32 %s132, 1
    %s134 = scalar_select %p131, %s132, %s133
    %p137 = pneg %p131
    %p138 = scmp.eq.s32.totalorder %s9, 7
    %p139 = por %p137, %p138
    %p140 = scmp.ne.s32.totalorder %s132, %s135
    %p141 = scmp.eq.s32.totalorder %s9, 0
    %p142 = por %p140, %p141
    %p143 = scmp.ne.s32.totalorder %s132, %s135
    %p144 = scmp.eq.s32.totalorder %s14, 7
    %p145 = por %p143, %p144
    %p146 = scmp.ne.s32.totalorder %s135, %s136
    %p147 = scmp.eq.s32.totalorder %s14, 0
    %p148 = por %p146, %p147
    %p149 = scmp.ne.s32.totalorder %s135, %s136
    %p150 = scmp.eq.s32.totalorder %s15, 7
    %p151 = por %p149, %p150
    %p153 = scmp.ne.s32.totalorder %s136, %s152
    %p154 = scmp.eq.s32.totalorder %s15, 0
    %p155 = por %p153, %p154
    %p156 = scmp.le.s32.totalorder 1, %s9
    %p157 = scmp.lt.s32.totalorder %s9, 9
    %p158 = pnand %p156, %p157
    %p159 = pneg %p158
    // Predicated region
    $region9: #{forward.22} parent=5 // pred_check
      _
    $region10: #{forward.22} parent=5 // pred_check_branch
      %161 = sbr.rel (%p158) target = $region12
    $region11: #{forward.22} parent=5 // pred_region
      %s162 = ssub.s32 %s9, 1
    $region12: #{forward.22} parent=5 // pred_fallthru
      _
    %p163 = scmp.lt.s32.totalorder %s9, 8
    // Predicated region
    $region13: #{forward.22} parent=5 // pred_check
      %p164 = pneg %p163
    $region14: #{forward.22} parent=5 // pred_check_branch
      %166 = sbr.rel (%p164) target = $region16
    $region15: #{forward.22} parent=5 // pred_region
      // Predicated region
      $region17: #{forward.22} parent=15 // pred_check
        %p167 = pneg %p50
      $region18: #{forward.22} parent=15 // pred_check_branch
        %169 = sbr.rel (%p167) target = $region20
      $region19: #{forward.22} parent=15 // pred_region
        %p170 = scmp.lt.s32.totalorder %s16, 1
        %s171 = scalar_select %p170, %s16, 1
        %p172 = scmp.lt.s32.totalorder %s17, 11
        %s173 = scalar_select %p172, %s17, 11
        %s174 = smul.addr %s173, 2
        %s175 = smul.addr %s171, 24
        %s176 = sadd.s32 %s174, %s175
        %s177 = smul.addr %s176, 4
        %s178 = scalar_lea.vmem %s0, %s177
      $region20: #{forward.22} parent=15 // pred_fallthru
        _
      // Predicated region
      $region21: #{forward.22} parent=15 // pred_check
        %p179 = pneg %p82
      $region22: #{forward.22} parent=15 // pred_check_branch
        %181 = sbr.rel (%p179) target = $region24
      $region23: #{forward.22} parent=15 // pred_region
        %s182 = sadd.s32 %s17, 4
        %s183 = smul.u32 2, %s18
        %p184 = scmp.lt.s32.totalorder %s16, 1
        %s185 = scalar_select %p184, %s16, 1
        %p186 = scmp.lt.s32.totalorder %s182, 11
        %s187 = scalar_select %p186, %s182, 11
        %p188 = scmp.lt.s32.totalorder %s183, 1
        %s189 = scalar_select %p188, %s183, 1
        %s190 = smul.addr %s187, 2
        %s191 = sadd.s32 %s189, %s190
        %s192 = smul.addr %s185, 24
        %s193 = sadd.s32 %s191, %s192
        %s194 = smul.addr %s193, 4
        %s195 = scalar_lea.vmem %s1, %s194
        %s196 = sadd.s32 %s17, 4
        %s197 = smul.u32 2, %s18
      $region24: #{forward.22} parent=15 // pred_fallthru
        _
      // Predicated region
      $region25: #{forward.22} parent=15 // pred_check
        %p198 = pneg %p114
      $region26: #{forward.22} parent=15 // pred_check_branch
        %200 = sbr.rel (%p198) target = $region28
      $region27: #{forward.22} parent=15 // pred_region
        %s201 = sadd.s32 %s17, 8
        %s202 = smul.u32 2, %s18
        %p203 = scmp.lt.s32.totalorder %s16, 1
        %s204 = scalar_select %p203, %s16, 1
        %p205 = scmp.lt.s32.totalorder %s201, 11
        %s206 = scalar_select %p205, %s201, 11
        %p207 = scmp.lt.s32.totalorder %s202, 1
        %s208 = scalar_select %p207, %s202, 1
        %s209 = smul.addr %s206, 2
        %s210 = sadd.s32 %s208, %s209
        %s211 = smul.addr %s204, 24
        %s212 = sadd.s32 %s210, %s211
        %s213 = smul.addr %s212, 4
        %s214 = scalar_lea.vmem %s2, %s213
        %s215 = sadd.s32 %s17, 8
        %s216 = smul.u32 2, %s18
      $region28: #{forward.22} parent=15 // pred_fallthru
        _
    $region16: #{forward.22} parent=5 // pred_fallthru
      _
    %p217 = scmp.le.s32.totalorder 1, %s9
    %p218 = scmp.lt.s32.totalorder %s9, 9
    %p219 = pnand %p217, %p218
    %p220 = pneg %p219
    // Predicated region
    $region29: #{forward.22} parent=5 // pred_check
      _
    $region30: #{forward.22} parent=5 // pred_check_branch
      %222 = sbr.rel (%p219) target = $region32
    $region31: #{forward.22} parent=5 // pred_region
      %s223 = ssub.s32 %s9, 1
      %p224 = scmp.lt.s32.totalorder %s19, 1
      %s225 = scalar_select %p224, %s19, 1
      %p226 = scmp.lt.s32.totalorder %s20, 11
      %s227 = scalar_select %p226, %s20, 11
      %s228 = smul.addr %s227, 2
      %s229 = smul.addr %s225, 24
      %s230 = sadd.s32 %s228, %s229
      %s231 = smul.addr %s230, 4
      %s232 = scalar_lea.vmem %s0, %s231
      %p233 = pneg %p56
      %p234 = pneg %p53
      %s235 = sadd.s32 %s20, 4
      %s236 = smul.u32 2, %s21
      %p237 = scmp.lt.s32.totalorder %s19, 1
      %s238 = scalar_select %p237, %s19, 1
      %p239 = scmp.lt.s32.totalorder %s235, 11
      %s240 = scalar_select %p239, %s235, 11
      %p241 = scmp.lt.s32.totalorder %s236, 1
      %s242 = scalar_select %p241, %s236, 1
      %s243 = smul.addr %s240, 2
      %s244 = sadd.s32 %s242, %s243
      %s245 = smul.addr %s238, 24
      %s246 = sadd.s32 %s244, %s245
      %s247 = smul.addr %s246, 4
      %s248 = scalar_lea.vmem %s1, %s247
      %p249 = pneg %p88
      %p250 = pneg %p85
      %s251 = sadd.s32 %s20, 8
      %s252 = smul.u32 2, %s21
      %p253 = scmp.lt.s32.totalorder %s19, 1
      %s254 = scalar_select %p253, %s19, 1
      %p255 = scmp.lt.s32.totalorder %s251, 11
      %s256 = scalar_select %p255, %s251, 11
      %p257 = scmp.lt.s32.totalorder %s252, 1
      %s258 = scalar_select %p257, %s252, 1
      %s259 = smul.addr %s256, 2
      %s260 = sadd.s32 %s258, %s259
      %s261 = smul.addr %s254, 24
      %s262 = sadd.s32 %s260, %s261
      %s263 = smul.addr %s262, 4
      %s264 = scalar_lea.vmem %s2, %s263
      %p265 = pneg %p120
      %p266 = pneg %p117
      %p267 = pneg %p148
      %p268 = pneg %p145
      %p269 = scmp.lt.s32.totalorder %s19, 1
      %s270 = scalar_select %p269, %s19, 1
      %p271 = scmp.lt.s32.totalorder %s20, 3
      %s272 = scalar_select %p271, %s20, 3
      %s273 = smul.addr %s272, 2
      %s274 = smul.addr %s270, 8
      %s275 = sadd.s32 %s273, %s274
      %s276 = smul.addr %s275, 4
      %s277 = scalar_lea.vmem %s3, %s276
      %p278 = scmp.lt.s32.totalorder %s19, 1
      %s279 = scalar_select %p278, %s19, 1
      %p280 = scmp.lt.s32.totalorder %s20, 11
      %s281 = scalar_select %p280, %s20, 11
      %s282 = smul.addr %s281, 2
      %s283 = smul.addr %s279, 24
      %s284 = sadd.s32 %s282, %s283
      %s285 = smul.addr %s284, 4
      %s286 = scalar_lea.vmem %s0, %s285
      %s287 = sadd.s32 %s20, 4
      %s288 = smul.u32 2, %s21
      %p289 = scmp.lt.s32.totalorder %s19, 1
      %s290 = scalar_select %p289, %s19, 1
      %p291 = scmp.lt.s32.totalorder %s287, 11
      %s292 = scalar_select %p291, %s287, 11
      %p293 = scmp.lt.s32.totalorder %s288, 1
      %s294 = scalar_select %p293, %s288, 1
      %s295 = smul.addr %s292, 2
      %s296 = sadd.s32 %s294, %s295
      %s297 = smul.addr %s290, 24
      %s298 = sadd.s32 %s296, %s297
      %s299 = smul.addr %s298, 4
      %s300 = scalar_lea.vmem %s1, %s299
      %s301 = sadd.s32 %s20, 4
      %s302 = smul.u32 2, %s21
      %s303 = sadd.s32 %s20, 8
      %s304 = smul.u32 2, %s21
      %p305 = scmp.lt.s32.totalorder %s19, 1
      %s306 = scalar_select %p305, %s19, 1
      %p307 = scmp.lt.s32.totalorder %s303, 11
      %s308 = scalar_select %p307, %s303, 11
      %p309 = scmp.lt.s32.totalorder %s304, 1
      %s310 = scalar_select %p309, %s304, 1
      %s311 = smul.addr %s308, 2
      %s312 = sadd.s32 %s310, %s311
      %s313 = smul.addr %s306, 24
      %s314 = sadd.s32 %s312, %s313
      %s315 = smul.addr %s314, 4
      %s316 = scalar_lea.vmem %s2, %s315
      %s317 = sadd.s32 %s20, 8
      %s318 = smul.u32 2, %s21
      %p319 = scmp.lt.s32.totalorder %s19, 1
      %s320 = scalar_select %p319, %s19, 1
      %p321 = scmp.lt.s32.totalorder %s20, 3
      %s322 = scalar_select %p321, %s20, 3
      %s323 = smul.addr %s322, 2
      %s324 = smul.addr %s320, 8
      %s325 = sadd.s32 %s323, %s324
      %s326 = smul.addr %s325, 4
      %s327 = scalar_lea.vmem %s3, %s326
      %p329 = scmp.eq.s32.totalorder %s21, 0
      // Predicated region
      $region33: #{forward.22} parent=31 // pred_check
        %p330 = pneg %p329
      $region34: #{forward.22} parent=31 // pred_check_branch
        %332 = sbr.rel (%p330) target = $region36
      $region35: #{forward.22} parent=31 // pred_region
        %vm333 = vcmask 7168
        %334 = vst.msk [vmem:[#allocation2] sm:$0xff] %vm333, -inf
        %335 = vst.msk [vmem:[#allocation2 + $0x8] sm:$0xff] %vm333, -inf
        %336 = vst.msk [vmem:[#allocation3] sm:$0xff] %vm333, 0.0
        %337 = vst.msk [vmem:[#allocation3 + $0x8] sm:$0xff] %vm333, 0.0
        %vm338 = vcmask 130048
        %339 = vst.msk [vmem:[#allocation4] sm:$0xff] %vm338, 0.0
        %340 = vst.msk [vmem:[#allocation4 + $0x8] sm:$0xff] %vm338, 0.0
      $region36: #{forward.22} parent=31 // pred_fallthru
        _
      %v341 = vld [vmem:[%s286] sm:$0xf]
      %v342 = vld [vmem:[%s286 + $0x4] sm:$0xf]
      %v343 = vld [vmem:[%s300] sm:$0xf]
      %v344 = vld [vmem:[%s300 + $0x4] sm:$0xf]
      %v345 = vld [vmem:[%s316] sm:$0xf]
      %v346 = vld [vmem:[%s316 + $0x4] sm:$0xf]
      %v349 = vunpack.c.l.b16 %v341
      %v350 = vunpack.c.l.b16 %v342
      %v351 = vpack.c.b16 %v350, %v349
      %v354 = vunpack.c.l.b16 %v343
      %v355 = vunpack.c.l.b16 %v344
      %v356 = vpack.c.b16 %v355, %v354
      %vm357 = vcmask 130048
      %v359 = vsel %vm357, %v351, 0
      %v362 = vsel %vm357, %v356, 0
      %364 = vmatpush.bf16.xpose.msra.mxu0 0
      %365 = vmatpush.bf16.xpose.msra.mxu0 0
      %366 = vmatpush.bf16.xpose.msra.mxu0 0
      %367 = vmatpush.bf16.xpose.msra.mxu0 0
      %368 = vmatpush.bf16.xpose.msra.mxu0 0
      %369 = vmatpush.bf16.xpose.msra.mxu0 0
      %370 = vmatpush.bf16.xpose.msra.mxu0 0
      %371 = vmatpush.bf16.xpose.msra.mxu0 %v362
      %372 = vmatmul.bf16.gmra.mxu0 %v359
      %v373 = vpop.f32.mrf.mxu0
      %v374 = vadd.f32 0.0, %v373
      %v375 = vpop.f32.mrf.mxu0
      %v376 = vadd.f32 0.0, %v375
      %377 = vdwg.mxu0
      %v378 = vmul.f32 %v374, 0.25
      %v379 = vmul.f32 %v376, 0.25
      %v380 = vld [vmem:[#allocation2] sm:$0xff]
      %v381 = vld [vmem:[#allocation2 + $0x8] sm:$0xff]
      %v382 = vsel %vm357, %v378, -inf
      %383 = vmax.xlane.f32.xlu0 %v382
      %v384 = vpop.xlane.xlu0 %383
      %v385 = vsel %vm357, %v379, -inf
      %386 = vmax.xlane.f32.xlu0 %v385
      %v387 = vpop.xlane.xlu0 %386
      %v388 = vmax.f32 %v380, %v384
      %v389 = vmax.f32 %v381, %v387
      %v390 = vsub.f32 %v380, %v388
      %v391 = vsub.f32 %v381, %v389
      %v392 = vmul.f32 %v390, 1.442695
      %v393 = vpow.pop %v392
      %v394 = vmul.f32 %v391, 1.442695
      %v395 = vpow.pop %v394
      %397 = vset.pattern.permute.xlu0 0
      %398 = vperm.xlu0 %397, %v388
      %v399 = vpop.permute.xlu0 %398
      %402 = vset.pattern.permute.xlu0 0
      %403 = vperm.xlu0 %402, %v389
      %v404 = vpop.permute.xlu0 %403
      %v406 = vsub.f32 %v378, %v399
      %v407 = vsub.f32 %v379, %v404
      %v408 = vmul.f32 %v406, 1.442695
      %v409 = vpow.pop %v408
      %v410 = vmul.f32 %v407, 1.442695
      %v411 = vpow.pop %v410
      %v412 = vld [vmem:[#allocation3] sm:$0xff]
      %v413 = vld [vmem:[#allocation3 + $0x8] sm:$0xff]
      %v414 = vmul.f32 %v393, %v412
      %v415 = vmul.f32 %v395, %v413
      %v416 = vsel %vm357, %v409, 0.0
      %417 = vadd.xlane.f32.xlu0 %v416
      %v418 = vpop.xlane.xlu0 %417
      %v419 = vsel %vm357, %v411, 0.0
      %420 = vadd.xlane.f32.xlu0 %v419
      %v421 = vpop.xlane.xlu0 %420
      %v422 = vadd.f32 %v414, %v418
      %v423 = vadd.f32 %v415, %v421
      %vm424 = vcmask 7168
      %425 = vst.msk [vmem:[#allocation3] sm:$0xff] %vm424, %v422
      %426 = vst.msk [vmem:[#allocation3 + $0x8] sm:$0xff] %vm424, %v423
      %v427 = vld [vmem:[#allocation4] sm:$0xff]
      %v428 = vld [vmem:[#allocation4 + $0x8] sm:$0xff]
      %430 = vset.pattern.permute.xlu0 0
      %431 = vperm.xlu0 %430, %v393
      %v432 = vpop.permute.xlu0 %431
      %435 = vset.pattern.permute.xlu0 0
      %436 = vperm.xlu0 %435, %v395
      %v437 = vpop.permute.xlu0 %436
      %v439 = vmul.f32 %v432, %v427
      %v440 = vmul.f32 %v437, %v428
      %v441 = vpack.c.bf16 %v411, %v409
      %v444 = vunpack.c.l.b16 %v345
      %v445 = vunpack.c.l.b16 %v346
      %v446 = vpack.c.b16 %v445, %v444
      %v449 = vsel %vm357, %v441, 0
      %451 = vmatpush.bf16.msra.mxu0 0
      %452 = vmatpush.bf16.msra.mxu0 0
      %453 = vmatpush.bf16.msra.mxu0 0
      %454 = vmatpush.bf16.msra.mxu0 0
      %455 = vmatpush.bf16.msra.mxu0 0
      %456 = vmatpush.bf16.msra.mxu0 0
      %457 = vmatpush.bf16.msra.mxu0 0
      %458 = vmatpush.bf16.msra.mxu0 %v446
      %459 = vmatmul.bf16.gmra.mxu0 %v449
      %v460 = vpop.f32.mrf.mxu0
      %v461 = vadd.f32 0.0, %v460
      %v462 = vpop.f32.mrf.mxu0
      %v463 = vadd.f32 0.0, %v462
      %464 = vdwg.mxu0
      %v465 = vadd.f32 %v439, %v461
      %v466 = vadd.f32 %v440, %v463
      %467 = vst.msk [vmem:[#allocation4] sm:$0xff] %vm357, %v465
      %468 = vst.msk [vmem:[#allocation4 + $0x8] sm:$0xff] %vm357, %v466
      %469 = vst.msk [vmem:[#allocation2] sm:$0xff] %vm424, %v388
      %470 = vst.msk [vmem:[#allocation2 + $0x8] sm:$0xff] %vm424, %v389
      // Predicated region
      $region37: #{forward.22} parent=31 // pred_check
        %p471 = pneg %p329
      $region38: #{forward.22} parent=31 // pred_check_branch
        %473 = sbr.rel (%p471) target = $region40
      $region39: #{forward.22} parent=31 // pred_region
        %v474 = vld [vmem:[#allocation4] sm:$0xff]
        %v475 = vld [vmem:[#allocation4 + $0x8] sm:$0xff]
        %v476 = vld [vmem:[#allocation3] sm:$0xff]
        %v477 = vld [vmem:[#allocation3 + $0x8] sm:$0xff]
        %v478 = vrcp.pop %v476
        %v479 = vrcp.pop %v477
        %481 = vset.pattern.permute.xlu0 0
        %482 = vperm.xlu0 %481, %v478
        %v483 = vpop.permute.xlu0 %482
        %486 = vset.pattern.permute.xlu0 0
        %487 = vperm.xlu0 %486, %v479
        %v488 = vpop.permute.xlu0 %487
        %v490 = vmul.f32 %v474, %v483
        %v491 = vmul.f32 %v475, %v488
        %v492 = vpack.c.bf16 %v490, %v490
        %v493 = vpack.c.bf16 %v491, %v491
        %vm494 = vcmask 125952
        %495 = vst.msk [vmem:[%s327] sm:$0xf] %vm494, %v492
        %496 = vst.msk [vmem:[%s327 + $0x4] sm:$0xf] %vm494, %v493
      $region40: #{forward.22} parent=31 // pred_fallthru
        _
      %p497 = scmp.lt.s32.totalorder %s19, 1
      %s498 = scalar_select %p497, %s19, 1
      %p499 = scmp.lt.s32.totalorder %s20, 3
      %s500 = scalar_select %p499, %s20, 3
      %s501 = smul.addr %s500, 2
      %s502 = smul.addr %s498, 8
      %s503 = sadd.s32 %s501, %s502
      %s504 = smul.addr %s503, 4
      %s505 = scalar_lea.vmem %s3, %s504
      // Predicated region
      $region41: #{forward.22} parent=31 // pred_check
        %p506 = pneg %p145
      $region42: #{forward.22} parent=31 // pred_check_branch
        %508 = sbr.rel (%p506) target = $region44
      $region43: #{forward.22} parent=31 // pred_region
        _
      $region44: #{forward.22} parent=31 // pred_fallthru
        _
    $region32: #{forward.22} parent=5 // pred_fallthru
      _
    %p509 = scmp.le.s32.totalorder 2, %s9
    // Predicated region
    $region45: #{forward.22} parent=5 // pred_check
      %p510 = pneg %p509
    $region46: #{forward.22} parent=5 // pred_check_branch
      %512 = sbr.rel (%p510) target = $region48
    $region47: #{forward.22} parent=5 // pred_region
      %s513 = ssub.s32 %s9, 2
      // Predicated region
      $region49: #{forward.22} parent=47 // pred_check
        %p514 = pneg %p151
      $region50: #{forward.22} parent=47 // pred_check_branch
        %516 = sbr.rel (%p514) target = $region52
      $region51: #{forward.22} parent=47 // pred_region
        %p517 = scmp.lt.s32.totalorder %s22, 1
        %s518 = scalar_select %p517, %s22, 1
        %p519 = scmp.lt.s32.totalorder %s23, 3
        %s520 = scalar_select %p519, %s23, 3
        %s521 = smul.addr %s520, 2
        %s522 = smul.addr %s518, 8
        %s523 = sadd.s32 %s521, %s522
        %s524 = smul.addr %s523, 4
        %s525 = scalar_lea.vmem %s3, %s524
      $region52: #{forward.22} parent=47 // pred_fallthru
        _
    $region48: #{forward.22} parent=5 // pred_fallthru
      _
  $region6: #{forward.22} parent=0 // loop_footer
    %s13 = sadd.s32 1, %s9
  $region7: #{forward.22} parent=0 // loop_footer_branch
    %8 = sbr.rel target = $region3
  $region8: #{forward.22} parent=0 // loop_exit
    _

// kernel: forward.23
$region0: #{forward.23}
  #allocation0 [shape = 'u32[]', space=smem, size = 0x4, offset = 0x4, fixed_abs, tag = 'smem constant byte address 0x4 - core index']
  #allocation1 [shape = 'u32[72,128]{1,0:T(1,128)}', space=vmem, size = 0x9000, scoped, tag = 'internal scratch']
  #allocation2 [shape = 'f32[128,64]{1,0:T(8,128)}', space=vmem, size = 0x10000, scoped, tag = 'scratch operand']
  %s0 = inlined_call_operand.vmem [shape: bf16[128,64], index: 0, kind: input, shape index: {}]
  %s1 = inlined_call_operand.vmem [shape: bf16[64,64], index: 1, kind: input, shape index: {}]
  %s2 = inlined_call_operand.vmem [shape: f32[1,64], index: 2, kind: input, shape index: {}]
  %s3 = inlined_call_operand.vmem [shape: f32[128,64], index: 3, kind: input, shape index: {}]
  %s4 = inlined_call_operand.vmem [shape: f32[128,64], index: 4, kind: output, shape index: {}]
  %s5 = sld [smem:[#allocation0]]
  $region34: #{forward.23} parent=0
    _
  %s7 = ssub.s32 1, %s5
  %s8 = scalar_select 0, %s7, %s5
  // Predicated region
  $region2: #{forward.23} parent=0 // pred_check
    _
  $region3: #{forward.23} parent=0 // pred_check_branch
    %10 = sbr.rel (0) target = $region5
  $region4: #{forward.23} parent=0 // pred_region
    _
  $region5: #{forward.23} parent=0 // pred_fallthru
    _
  // Predicated region
  $region6: #{forward.23} parent=0 // pred_check
    _
  $region7: #{forward.23} parent=0 // pred_check_branch
    %12 = sbr.rel (0) target = $region9
  $region8: #{forward.23} parent=0 // pred_region
    _
  $region9: #{forward.23} parent=0 // pred_fallthru
    _
  // Predicated region
  $region10: #{forward.23} parent=0 // pred_check
    _
  $region11: #{forward.23} parent=0 // pred_check_branch
    %14 = sbr.rel (0) target = $region13
  $region12: #{forward.23} parent=0 // pred_region
    _
  $region13: #{forward.23} parent=0 // pred_fallthru
    _
  // Predicated region
  $region14: #{forward.23} parent=0 // pred_check
    _
  $region15: #{forward.23} parent=0 // pred_check_branch
    %16 = sbr.rel (0) target = $region17
  $region16: #{forward.23} parent=0 // pred_region
    _
  $region17: #{forward.23} parent=0 // pred_fallthru
    _
  %p18 = scmp.eq.s32.totalorder 0, 0
  // Predicated region
  $region18: #{forward.23} parent=0 // pred_check
    %p19 = pneg %p18
  $region19: #{forward.23} parent=0 // pred_check_branch
    %21 = sbr.rel (%p19) target = $region21
  $region20: #{forward.23} parent=0 // pred_region
    %vm22 = vcmask 523264
    %23 = vst.msk [vmem:[#allocation2] sm:$0xff] %vm22, 0.0
    %24 = vst.msk [vmem:[#allocation2 + $0x8] sm:$0xff] %vm22, 0.0
    %25 = vst.msk [vmem:[#allocation2 + $0x10] sm:$0xff] %vm22, 0.0
    %26 = vst.msk [vmem:[#allocation2 + $0x18] sm:$0xff] %vm22, 0.0
    %27 = vst.msk [vmem:[#allocation2 + $0x20] sm:$0xff] %vm22, 0.0
    %28 = vst.msk [vmem:[#allocation2 + $0x28] sm:$0xff] %vm22, 0.0
    %29 = vst.msk [vmem:[#allocation2 + $0x30] sm:$0xff] %vm22, 0.0
    %30 = vst.msk [vmem:[#allocation2 + $0x38] sm:$0xff] %vm22, 0.0
    %31 = vst.msk [vmem:[#allocation2 + $0x40] sm:$0xff] %vm22, 0.0
    %32 = vst.msk [vmem:[#allocation2 + $0x48] sm:$0xff] %vm22, 0.0
    %33 = vst.msk [vmem:[#allocation2 + $0x50] sm:$0xff] %vm22, 0.0
    %34 = vst.msk [vmem:[#allocation2 + $0x58] sm:$0xff] %vm22, 0.0
    %35 = vst.msk [vmem:[#allocation2 + $0x60] sm:$0xff] %vm22, 0.0
    %36 = vst.msk [vmem:[#allocation2 + $0x68] sm:$0xff] %vm22, 0.0
    %37 = vst.msk [vmem:[#allocation2 + $0x70] sm:$0xff] %vm22, 0.0
    %38 = vst.msk [vmem:[#allocation2 + $0x78] sm:$0xff] %vm22, 0.0
  $region21: #{forward.23} parent=0 // pred_fallthru
    _
  %v39 = vld [vmem:[#allocation2] sm:$0xff]
  %v40 = vld [vmem:[#allocation2 + $0x8] sm:$0xff]
  %v41 = vld [vmem:[#allocation2 + $0x10] sm:$0xff]
  %v42 = vld [vmem:[#allocation2 + $0x18] sm:$0xff]
  %v43 = vld [vmem:[#allocation2 + $0x20] sm:$0xff]
  %v44 = vld [vmem:[#allocation2 + $0x28] sm:$0xff]
  %v45 = vld [vmem:[#allocation2 + $0x30] sm:$0xff]
  %v46 = vld [vmem:[#allocation2 + $0x38] sm:$0xff]
  %v47 = vld [vmem:[#allocation2 + $0x40] sm:$0xff]
  %v48 = vld [vmem:[#allocation2 + $0x48] sm:$0xff]
  %v49 = vld [vmem:[#allocation2 + $0x50] sm:$0xff]
  %v50 = vld [vmem:[#allocation2 + $0x58] sm:$0xff]
  %v51 = vld [vmem:[#allocation2 + $0x60] sm:$0xff]
  %v52 = vld [vmem:[#allocation2 + $0x68] sm:$0xff]
  %v53 = vld [vmem:[#allocation2 + $0x70] sm:$0xff]
  %v54 = vld [vmem:[#allocation2 + $0x78] sm:$0xff]
  %v55 = vld [vmem:[%s0] sm:$0xf]
  %v56 = vld [vmem:[%s0 + $0x4] sm:$0xf]
  %v57 = vld [vmem:[%s0 + $0x8] sm:$0xf]
  %v58 = vld [vmem:[%s0 + $0xc] sm:$0xf]
  %v59 = vld [vmem:[%s0 + $0x10] sm:$0xf]
  %v60 = vld [vmem:[%s0 + $0x14] sm:$0xf]
  %v61 = vld [vmem:[%s0 + $0x18] sm:$0xf]
  %v62 = vld [vmem:[%s0 + $0x1c] sm:$0xf]
  %v63 = vld [vmem:[%s0 + $0x20] sm:$0xf]
  %v64 = vld [vmem:[%s0 + $0x24] sm:$0xf]
  %v65 = vld [vmem:[%s0 + $0x28] sm:$0xf]
  %v66 = vld [vmem:[%s0 + $0x2c] sm:$0xf]
  %v67 = vld [vmem:[%s0 + $0x30] sm:$0xf]
  %v68 = vld [vmem:[%s0 + $0x34] sm:$0xf]
  %v69 = vld [vmem:[%s0 + $0x38] sm:$0xf]
  %v70 = vld [vmem:[%s0 + $0x3c] sm:$0xf]
  %v71 = vld [vmem:[%s1] sm:$0xf]
  %v72 = vld [vmem:[%s1 + $0x4] sm:$0xf]
  %v73 = vld [vmem:[%s1 + $0x8] sm:$0xf]
  %v74 = vld [vmem:[%s1 + $0xc] sm:$0xf]
  %v75 = vld [vmem:[%s1 + $0x10] sm:$0xf]
  %v76 = vld [vmem:[%s1 + $0x14] sm:$0xf]
  %v77 = vld [vmem:[%s1 + $0x18] sm:$0xf]
  %v78 = vld [vmem:[%s1 + $0x1c] sm:$0xf]
  %v95 = vunpack.c.l.b16 %v55
  %v96 = vunpack.c.l.b16 %v56
  %v97 = vunpack.c.l.b16 %v57
  %v98 = vunpack.c.l.b16 %v58
  %v99 = vunpack.c.l.b16 %v59
  %v100 = vunpack.c.l.b16 %v60
  %v101 = vunpack.c.l.b16 %v61
  %v102 = vunpack.c.l.b16 %v62
  %v103 = vunpack.c.l.b16 %v63
  %v104 = vunpack.c.l.b16 %v64
  %v105 = vunpack.c.l.b16 %v65
  %v106 = vunpack.c.l.b16 %v66
  %v107 = vunpack.c.l.b16 %v67
  %v108 = vunpack.c.l.b16 %v68
  %v109 = vunpack.c.l.b16 %v69
  %v110 = vunpack.c.l.b16 %v70
  %v111 = vpack.c.b16 %v96, %v95
  %v112 = vpack.c.b16 %v98, %v97
  %v113 = vpack.c.b16 %v100, %v99
  %v114 = vpack.c.b16 %v102, %v101
  %v115 = vpack.c.b16 %v104, %v103
  %v116 = vpack.c.b16 %v106, %v105
  %v117 = vpack.c.b16 %v108, %v107
  %v118 = vpack.c.b16 %v110, %v109
  %v127 = vunpack.c.l.b16 %v71
  %v128 = vunpack.c.l.b16 %v72
  %v129 = vunpack.c.l.b16 %v73
  %v130 = vunpack.c.l.b16 %v74
  %v131 = vunpack.c.l.b16 %v75
  %v132 = vunpack.c.l.b16 %v76
  %v133 = vunpack.c.l.b16 %v77
  %v134 = vunpack.c.l.b16 %v78
  %v135 = vpack.c.b16 %v128, %v127
  %v136 = vpack.c.b16 %v130, %v129
  %v137 = vpack.c.b16 %v132, %v131
  %v138 = vpack.c.b16 %v134, %v133
  %vm143 = vcmask 523264
  %v145 = vsel %vm143, %v111, 0
  %v148 = vsel %vm143, %v112, 0
  %v151 = vsel %vm143, %v113, 0
  %v154 = vsel %vm143, %v114, 0
  %v157 = vsel %vm143, %v115, 0
  %v160 = vsel %vm143, %v116, 0
  %v163 = vsel %vm143, %v117, 0
  %v166 = vsel %vm143, %v118, 0
  %168 = vmatpush.bf16.msra.mxu0 0
  %169 = vmatpush.bf16.msra.mxu0 0
  %170 = vmatpush.bf16.msra.mxu0 0
  %171 = vmatpush.bf16.msra.mxu0 0
  %172 = vmatpush.bf16.msra.mxu0 %v138
  %173 = vmatpush.bf16.msra.mxu0 %v137
  %174 = vmatpush.bf16.msra.mxu0 %v136
  %175 = vmatpush.bf16.msra.mxu0 %v135
  %176 = vmatmul.bf16.gmra.mxu0 %v145
  %v177 = vpop.f32.mrf.mxu0
  %v178 = vadd.f32 0.0, %v177
  %v179 = vpop.f32.mrf.mxu0
  %v180 = vadd.f32 0.0, %v179
  %181 = vmatmul.bf16.gmra.mxu0 %v148
  %v182 = vpop.f32.mrf.mxu0
  %v183 = vadd.f32 0.0, %v182
  %v184 = vpop.f32.mrf.mxu0
  %v185 = vadd.f32 0.0, %v184
  %186 = vmatmul.bf16.gmra.mxu0 %v151
  %v187 = vpop.f32.mrf.mxu0
  %v188 = vadd.f32 0.0, %v187
  %v189 = vpop.f32.mrf.mxu0
  %v190 = vadd.f32 0.0, %v189
  %191 = vmatmul.bf16.gmra.mxu0 %v154
  %v192 = vpop.f32.mrf.mxu0
  %v193 = vadd.f32 0.0, %v192
  %v194 = vpop.f32.mrf.mxu0
  %v195 = vadd.f32 0.0, %v194
  %196 = vmatmul.bf16.gmra.mxu0 %v157
  %v197 = vpop.f32.mrf.mxu0
  %v198 = vadd.f32 0.0, %v197
  %v199 = vpop.f32.mrf.mxu0
  %v200 = vadd.f32 0.0, %v199
  %201 = vmatmul.bf16.gmra.mxu0 %v160
  %v202 = vpop.f32.mrf.mxu0
  %v203 = vadd.f32 0.0, %v202
  %v204 = vpop.f32.mrf.mxu0
  %v205 = vadd.f32 0.0, %v204
  %206 = vmatmul.bf16.gmra.mxu0 %v163
  %v207 = vpop.f32.mrf.mxu0
  %v208 = vadd.f32 0.0, %v207
  %v209 = vpop.f32.mrf.mxu0
  %v210 = vadd.f32 0.0, %v209
  %211 = vmatmul.bf16.gmra.mxu0 %v166
  %v212 = vpop.f32.mrf.mxu0
  %v213 = vadd.f32 0.0, %v212
  %v214 = vpop.f32.mrf.mxu0
  %v215 = vadd.f32 0.0, %v214
  %216 = vdwg.mxu0
  %v217 = vadd.f32 %v39, %v178
  %v218 = vadd.f32 %v40, %v180
  %v219 = vadd.f32 %v41, %v183
  %v220 = vadd.f32 %v42, %v185
  %v221 = vadd.f32 %v43, %v188
  %v222 = vadd.f32 %v44, %v190
  %v223 = vadd.f32 %v45, %v193
  %v224 = vadd.f32 %v46, %v195
  %v225 = vadd.f32 %v47, %v198
  %v226 = vadd.f32 %v48, %v200
  %v227 = vadd.f32 %v49, %v203
  %v228 = vadd.f32 %v50, %v205
  %v229 = vadd.f32 %v51, %v208
  %v230 = vadd.f32 %v52, %v210
  %v231 = vadd.f32 %v53, %v213
  %v232 = vadd.f32 %v54, %v215
  %233 = vst.msk [vmem:[#allocation2] sm:$0xff] %vm143, %v217
  %234 = vst.msk [vmem:[#allocation2 + $0x8] sm:$0xff] %vm143, %v218
  %235 = vst.msk [vmem:[#allocation2 + $0x10] sm:$0xff] %vm143, %v219
  %236 = vst.msk [vmem:[#allocation2 + $0x18] sm:$0xff] %vm143, %v220
  %237 = vst.msk [vmem:[#allocation2 + $0x20] sm:$0xff] %vm143, %v221
  %238 = vst.msk [vmem:[#allocation2 + $0x28] sm:$0xff] %vm143, %v222
  %239 = vst.msk [vmem:[#allocation2 + $0x30] sm:$0xff] %vm143, %v223
  %240 = vst.msk [vmem:[#allocation2 + $0x38] sm:$0xff] %vm143, %v224
  %241 = vst.msk [vmem:[#allocation2 + $0x40] sm:$0xff] %vm143, %v225
  %242 = vst.msk [vmem:[#allocation2 + $0x48] sm:$0xff] %vm143, %v226
  %243 = vst.msk [vmem:[#allocation2 + $0x50] sm:$0xff] %vm143, %v227
  %244 = vst.msk [vmem:[#allocation2 + $0x58] sm:$0xff] %vm143, %v228
  %245 = vst.msk [vmem:[#allocation2 + $0x60] sm:$0xff] %vm143, %v229
  %246 = vst.msk [vmem:[#allocation2 + $0x68] sm:$0xff] %vm143, %v230
  %247 = vst.msk [vmem:[#allocation2 + $0x70] sm:$0xff] %vm143, %v231
  %248 = vst.msk [vmem:[#allocation2 + $0x78] sm:$0xff] %vm143, %v232
  // Predicated region
  $region22: #{forward.23} parent=0 // pred_check
    %p249 = pneg %p18
  $region23: #{forward.23} parent=0 // pred_check_branch
    %251 = sbr.rel (%p249) target = $region25
  $region24: #{forward.23} parent=0 // pred_region
    %v252 = vld [vmem:[#allocation2] sm:$0xff]
    %v253 = vld [vmem:[#allocation2 + $0x8] sm:$0xff]
    %v254 = vld [vmem:[#allocation2 + $0x10] sm:$0xff]
    %v255 = vld [vmem:[#allocation2 + $0x18] sm:$0xff]
    %v256 = vld [vmem:[#allocation2 + $0x20] sm:$0xff]
    %v257 = vld [vmem:[#allocation2 + $0x28] sm:$0xff]
    %v258 = vld [vmem:[#allocation2 + $0x30] sm:$0xff]
    %v259 = vld [vmem:[#allocation2 + $0x38] sm:$0xff]
    %v260 = vld [vmem:[#allocation2 + $0x40] sm:$0xff]
    %v261 = vld [vmem:[#allocation2 + $0x48] sm:$0xff]
    %v262 = vld [vmem:[#allocation2 + $0x50] sm:$0xff]
    %v263 = vld [vmem:[#allocation2 + $0x58] sm:$0xff]
    %v264 = vld [vmem:[#allocation2 + $0x60] sm:$0xff]
    %v265 = vld [vmem:[#allocation2 + $0x68] sm:$0xff]
    %v266 = vld [vmem:[#allocation2 + $0x70] sm:$0xff]
    %v267 = vld [vmem:[#allocation2 + $0x78] sm:$0xff]
    %v268 = vld [vmem:[%s2] sm:$0x1]
    %v270 = vperm.slane %v268, 0
    %v272 = vadd.f32 %v252, %v270
    %v273 = vadd.f32 %v253, %v270
    %v274 = vadd.f32 %v254, %v270
    %v275 = vadd.f32 %v255, %v270
    %v276 = vadd.f32 %v256, %v270
    %v277 = vadd.f32 %v257, %v270
    %v278 = vadd.f32 %v258, %v270
    %v279 = vadd.f32 %v259, %v270
    %v280 = vadd.f32 %v260, %v270
    %v281 = vadd.f32 %v261, %v270
    %v282 = vadd.f32 %v262, %v270
    %v283 = vadd.f32 %v263, %v270
    %v284 = vadd.f32 %v264, %v270
    %v285 = vadd.f32 %v265, %v270
    %v286 = vadd.f32 %v266, %v270
    %v287 = vadd.f32 %v267, %v270
    %v288 = vld [vmem:[%s3] sm:$0xff]
    %v289 = vld [vmem:[%s3 + $0x8] sm:$0xff]
    %v290 = vld [vmem:[%s3 + $0x10] sm:$0xff]
    %v291 = vld [vmem:[%s3 + $0x18] sm:$0xff]
    %v292 = vld [vmem:[%s3 + $0x20] sm:$0xff]
    %v293 = vld [vmem:[%s3 + $0x28] sm:$0xff]
    %v294 = vld [vmem:[%s3 + $0x30] sm:$0xff]
    %v295 = vld [vmem:[%s3 + $0x38] sm:$0xff]
    %v296 = vld [vmem:[%s3 + $0x40] sm:$0xff]
    %v297 = vld [vmem:[%s3 + $0x48] sm:$0xff]
    %v298 = vld [vmem:[%s3 + $0x50] sm:$0xff]
    %v299 = vld [vmem:[%s3 + $0x58] sm:$0xff]
    %v300 = vld [vmem:[%s3 + $0x60] sm:$0xff]
    %v301 = vld [vmem:[%s3 + $0x68] sm:$0xff]
    %v302 = vld [vmem:[%s3 + $0x70] sm:$0xff]
    %v303 = vld [vmem:[%s3 + $0x78] sm:$0xff]
    %v304 = vadd.f32 %v272, %v288
    %v305 = vadd.f32 %v273, %v289
    %v306 = vadd.f32 %v274, %v290
    %v307 = vadd.f32 %v275, %v291
    %v308 = vadd.f32 %v276, %v292
    %v309 = vadd.f32 %v277, %v293
    %v310 = vadd.f32 %v278, %v294
    %v311 = vadd.f32 %v279, %v295
    %v312 = vadd.f32 %v280, %v296
    %v313 = vadd.f32 %v281, %v297
    %v314 = vadd.f32 %v282, %v298
    %v315 = vadd.f32 %v283, %v299
    %v316 = vadd.f32 %v284, %v300
    %v317 = vadd.f32 %v285, %v301
    %v318 = vadd.f32 %v286, %v302
    %v319 = vadd.f32 %v287, %v303
    %320 = vst.msk [vmem:[%s4] sm:$0xff] %vm143, %v304
    %321 = vst.msk [vmem:[%s4 + $0x8] sm:$0xff] %vm143, %v305
    %322 = vst.msk [vmem:[%s4 + $0x10] sm:$0xff] %vm143, %v306
    %323 = vst.msk [vmem:[%s4 + $0x18] sm:$0xff] %vm143, %v307
    %324 = vst.msk [vmem:[%s4 + $0x20] sm:$0xff] %vm143, %v308
    %325 = vst.msk [vmem:[%s4 + $0x28] sm:$0xff] %vm143, %v309
    %326 = vst.msk [vmem:[%s4 + $0x30] sm:$0xff] %vm143, %v310
    %327 = vst.msk [vmem:[%s4 + $0x38] sm:$0xff] %vm143, %v311
    %328 = vst.msk [vmem:[%s4 + $0x40] sm:$0xff] %vm143, %v312
    %329 = vst.msk [vmem:[%s4 + $0x48] sm:$0xff] %vm143, %v313
    %330 = vst.msk [vmem:[%s4 + $0x50] sm:$0xff] %vm143, %v314
    %331 = vst.msk [vmem:[%s4 + $0x58] sm:$0xff] %vm143, %v315
    %332 = vst.msk [vmem:[%s4 + $0x60] sm:$0xff] %vm143, %v316
    %333 = vst.msk [vmem:[%s4 + $0x68] sm:$0xff] %vm143, %v317
    %334 = vst.msk [vmem:[%s4 + $0x70] sm:$0xff] %vm143, %v318
    %335 = vst.msk [vmem:[%s4 + $0x78] sm:$0xff] %vm143, %v319
  $region25: #{forward.23} parent=0 // pred_fallthru
    _
  // Predicated region
  $region26: #{forward.23} parent=0 // pred_check
    _
  $region27: #{forward.23} parent=0 // pred_check_branch
    %337 = sbr.rel (0) target = $region29
  $region28: #{forward.23} parent=0 // pred_region
    _
  $region29: #{forward.23} parent=0 // pred_fallthru
    _
  // Predicated region
  $region30: #{forward.23} parent=0 // pred_check
    _
  $region31: #{forward.23} parent=0 // pred_check_branch
    %339 = sbr.rel (0) target = $region33
  $region32: #{forward.23} parent=0 // pred_region
    _
  $region33: #{forward.23} parent=0 // pred_fallthru
    _

// kernel: forward.20
$region0: #{forward.20}
  #allocation0 [shape = 'u32[]', space=smem, size = 0x4, offset = 0x4, fixed_abs, tag = 'smem constant byte address 0x4 - core index']
  #allocation1 [shape = 'u32[72,128]{1,0:T(1,128)}', space=vmem, size = 0x9000, scoped, tag = 'internal scratch']
  #allocation2 [shape = 'f32[128,64]{1,0:T(8,128)}', space=vmem, size = 0x10000, scoped, tag = 'scratch operand']
  %s0 = inlined_call_operand.vmem [shape: bf16[128,128], index: 0, kind: input, shape index: {}]
  %s1 = inlined_call_operand.vmem [shape: bf16[128,64], index: 1, kind: input, shape index: {}]
  %s2 = inlined_call_operand.vmem [shape: f32[128,64], index: 2, kind: input, shape index: {}]
  %s3 = inlined_call_operand.vmem [shape: f32[128,64], index: 3, kind: output, shape index: {}]
  %s4 = sld [smem:[#allocation0]]
  $region30: #{forward.20} parent=0
    _
  %s6 = ssub.s32 1, %s4
  %s7 = scalar_select 0, %s6, %s4
  // Predicated region
  $region2: #{forward.20} parent=0 // pred_check
    _
  $region3: #{forward.20} parent=0 // pred_check_branch
    %9 = sbr.rel (0) target = $region5
  $region4: #{forward.20} parent=0 // pred_region
    _
  $region5: #{forward.20} parent=0 // pred_fallthru
    _
  // Predicated region
  $region6: #{forward.20} parent=0 // pred_check
    _
  $region7: #{forward.20} parent=0 // pred_check_branch
    %11 = sbr.rel (0) target = $region9
  $region8: #{forward.20} parent=0 // pred_region
    _
  $region9: #{forward.20} parent=0 // pred_fallthru
    _
  // Predicated region
  $region10: #{forward.20} parent=0 // pred_check
    _
  $region11: #{forward.20} parent=0 // pred_check_branch
    %13 = sbr.rel (0) target = $region13
  $region12: #{forward.20} parent=0 // pred_region
    _
  $region13: #{forward.20} parent=0 // pred_fallthru
    _
  %p14 = scmp.eq.s32.totalorder 0, 0
  // Predicated region
  $region14: #{forward.20} parent=0 // pred_check
    %p15 = pneg %p14
  $region15: #{forward.20} parent=0 // pred_check_branch
    %17 = sbr.rel (%p15) target = $region17
  $region16: #{forward.20} parent=0 // pred_region
    %vm18 = vcmask 523264
    %19 = vst.msk [vmem:[#allocation2] sm:$0xff] %vm18, 0.0
    %20 = vst.msk [vmem:[#allocation2 + $0x8] sm:$0xff] %vm18, 0.0
    %21 = vst.msk [vmem:[#allocation2 + $0x10] sm:$0xff] %vm18, 0.0
    %22 = vst.msk [vmem:[#allocation2 + $0x18] sm:$0xff] %vm18, 0.0
    %23 = vst.msk [vmem:[#allocation2 + $0x20] sm:$0xff] %vm18, 0.0
    %24 = vst.msk [vmem:[#allocation2 + $0x28] sm:$0xff] %vm18, 0.0
    %25 = vst.msk [vmem:[#allocation2 + $0x30] sm:$0xff] %vm18, 0.0
    %26 = vst.msk [vmem:[#allocation2 + $0x38] sm:$0xff] %vm18, 0.0
    %27 = vst.msk [vmem:[#allocation2 + $0x40] sm:$0xff] %vm18, 0.0
    %28 = vst.msk [vmem:[#allocation2 + $0x48] sm:$0xff] %vm18, 0.0
    %29 = vst.msk [vmem:[#allocation2 + $0x50] sm:$0xff] %vm18, 0.0
    %30 = vst.msk [vmem:[#allocation2 + $0x58] sm:$0xff] %vm18, 0.0
    %31 = vst.msk [vmem:[#allocation2 + $0x60] sm:$0xff] %vm18, 0.0
    %32 = vst.msk [vmem:[#allocation2 + $0x68] sm:$0xff] %vm18, 0.0
    %33 = vst.msk [vmem:[#allocation2 + $0x70] sm:$0xff] %vm18, 0.0
    %34 = vst.msk [vmem:[#allocation2 + $0x78] sm:$0xff] %vm18, 0.0
  $region17: #{forward.20} parent=0 // pred_fallthru
    _
  %v35 = vld [vmem:[#allocation2] sm:$0xff]
  %v36 = vld [vmem:[#allocation2 + $0x8] sm:$0xff]
  %v37 = vld [vmem:[#allocation2 + $0x10] sm:$0xff]
  %v38 = vld [vmem:[#allocation2 + $0x18] sm:$0xff]
  %v39 = vld [vmem:[#allocation2 + $0x20] sm:$0xff]
  %v40 = vld [vmem:[#allocation2 + $0x28] sm:$0xff]
  %v41 = vld [vmem:[#allocation2 + $0x30] sm:$0xff]
  %v42 = vld [vmem:[#allocation2 + $0x38] sm:$0xff]
  %v43 = vld [vmem:[#allocation2 + $0x40] sm:$0xff]
  %v44 = vld [vmem:[#allocation2 + $0x48] sm:$0xff]
  %v45 = vld [vmem:[#allocation2 + $0x50] sm:$0xff]
  %v46 = vld [vmem:[#allocation2 + $0x58] sm:$0xff]
  %v47 = vld [vmem:[#allocation2 + $0x60] sm:$0xff]
  %v48 = vld [vmem:[#allocation2 + $0x68] sm:$0xff]
  %v49 = vld [vmem:[#allocation2 + $0x70] sm:$0xff]
  %v50 = vld [vmem:[#allocation2 + $0x78] sm:$0xff]
  %v51 = vld [vmem:[%s0] sm:$0xf]
  %v52 = vld [vmem:[%s0 + $0x4] sm:$0xf]
  %v53 = vld [vmem:[%s0 + $0x8] sm:$0xf]
  %v54 = vld [vmem:[%s0 + $0xc] sm:$0xf]
  %v55 = vld [vmem:[%s0 + $0x10] sm:$0xf]
  %v56 = vld [vmem:[%s0 + $0x14] sm:$0xf]
  %v57 = vld [vmem:[%s0 + $0x18] sm:$0xf]
  %v58 = vld [vmem:[%s0 + $0x1c] sm:$0xf]
  %v59 = vld [vmem:[%s0 + $0x20] sm:$0xf]
  %v60 = vld [vmem:[%s0 + $0x24] sm:$0xf]
  %v61 = vld [vmem:[%s0 + $0x28] sm:$0xf]
  %v62 = vld [vmem:[%s0 + $0x2c] sm:$0xf]
  %v63 = vld [vmem:[%s0 + $0x30] sm:$0xf]
  %v64 = vld [vmem:[%s0 + $0x34] sm:$0xf]
  %v65 = vld [vmem:[%s0 + $0x38] sm:$0xf]
  %v66 = vld [vmem:[%s0 + $0x3c] sm:$0xf]
  %v67 = vld [vmem:[%s1] sm:$0xf]
  %v68 = vld [vmem:[%s1 + $0x4] sm:$0xf]
  %v69 = vld [vmem:[%s1 + $0x8] sm:$0xf]
  %v70 = vld [vmem:[%s1 + $0xc] sm:$0xf]
  %v71 = vld [vmem:[%s1 + $0x10] sm:$0xf]
  %v72 = vld [vmem:[%s1 + $0x14] sm:$0xf]
  %v73 = vld [vmem:[%s1 + $0x18] sm:$0xf]
  %v74 = vld [vmem:[%s1 + $0x1c] sm:$0xf]
  %v75 = vld [vmem:[%s1 + $0x20] sm:$0xf]
  %v76 = vld [vmem:[%s1 + $0x24] sm:$0xf]
  %v77 = vld [vmem:[%s1 + $0x28] sm:$0xf]
  %v78 = vld [vmem:[%s1 + $0x2c] sm:$0xf]
  %v79 = vld [vmem:[%s1 + $0x30] sm:$0xf]
  %v80 = vld [vmem:[%s1 + $0x34] sm:$0xf]
  %v81 = vld [vmem:[%s1 + $0x38] sm:$0xf]
  %v82 = vld [vmem:[%s1 + $0x3c] sm:$0xf]
  %v99 = vunpack.c.l.b16 %v51
  %v100 = vunpack.c.l.b16 %v52
  %v101 = vunpack.c.l.b16 %v53
  %v102 = vunpack.c.l.b16 %v54
  %v103 = vunpack.c.l.b16 %v55
  %v104 = vunpack.c.l.b16 %v56
  %v105 = vunpack.c.l.b16 %v57
  %v106 = vunpack.c.l.b16 %v58
  %v107 = vunpack.c.l.b16 %v59
  %v108 = vunpack.c.l.b16 %v60
  %v109 = vunpack.c.l.b16 %v61
  %v110 = vunpack.c.l.b16 %v62
  %v111 = vunpack.c.l.b16 %v63
  %v112 = vunpack.c.l.b16 %v64
  %v113 = vunpack.c.l.b16 %v65
  %v114 = vunpack.c.l.b16 %v66
  %v115 = vpack.c.b16 %v100, %v99
  %v116 = vpack.c.b16 %v102, %v101
  %v117 = vpack.c.b16 %v104, %v103
  %v118 = vpack.c.b16 %v106, %v105
  %v119 = vpack.c.b16 %v108, %v107
  %v120 = vpack.c.b16 %v110, %v109
  %v121 = vpack.c.b16 %v112, %v111
  %v122 = vpack.c.b16 %v114, %v113
  %v147 = vunpack.c.l.b16 %v67
  %v148 = vunpack.c.l.b16 %v68
  %v149 = vunpack.c.l.b16 %v69
  %v150 = vunpack.c.l.b16 %v70
  %v151 = vunpack.c.l.b16 %v71
  %v152 = vunpack.c.l.b16 %v72
  %v153 = vunpack.c.l.b16 %v73
  %v154 = vunpack.c.l.b16 %v74
  %v155 = vunpack.c.l.b16 %v75
  %v156 = vunpack.c.l.b16 %v76
  %v157 = vunpack.c.l.b16 %v77
  %v158 = vunpack.c.l.b16 %v78
  %v159 = vunpack.c.l.b16 %v79
  %v160 = vunpack.c.l.b16 %v80
  %v161 = vunpack.c.l.b16 %v81
  %v162 = vunpack.c.l.b16 %v82
  %v163 = vpack.c.b16 %v148, %v147
  %v164 = vpack.c.b16 %v150, %v149
  %v165 = vpack.c.b16 %v152, %v151
  %v166 = vpack.c.b16 %v154, %v153
  %v167 = vpack.c.b16 %v156, %v155
  %v168 = vpack.c.b16 %v158, %v157
  %v169 = vpack.c.b16 %v160, %v159
  %v170 = vpack.c.b16 %v162, %v161
  %179 = vmatpush.bf16.msra.mxu0 %v170
  %180 = vmatpush.bf16.msra.mxu0 %v169
  %181 = vmatpush.bf16.msra.mxu0 %v168
  %182 = vmatpush.bf16.msra.mxu0 %v167
  %183 = vmatpush.bf16.msra.mxu0 %v166
  %184 = vmatpush.bf16.msra.mxu0 %v165
  %185 = vmatpush.bf16.msra.mxu0 %v164
  %186 = vmatpush.bf16.msra.mxu0 %v163
  %187 = vmatmul.bf16.gmra.mxu0 %v115
  %v188 = vpop.f32.mrf.mxu0
  %v189 = vadd.f32 0.0, %v188
  %v190 = vpop.f32.mrf.mxu0
  %v191 = vadd.f32 0.0, %v190
  %192 = vmatmul.bf16.gmra.mxu0 %v116
  %v193 = vpop.f32.mrf.mxu0
  %v194 = vadd.f32 0.0, %v193
  %v195 = vpop.f32.mrf.mxu0
  %v196 = vadd.f32 0.0, %v195
  %197 = vmatmul.bf16.gmra.mxu0 %v117
  %v198 = vpop.f32.mrf.mxu0
  %v199 = vadd.f32 0.0, %v198
  %v200 = vpop.f32.mrf.mxu0
  %v201 = vadd.f32 0.0, %v200
  %202 = vmatmul.bf16.gmra.mxu0 %v118
  %v203 = vpop.f32.mrf.mxu0
  %v204 = vadd.f32 0.0, %v203
  %v205 = vpop.f32.mrf.mxu0
  %v206 = vadd.f32 0.0, %v205
  %207 = vmatmul.bf16.gmra.mxu0 %v119
  %v208 = vpop.f32.mrf.mxu0
  %v209 = vadd.f32 0.0, %v208
  %v210 = vpop.f32.mrf.mxu0
  %v211 = vadd.f32 0.0, %v210
  %212 = vmatmul.bf16.gmra.mxu0 %v120
  %v213 = vpop.f32.mrf.mxu0
  %v214 = vadd.f32 0.0, %v213
  %v215 = vpop.f32.mrf.mxu0
  %v216 = vadd.f32 0.0, %v215
  %217 = vmatmul.bf16.gmra.mxu0 %v121
  %v218 = vpop.f32.mrf.mxu0
  %v219 = vadd.f32 0.0, %v218
  %v220 = vpop.f32.mrf.mxu0
  %v221 = vadd.f32 0.0, %v220
  %222 = vmatmul.bf16.gmra.mxu0 %v122
  %v223 = vpop.f32.mrf.mxu0
  %v224 = vadd.f32 0.0, %v223
  %v225 = vpop.f32.mrf.mxu0
  %v226 = vadd.f32 0.0, %v225
  %227 = vdwg.mxu0
  %v228 = vadd.f32 %v35, %v189
  %v229 = vadd.f32 %v36, %v191
  %v230 = vadd.f32 %v37, %v194
  %v231 = vadd.f32 %v38, %v196
  %v232 = vadd.f32 %v39, %v199
  %v233 = vadd.f32 %v40, %v201
  %v234 = vadd.f32 %v41, %v204
  %v235 = vadd.f32 %v42, %v206
  %v236 = vadd.f32 %v43, %v209
  %v237 = vadd.f32 %v44, %v211
  %v238 = vadd.f32 %v45, %v214
  %v239 = vadd.f32 %v46, %v216
  %v240 = vadd.f32 %v47, %v219
  %v241 = vadd.f32 %v48, %v221
  %v242 = vadd.f32 %v49, %v224
  %v243 = vadd.f32 %v50, %v226
  %vm244 = vcmask 523264
  %245 = vst.msk [vmem:[#allocation2] sm:$0xff] %vm244, %v228
  %246 = vst.msk [vmem:[#allocation2 + $0x8] sm:$0xff] %vm244, %v229
  %247 = vst.msk [vmem:[#allocation2 + $0x10] sm:$0xff] %vm244, %v230
  %248 = vst.msk [vmem:[#allocation2 + $0x18] sm:$0xff] %vm244, %v231
  %249 = vst.msk [vmem:[#allocation2 + $0x20] sm:$0xff] %vm244, %v232
  %250 = vst.msk [vmem:[#allocation2 + $0x28] sm:$0xff] %vm244, %v233
  %251 = vst.msk [vmem:[#allocation2 + $0x30] sm:$0xff] %vm244, %v234
  %252 = vst.msk [vmem:[#allocation2 + $0x38] sm:$0xff] %vm244, %v235
  %253 = vst.msk [vmem:[#allocation2 + $0x40] sm:$0xff] %vm244, %v236
  %254 = vst.msk [vmem:[#allocation2 + $0x48] sm:$0xff] %vm244, %v237
  %255 = vst.msk [vmem:[#allocation2 + $0x50] sm:$0xff] %vm244, %v238
  %256 = vst.msk [vmem:[#allocation2 + $0x58] sm:$0xff] %vm244, %v239
  %257 = vst.msk [vmem:[#allocation2 + $0x60] sm:$0xff] %vm244, %v240
  %258 = vst.msk [vmem:[#allocation2 + $0x68] sm:$0xff] %vm244, %v241
  %259 = vst.msk [vmem:[#allocation2 + $0x70] sm:$0xff] %vm244, %v242
  %260 = vst.msk [vmem:[#allocation2 + $0x78] sm:$0xff] %vm244, %v243
  // Predicated region
  $region18: #{forward.20} parent=0 // pred_check
    %p261 = pneg %p14
  $region19: #{forward.20} parent=0 // pred_check_branch
    %263 = sbr.rel (%p261) target = $region21
  $region20: #{forward.20} parent=0 // pred_region
    %v264 = vld [vmem:[#allocation2] sm:$0xff]
    %v265 = vld [vmem:[#allocation2 + $0x8] sm:$0xff]
    %v266 = vld [vmem:[#allocation2 + $0x10] sm:$0xff]
    %v267 = vld [vmem:[#allocation2 + $0x18] sm:$0xff]
    %v268 = vld [vmem:[#allocation2 + $0x20] sm:$0xff]
    %v269 = vld [vmem:[#allocation2 + $0x28] sm:$0xff]
    %v270 = vld [vmem:[#allocation2 + $0x30] sm:$0xff]
    %v271 = vld [vmem:[#allocation2 + $0x38] sm:$0xff]
    %v272 = vld [vmem:[#allocation2 + $0x40] sm:$0xff]
    %v273 = vld [vmem:[#allocation2 + $0x48] sm:$0xff]
    %v274 = vld [vmem:[#allocation2 + $0x50] sm:$0xff]
    %v275 = vld [vmem:[#allocation2 + $0x58] sm:$0xff]
    %v276 = vld [vmem:[#allocation2 + $0x60] sm:$0xff]
    %v277 = vld [vmem:[#allocation2 + $0x68] sm:$0xff]
    %v278 = vld [vmem:[#allocation2 + $0x70] sm:$0xff]
    %v279 = vld [vmem:[#allocation2 + $0x78] sm:$0xff]
    %v280 = vld [vmem:[%s2] sm:$0xff]
    %v281 = vld [vmem:[%s2 + $0x8] sm:$0xff]
    %v282 = vld [vmem:[%s2 + $0x10] sm:$0xff]
    %v283 = vld [vmem:[%s2 + $0x18] sm:$0xff]
    %v284 = vld [vmem:[%s2 + $0x20] sm:$0xff]
    %v285 = vld [vmem:[%s2 + $0x28] sm:$0xff]
    %v286 = vld [vmem:[%s2 + $0x30] sm:$0xff]
    %v287 = vld [vmem:[%s2 + $0x38] sm:$0xff]
    %v288 = vld [vmem:[%s2 + $0x40] sm:$0xff]
    %v289 = vld [vmem:[%s2 + $0x48] sm:$0xff]
    %v290 = vld [vmem:[%s2 + $0x50] sm:$0xff]
    %v291 = vld [vmem:[%s2 + $0x58] sm:$0xff]
    %v292 = vld [vmem:[%s2 + $0x60] sm:$0xff]
    %v293 = vld [vmem:[%s2 + $0x68] sm:$0xff]
    %v294 = vld [vmem:[%s2 + $0x70] sm:$0xff]
    %v295 = vld [vmem:[%s2 + $0x78] sm:$0xff]
    %v296 = vadd.f32 %v264, %v280
    %v297 = vadd.f32 %v265, %v281
    %v298 = vadd.f32 %v266, %v282
    %v299 = vadd.f32 %v267, %v283
    %v300 = vadd.f32 %v268, %v284
    %v301 = vadd.f32 %v269, %v285
    %v302 = vadd.f32 %v270, %v286
    %v303 = vadd.f32 %v271, %v287
    %v304 = vadd.f32 %v272, %v288
    %v305 = vadd.f32 %v273, %v289
    %v306 = vadd.f32 %v274, %v290
    %v307 = vadd.f32 %v275, %v291
    %v308 = vadd.f32 %v276, %v292
    %v309 = vadd.f32 %v277, %v293
    %v310 = vadd.f32 %v278, %v294
    %v311 = vadd.f32 %v279, %v295
    %312 = vst.msk [vmem:[%s3] sm:$0xff] %vm244, %v296
    %313 = vst.msk [vmem:[%s3 + $0x8] sm:$0xff] %vm244, %v297
    %314 = vst.msk [vmem:[%s3 + $0x10] sm:$0xff] %vm244, %v298
    %315 = vst.msk [vmem:[%s3 + $0x18] sm:$0xff] %vm244, %v299
    %316 = vst.msk [vmem:[%s3 + $0x20] sm:$0xff] %vm244, %v300
    %317 = vst.msk [vmem:[%s3 + $0x28] sm:$0xff] %vm244, %v301
    %318 = vst.msk [vmem:[%s3 + $0x30] sm:$0xff] %vm244, %v302
    %319 = vst.msk [vmem:[%s3 + $0x38] sm:$0xff] %vm244, %v303
    %320 = vst.msk [vmem:[%s3 + $0x40] sm:$0xff] %vm244, %v304
    %321 = vst.msk [vmem:[%s3 + $0x48] sm:$0xff] %vm244, %v305
    %322 = vst.msk [vmem:[%s3 + $0x50] sm:$0xff] %vm244, %v306
    %323 = vst.msk [vmem:[%s3 + $0x58] sm:$0xff] %vm244, %v307
    %324 = vst.msk [vmem:[%s3 + $0x60] sm:$0xff] %vm244, %v308
    %325 = vst.msk [vmem:[%s3 + $0x68] sm:$0xff] %vm244, %v309
    %326 = vst.msk [vmem:[%s3 + $0x70] sm:$0xff] %vm244, %v310
    %327 = vst.msk [vmem:[%s3 + $0x78] sm:$0xff] %vm244, %v311
  $region21: #{forward.20} parent=0 // pred_fallthru
    _
  // Predicated region
  $region22: #{forward.20} parent=0 // pred_check
    _
  $region23: #{forward.20} parent=0 // pred_check_branch
    %329 = sbr.rel (0) target = $region25
  $region24: #{forward.20} parent=0 // pred_region
    _
  $region25: #{forward.20} parent=0 // pred_fallthru
    _
  // Predicated region
  $region26: #{forward.20} parent=0 // pred_check
    _
  $region27: #{forward.20} parent=0 // pred_check_branch
    %331 = sbr.rel (0) target = $region29
  $region28: #{forward.20} parent=0 // pred_region
    _
  $region29: #{forward.20} parent=0 // pred_fallthru
    _

// kernel: forward.27
$region0: #{forward.27}
  #allocation0 [shape = 'u32[]', space=smem, size = 0x4, offset = 0x4, fixed_abs, tag = 'smem constant byte address 0x4 - core index']
  #allocation1 [shape = 'u32[72,128]{1,0:T(1,128)}', space=vmem, size = 0x9000, scoped, tag = 'internal scratch']
  #allocation2 [shape = 'bf16[128,64]{1,0:T(8,128)(2,1)}', space=vmem, size = 0x8000, scoped, tag = 'scratch operand']
  %s0 = inlined_call_operand.vmem [shape: f32[128,64], index: 0, kind: input, shape index: {}]
  %s1 = inlined_call_operand.vmem [shape: f32[1,64], index: 1, kind: input, shape index: {}]
  %s2 = inlined_call_operand.vmem [shape: bf16[64,512], index: 2, kind: input, shape index: {}]
  %s3 = inlined_call_operand.vmem [shape: f32[1,512], index: 3, kind: input, shape index: {}]
  %s4 = inlined_call_operand.vmem [shape: f32[128,512], index: 4, kind: output, shape index: {}]
  %s5 = sld [smem:[#allocation0]]
  $region30: #{forward.27} parent=0
    _
  %s7 = ssub.s32 1, %s5
  %s8 = scalar_select 0, %s7, %s5
  // Predicated region
  $region2: #{forward.27} parent=0 // pred_check
    _
  $region3: #{forward.27} parent=0 // pred_check_branch
    %10 = sbr.rel (0) target = $region5
  $region4: #{forward.27} parent=0 // pred_region
    _
  $region5: #{forward.27} parent=0 // pred_fallthru
    _
  // Predicated region
  $region6: #{forward.27} parent=0 // pred_check
    _
  $region7: #{forward.27} parent=0 // pred_check_branch
    %12 = sbr.rel (0) target = $region9
  $region8: #{forward.27} parent=0 // pred_region
    _
  $region9: #{forward.27} parent=0 // pred_fallthru
    _
  // Predicated region
  $region10: #{forward.27} parent=0 // pred_check
    _
  $region11: #{forward.27} parent=0 // pred_check_branch
    %14 = sbr.rel (0) target = $region13
  $region12: #{forward.27} parent=0 // pred_region
    _
  $region13: #{forward.27} parent=0 // pred_fallthru
    _
  // Predicated region
  $region14: #{forward.27} parent=0 // pred_check
    _
  $region15: #{forward.27} parent=0 // pred_check_branch
    %16 = sbr.rel (0) target = $region17
  $region16: #{forward.27} parent=0 // pred_region
    _
  $region17: #{forward.27} parent=0 // pred_fallthru
    _
  %p18 = scmp.eq.s32.totalorder 0, 0
  // Predicated region
  $region18: #{forward.27} parent=0 // pred_check
    %p19 = pneg %p18
  $region19: #{forward.27} parent=0 // pred_check_branch
    %21 = sbr.rel (%p19) target = $region21
  $region20: #{forward.27} parent=0 // pred_region
    %v22 = vld [vmem:[%s0] sm:$0xff]
    %v23 = vld [vmem:[%s0 + $0x8] sm:$0xff]
    %v24 = vld [vmem:[%s0 + $0x10] sm:$0xff]
    %v25 = vld [vmem:[%s0 + $0x18] sm:$0xff]
    %v26 = vld [vmem:[%s0 + $0x20] sm:$0xff]
    %v27 = vld [vmem:[%s0 + $0x28] sm:$0xff]
    %v28 = vld [vmem:[%s0 + $0x30] sm:$0xff]
    %v29 = vld [vmem:[%s0 + $0x38] sm:$0xff]
    %v30 = vld [vmem:[%s0 + $0x40] sm:$0xff]
    %v31 = vld [vmem:[%s0 + $0x48] sm:$0xff]
    %v32 = vld [vmem:[%s0 + $0x50] sm:$0xff]
    %v33 = vld [vmem:[%s0 + $0x58] sm:$0xff]
    %v34 = vld [vmem:[%s0 + $0x60] sm:$0xff]
    %v35 = vld [vmem:[%s0 + $0x68] sm:$0xff]
    %v36 = vld [vmem:[%s0 + $0x70] sm:$0xff]
    %v37 = vld [vmem:[%s0 + $0x78] sm:$0xff]
    %v38 = vmul.f32 %v22, %v22
    %v39 = vmul.f32 %v23, %v23
    %v40 = vmul.f32 %v24, %v24
    %v41 = vmul.f32 %v25, %v25
    %v42 = vmul.f32 %v26, %v26
    %v43 = vmul.f32 %v27, %v27
    %v44 = vmul.f32 %v28, %v28
    %v45 = vmul.f32 %v29, %v29
    %v46 = vmul.f32 %v30, %v30
    %v47 = vmul.f32 %v31, %v31
    %v48 = vmul.f32 %v32, %v32
    %v49 = vmul.f32 %v33, %v33
    %v50 = vmul.f32 %v34, %v34
    %v51 = vmul.f32 %v35, %v35
    %v52 = vmul.f32 %v36, %v36
    %v53 = vmul.f32 %v37, %v37
    %vm54 = vcmask 523264
    %v55 = vsel %vm54, %v38, 0.0
    %56 = vadd.xlane.f32.xlu0 %v55
    %v57 = vpop.xlane.xlu0 %56
    %v58 = vsel %vm54, %v39, 0.0
    %59 = vadd.xlane.f32.xlu0 %v58
    %v60 = vpop.xlane.xlu0 %59
    %v61 = vsel %vm54, %v40, 0.0
    %62 = vadd.xlane.f32.xlu0 %v61
    %v63 = vpop.xlane.xlu0 %62
    %v64 = vsel %vm54, %v41, 0.0
    %65 = vadd.xlane.f32.xlu0 %v64
    %v66 = vpop.xlane.xlu0 %65
    %v67 = vsel %vm54, %v42, 0.0
    %68 = vadd.xlane.f32.xlu0 %v67
    %v69 = vpop.xlane.xlu0 %68
    %v70 = vsel %vm54, %v43, 0.0
    %71 = vadd.xlane.f32.xlu0 %v70
    %v72 = vpop.xlane.xlu0 %71
    %v73 = vsel %vm54, %v44, 0.0
    %74 = vadd.xlane.f32.xlu0 %v73
    %v75 = vpop.xlane.xlu0 %74
    %v76 = vsel %vm54, %v45, 0.0
    %77 = vadd.xlane.f32.xlu0 %v76
    %v78 = vpop.xlane.xlu0 %77
    %v79 = vsel %vm54, %v46, 0.0
    %80 = vadd.xlane.f32.xlu0 %v79
    %v81 = vpop.xlane.xlu0 %80
    %v82 = vsel %vm54, %v47, 0.0
    %83 = vadd.xlane.f32.xlu0 %v82
    %v84 = vpop.xlane.xlu0 %83
    %v85 = vsel %vm54, %v48, 0.0
    %86 = vadd.xlane.f32.xlu0 %v85
    %v87 = vpop.xlane.xlu0 %86
    %v88 = vsel %vm54, %v49, 0.0
    %89 = vadd.xlane.f32.xlu0 %v88
    %v90 = vpop.xlane.xlu0 %89
    %v91 = vsel %vm54, %v50, 0.0
    %92 = vadd.xlane.f32.xlu0 %v91
    %v93 = vpop.xlane.xlu0 %92
    %v94 = vsel %vm54, %v51, 0.0
    %95 = vadd.xlane.f32.xlu0 %v94
    %v96 = vpop.xlane.xlu0 %95
    %v97 = vsel %vm54, %v52, 0.0
    %98 = vadd.xlane.f32.xlu0 %v97
    %v99 = vpop.xlane.xlu0 %98
    %v100 = vsel %vm54, %v53, 0.0
    %101 = vadd.xlane.f32.xlu0 %v100
    %v102 = vpop.xlane.xlu0 %101
    %v103 = vrcp.pop 64.0
    %v104 = vmul.f32 64.0, %v103
    %v105 = vsub.f32 1.0, %v104
    %v106 = vmul.f32 %v103, %v105
    %v107 = vadd.f32 %v103, %v106
    %vm108 = vweird.f32 %v103
    %v109 = vsel %vm108, %v103, %v107
    %v110 = vmul.f32 %v57, %v109
    %v111 = vmul.f32 %v60, %v109
    %v112 = vmul.f32 %v63, %v109
    %v113 = vmul.f32 %v66, %v109
    %v114 = vmul.f32 %v69, %v109
    %v115 = vmul.f32 %v72, %v109
    %v116 = vmul.f32 %v75, %v109
    %v117 = vmul.f32 %v78, %v109
    %v118 = vmul.f32 %v81, %v109
    %v119 = vmul.f32 %v84, %v109
    %v120 = vmul.f32 %v87, %v109
    %v121 = vmul.f32 %v90, %v109
    %v122 = vmul.f32 %v93, %v109
    %v123 = vmul.f32 %v96, %v109
    %v124 = vmul.f32 %v99, %v109
    %v125 = vmul.f32 %v102, %v109
    %v126 = vadd.f32 %v110, 1e-06
    %v127 = vadd.f32 %v111, 1e-06
    %v128 = vadd.f32 %v112, 1e-06
    %v129 = vadd.f32 %v113, 1e-06
    %v130 = vadd.f32 %v114, 1e-06
    %v131 = vadd.f32 %v115, 1e-06
    %v132 = vadd.f32 %v116, 1e-06
    %v133 = vadd.f32 %v117, 1e-06
    %v134 = vadd.f32 %v118, 1e-06
    %v135 = vadd.f32 %v119, 1e-06
    %v136 = vadd.f32 %v120, 1e-06
    %v137 = vadd.f32 %v121, 1e-06
    %v138 = vadd.f32 %v122, 1e-06
    %v139 = vadd.f32 %v123, 1e-06
    %v140 = vadd.f32 %v124, 1e-06
    %v141 = vadd.f32 %v125, 1e-06
    %v142 = vrsqrt.pop %v126
    %v143 = vmul.f32 %v142, %v126
    %v144 = vmul.f32 %v143, %v142
    %v145 = vmul.f32 0.5, %v144
    %v146 = vsub.f32 1.5, %v145
    %v147 = vmul.f32 %v142, %v146
    %vm148 = vweird.f32 %v126
    %vm149 = vweird.f32 %v142
    %vm150 = vmor %vm148, %vm149
    %v151 = vsel %vm150, %v142, %v147
    %v152 = vrsqrt.pop %v127
    %v153 = vmul.f32 %v152, %v127
    %v154 = vmul.f32 %v153, %v152
    %v155 = vmul.f32 0.5, %v154
    %v156 = vsub.f32 1.5, %v155
    %v157 = vmul.f32 %v152, %v156
    %vm158 = vweird.f32 %v127
    %vm159 = vweird.f32 %v152
    %vm160 = vmor %vm158, %vm159
    %v161 = vsel %vm160, %v152, %v157
    %v162 = vrsqrt.pop %v128
    %v163 = vmul.f32 %v162, %v128
    %v164 = vmul.f32 %v163, %v162
    %v165 = vmul.f32 0.5, %v164
    %v166 = vsub.f32 1.5, %v165
    %v167 = vmul.f32 %v162, %v166
    %vm168 = vweird.f32 %v128
    %vm169 = vweird.f32 %v162
    %vm170 = vmor %vm168, %vm169
    %v171 = vsel %vm170, %v162, %v167
    %v172 = vrsqrt.pop %v129
    %v173 = vmul.f32 %v172, %v129
    %v174 = vmul.f32 %v173, %v172
    %v175 = vmul.f32 0.5, %v174
    %v176 = vsub.f32 1.5, %v175
    %v177 = vmul.f32 %v172, %v176
    %vm178 = vweird.f32 %v129
    %vm179 = vweird.f32 %v172
    %vm180 = vmor %vm178, %vm179
    %v181 = vsel %vm180, %v172, %v177
    %v182 = vrsqrt.pop %v130
    %v183 = vmul.f32 %v182, %v130
    %v184 = vmul.f32 %v183, %v182
    %v185 = vmul.f32 0.5, %v184
    %v186 = vsub.f32 1.5, %v185
    %v187 = vmul.f32 %v182, %v186
    %vm188 = vweird.f32 %v130
    %vm189 = vweird.f32 %v182
    %vm190 = vmor %vm188, %vm189
    %v191 = vsel %vm190, %v182, %v187
    %v192 = vrsqrt.pop %v131
    %v193 = vmul.f32 %v192, %v131
    %v194 = vmul.f32 %v193, %v192
    %v195 = vmul.f32 0.5, %v194
    %v196 = vsub.f32 1.5, %v195
    %v197 = vmul.f32 %v192, %v196
    %vm198 = vweird.f32 %v131
    %vm199 = vweird.f32 %v192
    %vm200 = vmor %vm198, %vm199
    %v201 = vsel %vm200, %v192, %v197
    %v202 = vrsqrt.pop %v132
    %v203 = vmul.f32 %v202, %v132
    %v204 = vmul.f32 %v203, %v202
    %v205 = vmul.f32 0.5, %v204
    %v206 = vsub.f32 1.5, %v205
    %v207 = vmul.f32 %v202, %v206
    %vm208 = vweird.f32 %v132
    %vm209 = vweird.f32 %v202
    %vm210 = vmor %vm208, %vm209
    %v211 = vsel %vm210, %v202, %v207
    %v212 = vrsqrt.pop %v133
    %v213 = vmul.f32 %v212, %v133
    %v214 = vmul.f32 %v213, %v212
    %v215 = vmul.f32 0.5, %v214
    %v216 = vsub.f32 1.5, %v215
    %v217 = vmul.f32 %v212, %v216
    %vm218 = vweird.f32 %v133
    %vm219 = vweird.f32 %v212
    %vm220 = vmor %vm218, %vm219
    %v221 = vsel %vm220, %v212, %v217
    %v222 = vrsqrt.pop %v134
    %v223 = vmul.f32 %v222, %v134
    %v224 = vmul.f32 %v223, %v222
    %v225 = vmul.f32 0.5, %v224
    %v226 = vsub.f32 1.5, %v225
    %v227 = vmul.f32 %v222, %v226
    %vm228 = vweird.f32 %v134
    %vm229 = vweird.f32 %v222
    %vm230 = vmor %vm228, %vm229
    %v231 = vsel %vm230, %v222, %v227
    %v232 = vrsqrt.pop %v135
    %v233 = vmul.f32 %v232, %v135
    %v234 = vmul.f32 %v233, %v232
    %v235 = vmul.f32 0.5, %v234
    %v236 = vsub.f32 1.5, %v235
    %v237 = vmul.f32 %v232, %v236
    %vm238 = vweird.f32 %v135
    %vm239 = vweird.f32 %v232
    %vm240 = vmor %vm238, %vm239
    %v241 = vsel %vm240, %v232, %v237
    %v242 = vrsqrt.pop %v136
    %v243 = vmul.f32 %v242, %v136
    %v244 = vmul.f32 %v243, %v242
    %v245 = vmul.f32 0.5, %v244
    %v246 = vsub.f32 1.5, %v245
    %v247 = vmul.f32 %v242, %v246
    %vm248 = vweird.f32 %v136
    %vm249 = vweird.f32 %v242
    %vm250 = vmor %vm248, %vm249
    %v251 = vsel %vm250, %v242, %v247
    %v252 = vrsqrt.pop %v137
    %v253 = vmul.f32 %v252, %v137
    %v254 = vmul.f32 %v253, %v252
    %v255 = vmul.f32 0.5, %v254
    %v256 = vsub.f32 1.5, %v255
    %v257 = vmul.f32 %v252, %v256
    %vm258 = vweird.f32 %v137
    %vm259 = vweird.f32 %v252
    %vm260 = vmor %vm258, %vm259
    %v261 = vsel %vm260, %v252, %v257
    %v262 = vrsqrt.pop %v138
    %v263 = vmul.f32 %v262, %v138
    %v264 = vmul.f32 %v263, %v262
    %v265 = vmul.f32 0.5, %v264
    %v266 = vsub.f32 1.5, %v265
    %v267 = vmul.f32 %v262, %v266
    %vm268 = vweird.f32 %v138
    %vm269 = vweird.f32 %v262
    %vm270 = vmor %vm268, %vm269
    %v271 = vsel %vm270, %v262, %v267
    %v272 = vrsqrt.pop %v139
    %v273 = vmul.f32 %v272, %v139
    %v274 = vmul.f32 %v273, %v272
    %v275 = vmul.f32 0.5, %v274
    %v276 = vsub.f32 1.5, %v275
    %v277 = vmul.f32 %v272, %v276
    %vm278 = vweird.f32 %v139
    %vm279 = vweird.f32 %v272
    %vm280 = vmor %vm278, %vm279
    %v281 = vsel %vm280, %v272, %v277
    %v282 = vrsqrt.pop %v140
    %v283 = vmul.f32 %v282, %v140
    %v284 = vmul.f32 %v283, %v282
    %v285 = vmul.f32 0.5, %v284
    %v286 = vsub.f32 1.5, %v285
    %v287 = vmul.f32 %v282, %v286
    %vm288 = vweird.f32 %v140
    %vm289 = vweird.f32 %v282
    %vm290 = vmor %vm288, %vm289
    %v291 = vsel %vm290, %v282, %v287
    %v292 = vrsqrt.pop %v141
    %v293 = vmul.f32 %v292, %v141
    %v294 = vmul.f32 %v293, %v292
    %v295 = vmul.f32 0.5, %v294
    %v296 = vsub.f32 1.5, %v295
    %v297 = vmul.f32 %v292, %v296
    %vm298 = vweird.f32 %v141
    %vm299 = vweird.f32 %v292
    %vm300 = vmor %vm298, %vm299
    %v301 = vsel %vm300, %v292, %v297
    %v302 = vmul.f32 %v22, %v151
    %v303 = vmul.f32 %v23, %v161
    %v304 = vmul.f32 %v24, %v171
    %v305 = vmul.f32 %v25, %v181
    %v306 = vmul.f32 %v26, %v191
    %v307 = vmul.f32 %v27, %v201
    %v308 = vmul.f32 %v28, %v211
    %v309 = vmul.f32 %v29, %v221
    %v310 = vmul.f32 %v30, %v231
    %v311 = vmul.f32 %v31, %v241
    %v312 = vmul.f32 %v32, %v251
    %v313 = vmul.f32 %v33, %v261
    %v314 = vmul.f32 %v34, %v271
    %v315 = vmul.f32 %v35, %v281
    %v316 = vmul.f32 %v36, %v291
    %v317 = vmul.f32 %v37, %v301
    %v318 = vld [vmem:[%s1] sm:$0x1]
    %v320 = vperm.slane %v318, 0
    %v322 = vmul.f32 %v302, %v320
    %v323 = vmul.f32 %v303, %v320
    %v324 = vmul.f32 %v304, %v320
    %v325 = vmul.f32 %v305, %v320
    %v326 = vmul.f32 %v306, %v320
    %v327 = vmul.f32 %v307, %v320
    %v328 = vmul.f32 %v308, %v320
    %v329 = vmul.f32 %v309, %v320
    %v330 = vmul.f32 %v310, %v320
    %v331 = vmul.f32 %v311, %v320
    %v332 = vmul.f32 %v312, %v320
    %v333 = vmul.f32 %v313, %v320
    %v334 = vmul.f32 %v314, %v320
    %v335 = vmul.f32 %v315, %v320
    %v336 = vmul.f32 %v316, %v320
    %v337 = vmul.f32 %v317, %v320
    %v338 = vpack.c.bf16 %v322, %v322
    %v339 = vpack.c.bf16 %v323, %v323
    %v340 = vpack.c.bf16 %v324, %v324
    %v341 = vpack.c.bf16 %v325, %v325
    %v342 = vpack.c.bf16 %v326, %v326
    %v343 = vpack.c.bf16 %v327, %v327
    %v344 = vpack.c.bf16 %v328, %v328
    %v345 = vpack.c.bf16 %v329, %v329
    %v346 = vpack.c.bf16 %v330, %v330
    %v347 = vpack.c.bf16 %v331, %v331
    %v348 = vpack.c.bf16 %v332, %v332
    %v349 = vpack.c.bf16 %v333, %v333
    %v350 = vpack.c.bf16 %v334, %v334
    %v351 = vpack.c.bf16 %v335, %v335
    %v352 = vpack.c.bf16 %v336, %v336
    %v353 = vpack.c.bf16 %v337, %v337
    %vm354 = vcmask 519168
    %355 = vst.msk [vmem:[#allocation2] sm:$0xf] %vm354, %v338
    %356 = vst.msk [vmem:[#allocation2 + $0x4] sm:$0xf] %vm354, %v339
    %357 = vst.msk [vmem:[#allocation2 + $0x8] sm:$0xf] %vm354, %v340
    %358 = vst.msk [vmem:[#allocation2 + $0xc] sm:$0xf] %vm354, %v341
    %359 = vst.msk [vmem:[#allocation2 + $0x10] sm:$0xf] %vm354, %v342
    %360 = vst.msk [vmem:[#allocation2 + $0x14] sm:$0xf] %vm354, %v343
    %361 = vst.msk [vmem:[#allocation2 + $0x18] sm:$0xf] %vm354, %v344
    %362 = vst.msk [vmem:[#allocation2 + $0x1c] sm:$0xf] %vm354, %v345
    %363 = vst.msk [vmem:[#allocation2 + $0x20] sm:$0xf] %vm354, %v346
    %364 = vst.msk [vmem:[#allocation2 + $0x24] sm:$0xf] %vm354, %v347
    %365 = vst.msk [vmem:[#allocation2 + $0x28] sm:$0xf] %vm354, %v348
    %366 = vst.msk [vmem:[#allocation2 + $0x2c] sm:$0xf] %vm354, %v349
    %367 = vst.msk [vmem:[#allocation2 + $0x30] sm:$0xf] %vm354, %v350
    %368 = vst.msk [vmem:[#allocation2 + $0x34] sm:$0xf] %vm354, %v351
    %369 = vst.msk [vmem:[#allocation2 + $0x38] sm:$0xf] %vm354, %v352
    %370 = vst.msk [vmem:[#allocation2 + $0x3c] sm:$0xf] %vm354, %v353
  $region21: #{forward.27} parent=0 // pred_fallthru
    _
  %v371 = vld [vmem:[#allocation2] sm:$0xf]
  %v372 = vld [vmem:[#allocation2 + $0x4] sm:$0xf]
  %v373 = vld [vmem:[#allocation2 + $0x8] sm:$0xf]
  %v374 = vld [vmem:[#allocation2 + $0xc] sm:$0xf]
  %v375 = vld [vmem:[#allocation2 + $0x10] sm:$0xf]
  %v376 = vld [vmem:[#allocation2 + $0x14] sm:$0xf]
  %v377 = vld [vmem:[#allocation2 + $0x18] sm:$0xf]
  %v378 = vld [vmem:[#allocation2 + $0x1c] sm:$0xf]
  %v379 = vld [vmem:[#allocation2 + $0x20] sm:$0xf]
  %v380 = vld [vmem:[#allocation2 + $0x24] sm:$0xf]
  %v381 = vld [vmem:[#allocation2 + $0x28] sm:$0xf]
  %v382 = vld [vmem:[#allocation2 + $0x2c] sm:$0xf]
  %v383 = vld [vmem:[#allocation2 + $0x30] sm:$0xf]
  %v384 = vld [vmem:[#allocation2 + $0x34] sm:$0xf]
  %v385 = vld [vmem:[#allocation2 + $0x38] sm:$0xf]
  %v386 = vld [vmem:[#allocation2 + $0x3c] sm:$0xf]
  %v387 = vld [vmem:[%s2] sm:$0xff]
  %v388 = vld [vmem:[%s2 + $0x8] sm:$0xff]
  %v389 = vld [vmem:[%s2 + $0x10] sm:$0xff]
  %v390 = vld [vmem:[%s2 + $0x18] sm:$0xff]
  %v391 = vld [vmem:[%s2 + $0x20] sm:$0xff]
  %v392 = vld [vmem:[%s2 + $0x28] sm:$0xff]
  %v393 = vld [vmem:[%s2 + $0x30] sm:$0xff]
  %v394 = vld [vmem:[%s2 + $0x38] sm:$0xff]
  %v395 = vld [vmem:[%s2 + $0x40] sm:$0xff]
  %v396 = vld [vmem:[%s2 + $0x48] sm:$0xff]
  %v397 = vld [vmem:[%s2 + $0x50] sm:$0xff]
  %v398 = vld [vmem:[%s2 + $0x58] sm:$0xff]
  %v399 = vld [vmem:[%s2 + $0x60] sm:$0xff]
  %v400 = vld [vmem:[%s2 + $0x68] sm:$0xff]
  %v401 = vld [vmem:[%s2 + $0x70] sm:$0xff]
  %v402 = vld [vmem:[%s2 + $0x78] sm:$0xff]
  %v403 = vld [vmem:[%s3] sm:$0xf]
  %v405 = vperm.slane %v403, 0
  %v406 = vperm.slane %v403, 1
  %v407 = vperm.slane %v403, 2
  %v408 = vperm.slane %v403, 3
  %v429 = vunpack.c.l.b16 %v371
  %v430 = vunpack.c.l.b16 %v372
  %v431 = vunpack.c.l.b16 %v373
  %v432 = vunpack.c.l.b16 %v374
  %v433 = vunpack.c.l.b16 %v375
  %v434 = vunpack.c.l.b16 %v376
  %v435 = vunpack.c.l.b16 %v377
  %v436 = vunpack.c.l.b16 %v378
  %v437 = vunpack.c.l.b16 %v379
  %v438 = vunpack.c.l.b16 %v380
  %v439 = vunpack.c.l.b16 %v381
  %v440 = vunpack.c.l.b16 %v382
  %v441 = vunpack.c.l.b16 %v383
  %v442 = vunpack.c.l.b16 %v384
  %v443 = vunpack.c.l.b16 %v385
  %v444 = vunpack.c.l.b16 %v386
  %v445 = vpack.c.b16 %v430, %v429
  %v446 = vpack.c.b16 %v432, %v431
  %v447 = vpack.c.b16 %v434, %v433
  %v448 = vpack.c.b16 %v436, %v435
  %v449 = vpack.c.b16 %v438, %v437
  %v450 = vpack.c.b16 %v440, %v439
  %v451 = vpack.c.b16 %v442, %v441
  %v452 = vpack.c.b16 %v444, %v443
  %v469 = vunpack.c.l.b16 %v387
  %v470 = vunpack.c.h.b16 %v387
  %v471 = vunpack.c.l.b16 %v388
  %v472 = vunpack.c.h.b16 %v388
  %v473 = vunpack.c.l.b16 %v389
  %v474 = vunpack.c.h.b16 %v389
  %v475 = vunpack.c.l.b16 %v390
  %v476 = vunpack.c.h.b16 %v390
  %v477 = vunpack.c.l.b16 %v391
  %v478 = vunpack.c.h.b16 %v391
  %v479 = vunpack.c.l.b16 %v392
  %v480 = vunpack.c.h.b16 %v392
  %v481 = vunpack.c.l.b16 %v393
  %v482 = vunpack.c.h.b16 %v393
  %v483 = vunpack.c.l.b16 %v394
  %v484 = vunpack.c.h.b16 %v394
  %v485 = vunpack.c.l.b16 %v395
  %v486 = vunpack.c.h.b16 %v395
  %v487 = vunpack.c.l.b16 %v396
  %v488 = vunpack.c.h.b16 %v396
  %v489 = vunpack.c.l.b16 %v397
  %v490 = vunpack.c.h.b16 %v397
  %v491 = vunpack.c.l.b16 %v398
  %v492 = vunpack.c.h.b16 %v398
  %v493 = vunpack.c.l.b16 %v399
  %v494 = vunpack.c.h.b16 %v399
  %v495 = vunpack.c.l.b16 %v400
  %v496 = vunpack.c.h.b16 %v400
  %v497 = vunpack.c.l.b16 %v401
  %v498 = vunpack.c.h.b16 %v401
  %v499 = vunpack.c.l.b16 %v402
  %v500 = vunpack.c.h.b16 %v402
  %v501 = vpack.c.b16 %v473, %v469
  %v502 = vpack.c.b16 %v474, %v470
  %v503 = vpack.c.b16 %v475, %v471
  %v504 = vpack.c.b16 %v476, %v472
  %v505 = vpack.c.b16 %v481, %v477
  %v506 = vpack.c.b16 %v482, %v478
  %v507 = vpack.c.b16 %v483, %v479
  %v508 = vpack.c.b16 %v484, %v480
  %v509 = vpack.c.b16 %v489, %v485
  %v510 = vpack.c.b16 %v490, %v486
  %v511 = vpack.c.b16 %v491, %v487
  %v512 = vpack.c.b16 %v492, %v488
  %v513 = vpack.c.b16 %v497, %v493
  %v514 = vpack.c.b16 %v498, %v494
  %v515 = vpack.c.b16 %v499, %v495
  %v516 = vpack.c.b16 %v500, %v496
  %vm533 = vcmask 523264
  %v535 = vsel %vm533, %v445, 0
  %v538 = vsel %vm533, %v446, 0
  %v541 = vsel %vm533, %v447, 0
  %v544 = vsel %vm533, %v448, 0
  %v547 = vsel %vm533, %v449, 0
  %v550 = vsel %vm533, %v450, 0
  %v553 = vsel %vm533, %v451, 0
  %v556 = vsel %vm533, %v452, 0
  %558 = vmatpush.bf16.msra.mxu0 0
  %559 = vmatpush.bf16.msra.mxu0 0
  %560 = vmatpush.bf16.msra.mxu0 0
  %561 = vmatpush.bf16.msra.mxu0 0
  %562 = vmatpush.bf16.msra.mxu0 %v513
  %563 = vmatpush.bf16.msra.mxu0 %v509
  %564 = vmatpush.bf16.msra.mxu0 %v505
  %565 = vmatpush.bf16.msra.mxu0 %v501
  %566 = vmatmul.bf16.gmra.mxu0 %v535
  %v567 = vpop.f32.mrf.mxu0
  %v568 = vadd.f32 %v405, %v567
  %v569 = vpop.f32.mrf.mxu0
  %v570 = vadd.f32 %v405, %v569
  %571 = vmatmul.bf16.gmra.mxu0 %v538
  %v572 = vpop.f32.mrf.mxu0
  %v573 = vadd.f32 %v405, %v572
  %v574 = vpop.f32.mrf.mxu0
  %v575 = vadd.f32 %v405, %v574
  %576 = vmatmul.bf16.gmra.mxu0 %v541
  %v577 = vpop.f32.mrf.mxu0
  %v578 = vadd.f32 %v405, %v577
  %v579 = vpop.f32.mrf.mxu0
  %v580 = vadd.f32 %v405, %v579
  %581 = vmatmul.bf16.gmra.mxu0 %v544
  %v582 = vpop.f32.mrf.mxu0
  %v583 = vadd.f32 %v405, %v582
  %v584 = vpop.f32.mrf.mxu0
  %v585 = vadd.f32 %v405, %v584
  %586 = vmatmul.bf16.gmra.mxu0 %v547
  %v587 = vpop.f32.mrf.mxu0
  %v588 = vadd.f32 %v405, %v587
  %v589 = vpop.f32.mrf.mxu0
  %v590 = vadd.f32 %v405, %v589
  %591 = vmatmul.bf16.gmra.mxu0 %v550
  %v592 = vpop.f32.mrf.mxu0
  %v593 = vadd.f32 %v405, %v592
  %v594 = vpop.f32.mrf.mxu0
  %v595 = vadd.f32 %v405, %v594
  %596 = vmatmul.bf16.gmra.mxu0 %v553
  %v597 = vpop.f32.mrf.mxu0
  %v598 = vadd.f32 %v405, %v597
  %v599 = vpop.f32.mrf.mxu0
  %v600 = vadd.f32 %v405, %v599
  %601 = vmatmul.bf16.gmra.mxu0 %v556
  %v602 = vpop.f32.mrf.mxu0
  %v603 = vadd.f32 %v405, %v602
  %v604 = vpop.f32.mrf.mxu0
  %v605 = vadd.f32 %v405, %v604
  %606 = vdwg.mxu0
  %607 = vmatpush.bf16.msra.mxu0 0
  %608 = vmatpush.bf16.msra.mxu0 0
  %609 = vmatpush.bf16.msra.mxu0 0
  %610 = vmatpush.bf16.msra.mxu0 0
  %611 = vmatpush.bf16.msra.mxu0 %v514
  %612 = vmatpush.bf16.msra.mxu0 %v510
  %613 = vmatpush.bf16.msra.mxu0 %v506
  %614 = vmatpush.bf16.msra.mxu0 %v502
  %615 = vmatmul.bf16.gmra.mxu0 %v535
  %v616 = vpop.f32.mrf.mxu0
  %v617 = vadd.f32 %v406, %v616
  %v618 = vpop.f32.mrf.mxu0
  %v619 = vadd.f32 %v406, %v618
  %620 = vmatmul.bf16.gmra.mxu0 %v538
  %v621 = vpop.f32.mrf.mxu0
  %v622 = vadd.f32 %v406, %v621
  %v623 = vpop.f32.mrf.mxu0
  %v624 = vadd.f32 %v406, %v623
  %625 = vmatmul.bf16.gmra.mxu0 %v541
  %v626 = vpop.f32.mrf.mxu0
  %v627 = vadd.f32 %v406, %v626
  %v628 = vpop.f32.mrf.mxu0
  %v629 = vadd.f32 %v406, %v628
  %630 = vmatmul.bf16.gmra.mxu0 %v544
  %v631 = vpop.f32.mrf.mxu0
  %v632 = vadd.f32 %v406, %v631
  %v633 = vpop.f32.mrf.mxu0
  %v634 = vadd.f32 %v406, %v633
  %635 = vmatmul.bf16.gmra.mxu0 %v547
  %v636 = vpop.f32.mrf.mxu0
  %v637 = vadd.f32 %v406, %v636
  %v638 = vpop.f32.mrf.mxu0
  %v639 = vadd.f32 %v406, %v638
  %640 = vmatmul.bf16.gmra.mxu0 %v550
  %v641 = vpop.f32.mrf.mxu0
  %v642 = vadd.f32 %v406, %v641
  %v643 = vpop.f32.mrf.mxu0
  %v644 = vadd.f32 %v406, %v643
  %645 = vmatmul.bf16.gmra.mxu0 %v553
  %v646 = vpop.f32.mrf.mxu0
  %v647 = vadd.f32 %v406, %v646
  %v648 = vpop.f32.mrf.mxu0
  %v649 = vadd.f32 %v406, %v648
  %650 = vmatmul.bf16.gmra.mxu0 %v556
  %v651 = vpop.f32.mrf.mxu0
  %v652 = vadd.f32 %v406, %v651
  %v653 = vpop.f32.mrf.mxu0
  %v654 = vadd.f32 %v406, %v653
  %655 = vdwg.mxu0
  %656 = vmatpush.bf16.msra.mxu0 0
  %657 = vmatpush.bf16.msra.mxu0 0
  %658 = vmatpush.bf16.msra.mxu0 0
  %659 = vmatpush.bf16.msra.mxu0 0
  %660 = vmatpush.bf16.msra.mxu0 %v515
  %661 = vmatpush.bf16.msra.mxu0 %v511
  %662 = vmatpush.bf16.msra.mxu0 %v507
  %663 = vmatpush.bf16.msra.mxu0 %v503
  %664 = vmatmul.bf16.gmra.mxu0 %v535
  %v665 = vpop.f32.mrf.mxu0
  %v666 = vadd.f32 %v407, %v665
  %v667 = vpop.f32.mrf.mxu0
  %v668 = vadd.f32 %v407, %v667
  %669 = vmatmul.bf16.gmra.mxu0 %v538
  %v670 = vpop.f32.mrf.mxu0
  %v671 = vadd.f32 %v407, %v670
  %v672 = vpop.f32.mrf.mxu0
  %v673 = vadd.f32 %v407, %v672
  %674 = vmatmul.bf16.gmra.mxu0 %v541
  %v675 = vpop.f32.mrf.mxu0
  %v676 = vadd.f32 %v407, %v675
  %v677 = vpop.f32.mrf.mxu0
  %v678 = vadd.f32 %v407, %v677
  %679 = vmatmul.bf16.gmra.mxu0 %v544
  %v680 = vpop.f32.mrf.mxu0
  %v681 = vadd.f32 %v407, %v680
  %v682 = vpop.f32.mrf.mxu0
  %v683 = vadd.f32 %v407, %v682
  %684 = vmatmul.bf16.gmra.mxu0 %v547
  %v685 = vpop.f32.mrf.mxu0
  %v686 = vadd.f32 %v407, %v685
  %v687 = vpop.f32.mrf.mxu0
  %v688 = vadd.f32 %v407, %v687
  %689 = vmatmul.bf16.gmra.mxu0 %v550
  %v690 = vpop.f32.mrf.mxu0
  %v691 = vadd.f32 %v407, %v690
  %v692 = vpop.f32.mrf.mxu0
  %v693 = vadd.f32 %v407, %v692
  %694 = vmatmul.bf16.gmra.mxu0 %v553
  %v695 = vpop.f32.mrf.mxu0
  %v696 = vadd.f32 %v407, %v695
  %v697 = vpop.f32.mrf.mxu0
  %v698 = vadd.f32 %v407, %v697
  %699 = vmatmul.bf16.gmra.mxu0 %v556
  %v700 = vpop.f32.mrf.mxu0
  %v701 = vadd.f32 %v407, %v700
  %v702 = vpop.f32.mrf.mxu0
  %v703 = vadd.f32 %v407, %v702
  %704 = vdwg.mxu0
  %705 = vmatpush.bf16.msra.mxu0 0
  %706 = vmatpush.bf16.msra.mxu0 0
  %707 = vmatpush.bf16.msra.mxu0 0
  %708 = vmatpush.bf16.msra.mxu0 0
  %709 = vmatpush.bf16.msra.mxu0 %v516
  %710 = vmatpush.bf16.msra.mxu0 %v512
  %711 = vmatpush.bf16.msra.mxu0 %v508
  %712 = vmatpush.bf16.msra.mxu0 %v504
  %713 = vmatmul.bf16.gmra.mxu0 %v535
  %v714 = vpop.f32.mrf.mxu0
  %v715 = vadd.f32 %v408, %v714
  %v716 = vpop.f32.mrf.mxu0
  %v717 = vadd.f32 %v408, %v716
  %718 = vmatmul.bf16.gmra.mxu0 %v538
  %v719 = vpop.f32.mrf.mxu0
  %v720 = vadd.f32 %v408, %v719
  %v721 = vpop.f32.mrf.mxu0
  %v722 = vadd.f32 %v408, %v721
  %723 = vmatmul.bf16.gmra.mxu0 %v541
  %v724 = vpop.f32.mrf.mxu0
  %v725 = vadd.f32 %v408, %v724
  %v726 = vpop.f32.mrf.mxu0
  %v727 = vadd.f32 %v408, %v726
  %728 = vmatmul.bf16.gmra.mxu0 %v544
  %v729 = vpop.f32.mrf.mxu0
  %v730 = vadd.f32 %v408, %v729
  %v731 = vpop.f32.mrf.mxu0
  %v732 = vadd.f32 %v408, %v731
  %733 = vmatmul.bf16.gmra.mxu0 %v547
  %v734 = vpop.f32.mrf.mxu0
  %v735 = vadd.f32 %v408, %v734
  %v736 = vpop.f32.mrf.mxu0
  %v737 = vadd.f32 %v408, %v736
  %738 = vmatmul.bf16.gmra.mxu0 %v550
  %v739 = vpop.f32.mrf.mxu0
  %v740 = vadd.f32 %v408, %v739
  %v741 = vpop.f32.mrf.mxu0
  %v742 = vadd.f32 %v408, %v741
  %743 = vmatmul.bf16.gmra.mxu0 %v553
  %v744 = vpop.f32.mrf.mxu0
  %v745 = vadd.f32 %v408, %v744
  %v746 = vpop.f32.mrf.mxu0
  %v747 = vadd.f32 %v408, %v746
  %748 = vmatmul.bf16.gmra.mxu0 %v556
  %v749 = vpop.f32.mrf.mxu0
  %v750 = vadd.f32 %v408, %v749
  %v751 = vpop.f32.mrf.mxu0
  %v752 = vadd.f32 %v408, %v751
  %753 = vdwg.mxu0
  %754 = vst [vmem:[%s4] sm:$0xff] %v568
  %755 = vst [vmem:[%s4 + $0x8] sm:$0xff] %v617
  %756 = vst [vmem:[%s4 + $0x10] sm:$0xff] %v666
  %757 = vst [vmem:[%s4 + $0x18] sm:$0xff] %v715
  %758 = vst [vmem:[%s4 + $0x20] sm:$0xff] %v570
  %759 = vst [vmem:[%s4 + $0x28] sm:$0xff] %v619
  %760 = vst [vmem:[%s4 + $0x30] sm:$0xff] %v668
  %761 = vst [vmem:[%s4 + $0x38] sm:$0xff] %v717
  %762 = vst [vmem:[%s4 + $0x40] sm:$0xff] %v573
  %763 = vst [vmem:[%s4 + $0x48] sm:$0xff] %v622
  %764 = vst [vmem:[%s4 + $0x50] sm:$0xff] %v671
  %765 = vst [vmem:[%s4 + $0x58] sm:$0xff] %v720
  %766 = vst [vmem:[%s4 + $0x60] sm:$0xff] %v575
  %767 = vst [vmem:[%s4 + $0x68] sm:$0xff] %v624
  %768 = vst [vmem:[%s4 + $0x70] sm:$0xff] %v673
  %769 = vst [vmem:[%s4 + $0x78] sm:$0xff] %v722
  %770 = vst [vmem:[%s4 + $0x80] sm:$0xff] %v578
  %771 = vst [vmem:[%s4 + $0x88] sm:$0xff] %v627
  %772 = vst [vmem:[%s4 + $0x90] sm:$0xff] %v676
  %773 = vst [vmem:[%s4 + $0x98] sm:$0xff] %v725
  %774 = vst [vmem:[%s4 + $0xa0] sm:$0xff] %v580
  %775 = vst [vmem:[%s4 + $0xa8] sm:$0xff] %v629
  %776 = vst [vmem:[%s4 + $0xb0] sm:$0xff] %v678
  %777 = vst [vmem:[%s4 + $0xb8] sm:$0xff] %v727
  %778 = vst [vmem:[%s4 + $0xc0] sm:$0xff] %v583
  %779 = vst [vmem:[%s4 + $0xc8] sm:$0xff] %v632
  %780 = vst [vmem:[%s4 + $0xd0] sm:$0xff] %v681
  %781 = vst [vmem:[%s4 + $0xd8] sm:$0xff] %v730
  %782 = vst [vmem:[%s4 + $0xe0] sm:$0xff] %v585
  %783 = vst [vmem:[%s4 + $0xe8] sm:$0xff] %v634
  %784 = vst [vmem:[%s4 + $0xf0] sm:$0xff] %v683
  %785 = vst [vmem:[%s4 + $0xf8] sm:$0xff] %v732
  %786 = vst [vmem:[%s4 + $0x100] sm:$0xff] %v588
  %787 = vst [vmem:[%s4 + $0x108] sm:$0xff] %v637
  %788 = vst [vmem:[%s4 + $0x110] sm:$0xff] %v686
  %789 = vst [vmem:[%s4 + $0x118] sm:$0xff] %v735
  %790 = vst [vmem:[%s4 + $0x120] sm:$0xff] %v590
  %791 = vst [vmem:[%s4 + $0x128] sm:$0xff] %v639
  %792 = vst [vmem:[%s4 + $0x130] sm:$0xff] %v688
  %793 = vst [vmem:[%s4 + $0x138] sm:$0xff] %v737
  %794 = vst [vmem:[%s4 + $0x140] sm:$0xff] %v593
  %795 = vst [vmem:[%s4 + $0x148] sm:$0xff] %v642
  %796 = vst [vmem:[%s4 + $0x150] sm:$0xff] %v691
  %797 = vst [vmem:[%s4 + $0x158] sm:$0xff] %v740
  %798 = vst [vmem:[%s4 + $0x160] sm:$0xff] %v595
  %799 = vst [vmem:[%s4 + $0x168] sm:$0xff] %v644
  %800 = vst [vmem:[%s4 + $0x170] sm:$0xff] %v693
  %801 = vst [vmem:[%s4 + $0x178] sm:$0xff] %v742
  %802 = vst [vmem:[%s4 + $0x180] sm:$0xff] %v598
  %803 = vst [vmem:[%s4 + $0x188] sm:$0xff] %v647
  %804 = vst [vmem:[%s4 + $0x190] sm:$0xff] %v696
  %805 = vst [vmem:[%s4 + $0x198] sm:$0xff] %v745
  %806 = vst [vmem:[%s4 + $0x1a0] sm:$0xff] %v600
  %807 = vst [vmem:[%s4 + $0x1a8] sm:$0xff] %v649
  %808 = vst [vmem:[%s4 + $0x1b0] sm:$0xff] %v698
  %809 = vst [vmem:[%s4 + $0x1b8] sm:$0xff] %v747
  %810 = vst [vmem:[%s4 + $0x1c0] sm:$0xff] %v603
  %811 = vst [vmem:[%s4 + $0x1c8] sm:$0xff] %v652
  %812 = vst [vmem:[%s4 + $0x1d0] sm:$0xff] %v701
  %813 = vst [vmem:[%s4 + $0x1d8] sm:$0xff] %v750
  %814 = vst [vmem:[%s4 + $0x1e0] sm:$0xff] %v605
  %815 = vst [vmem:[%s4 + $0x1e8] sm:$0xff] %v654
  %816 = vst [vmem:[%s4 + $0x1f0] sm:$0xff] %v703
  %817 = vst [vmem:[%s4 + $0x1f8] sm:$0xff] %v752
  // Predicated region
  $region22: #{forward.27} parent=0 // pred_check
    _
  $region23: #{forward.27} parent=0 // pred_check_branch
    %819 = sbr.rel (0) target = $region25
  $region24: #{forward.27} parent=0 // pred_region
    _
  $region25: #{forward.27} parent=0 // pred_fallthru
    _
  // Predicated region
  $region26: #{forward.27} parent=0 // pred_check
    _
  $region27: #{forward.27} parent=0 // pred_check_branch
    %821 = sbr.rel (0) target = $region29
  $region28: #{forward.27} parent=0 // pred_region
    _
  $region29: #{forward.27} parent=0 // pred_fallthru
    _

</llo_original>
